<compile_context>
chip_gen: v7x
topology: tpu7x:2x2x1
jax: 0.10.0
libtpu: 0.0.40
codegen_flags: <defaults>
</compile_context>

<pallas_src>
import functools

import jax
import jax.numpy as jnp
from jax.experimental import pallas as pl
from jax.experimental.pallas import tpu as pltpu


def _round_up(n, m):
    return ((n + m - 1) // m) * m


# ---------------------------------------------------------------------------
# Kernel bodies
# ---------------------------------------------------------------------------

def _ffn_kernel(x_ref, w1_ref, b1_ref, w2_ref, b2_ref, o_ref, acc_ref):
    """o = relu(x @ W1 + b1) @ W2 + b2, tiled over the pff dimension (grid axis 1)."""
    k = pl.program_id(1)

    @pl.when(k == 0)
    def _():
        acc_ref[...] = jnp.zeros_like(acc_ref)

    # fc1 slice (exact for this pff tile): bf16 MXU inputs, f32 accumulation.
    h = jnp.dot(x_ref[...], w1_ref[...], preferred_element_type=jnp.float32)
    h = jnp.maximum(h + b1_ref[...], 0.0)
    # dropout is identity in eval mode

    # partial fc2 contribution for this pff tile
    acc_ref[...] += jnp.dot(h.astype(w2_ref.dtype), w2_ref[...],
                            preferred_element_type=jnp.float32)

    @pl.when(k == pl.num_programs(1) - 1)
    def _():
        o_ref[...] = (acc_ref[...] + b2_ref[...]).astype(o_ref.dtype)


def _linear_kernel(x_ref, w_ref, b_ref, o_ref):
    y = jnp.dot(x_ref[...], w_ref[...], preferred_element_type=jnp.float32)
    o_ref[...] = (y + b_ref[...]).astype(o_ref.dtype)


def _mha_kernel(q_ref, k_ref, v_ref, kpad_ref, o_ref, *rest,
                sm_scale, causal, return_attn, block_k):
    """All heads of one batch per grid step; online softmax over the kv grid axis.

    refs: q (1,H,Sq,Dh), k/v (1,H,bk,Dh), kpad (1,1,bk) f32 (1 keep / 0 pad),
          o (1,H,Sq,Dh) [, attn (1,H,Sq,Sk)], scratch m/l (H,Sq,1) f32, acc (H,Sq,Dh) f32.
    """
    if return_attn:
        a_ref = rest[0]
        m_scr, l_scr, acc_scr = rest[1], rest[2], rest[3]
    else:
        a_ref = None
        m_scr, l_scr, acc_scr = rest

    j = pl.program_id(1)

    @pl.when(j == 0)
    def _():
        m_scr[...] = jnp.full(m_scr.shape, -jnp.inf, jnp.float32)
        l_scr[...] = jnp.zeros_like(l_scr)
        acc_scr[...] = jnp.zeros_like(acc_scr)

    q = q_ref[0]                        # [H, Sq, Dh] (bf16)
    k = k_ref[0]                        # [H, bk, Dh]
    v = v_ref[0]
    Sq = q.shape[1]

    e = jnp.einsum("hqd,hkd->hqk", q, k,
                   preferred_element_type=jnp.float32) * sm_scale     # [H,Sq,bk] f32

    valid = kpad_ref[0] > 0.5                                         # [1, bk]
    if causal:
        row = jax.lax.broadcasted_iota(jnp.int32, (Sq, block_k), 0)
        col = j * block_k + jax.lax.broadcasted_iota(jnp.int32, (Sq, block_k), 1)
        valid = jnp.logical_and(row >= col, valid)                     # [Sq, bk]
    e = jnp.where(valid[None, :, :], e, -1e10)

    m_prev = m_scr[...]                                                # [H,Sq,1]
    m_new = jnp.maximum(m_prev, jnp.max(e, axis=-1, keepdims=True))
    alpha = jnp.exp(m_prev - m_new)
    p = jnp.exp(e - m_new)                                             # [H,Sq,bk]
    l_scr[...] = alpha * l_scr[...] + jnp.sum(p, axis=-1, keepdims=True)
    acc_scr[...] = alpha * acc_scr[...] + jnp.einsum(
        "hqk,hkd->hqd", p.astype(v.dtype), v, preferred_element_type=jnp.float32)
    m_scr[...] = m_new

    @pl.when(j == pl.num_programs(1) - 1)
    def _():
        inv_l = pl.reciprocal(l_scr[...], approx=True)                 # EUP slot
        o_ref[0] = (acc_scr[...] * inv_l).astype(o_ref.dtype)
        if return_attn:
            # return_attn implies a single kv step, so p / l is the full softmax.
            a_ref[0] = (p * inv_l).astype(jnp.float32)


def _add_ln_kernel(x_ref, y_ref, g_ref, b_ref, o_ref, *, eps):
    z = x_ref[...].astype(jnp.float32) + y_ref[...].astype(jnp.float32)
    mu = jnp.mean(z, axis=-1, keepdims=True)
    c = z - mu
    var = jnp.mean(c * c, axis=-1, keepdims=True)
    inv = jax.lax.rsqrt(var + eps)
    o_ref[...] = (c * inv * g_ref[...] + b_ref[...]).astype(o_ref.dtype)


# ---------------------------------------------------------------------------
# Pallas wrappers
# ---------------------------------------------------------------------------

def pallas_feed_forward(x, w1, b1, w2, b2, *, tm=256, tp=512):
    """x: [..., D] bf16; w1: [D, P] bf16 (P pre-padded to 128); w2: [P, D] bf16; b f32."""
    shape = x.shape
    D = shape[-1]
    P = w1.shape[1]
    x2 = x.reshape(-1, D)
    M = x2.shape[0]

    tm_eff = min(tm, _round_up(M, 8))
    M_pad = _round_up(M, tm_eff)
    if M_pad != M:
        x2 = jnp.pad(x2, ((0, M_pad - M), (0, 0)))

    # Keep both weights resident (single pff step) when they comfortably fit in VMEM
    # (v5e/v6e 128 MiB, v7x 64 MiB); otherwise tile the pff axis (innermost, "arbitrary").
    w_bytes = 2 * D * P * w1.dtype.itemsize
    if P <= tp or w_bytes <= (8 << 20):
        tp_eff = P
    else:
        tp_eff = tp if P % tp == 0 else 128
    n_p = P // tp_eff

    isz = x2.dtype.itemsize
    # Derived VMEM ask: double-buffered in/out blocks + f32 accumulator + margin,
    # floored at the default scoped limit and capped v7x-safe.
    vmem_bytes = 2 * (tm_eff * D * isz + D * tp_eff * isz + tp_eff * 4
                      + tp_eff * D * isz + D * 4 + tm_eff * D * isz)
    vmem_bytes += tm_eff * D * 4 + (4 << 20)
    vmem_bytes = int(min(max(vmem_bytes, 32 << 20), 48 << 20))

    cost = pl.CostEstimate(
        flops=4 * M_pad * D * P,
        transcendentals=0,
        bytes_accessed=(x2.size + M_pad * D + w1.size + w2.size) * isz
                       + (b1.size + b2.size) * 4)

    out = pl.pallas_call(
        _ffn_kernel,
        out_shape=jax.ShapeDtypeStruct((M_pad, D), x.dtype),
        grid_spec=pltpu.PrefetchScalarGridSpec(
            num_scalar_prefetch=0,
            grid=(M_pad // tm_eff, n_p),
            in_specs=[
                pl.BlockSpec((tm_eff, D), lambda i, k: (i, 0)),   # x row tile
                pl.BlockSpec((D, tp_eff), lambda i, k: (0, k)),   # W1 pff slice
                pl.BlockSpec((1, tp_eff), lambda i, k: (0, k)),   # b1 pff slice
                pl.BlockSpec((tp_eff, D), lambda i, k: (k, 0)),   # W2 pff slice
                pl.BlockSpec((1, D), lambda i, k: (0, 0)),        # b2
            ],
            out_specs=pl.BlockSpec((tm_eff, D), lambda i, k: (i, 0)),
            scratch_shapes=[pltpu.VMEM((tm_eff, D), jnp.float32)],
        ),
        compiler_params=pltpu.CompilerParams(
            dimension_semantics=("parallel", "arbitrary"),
            vmem_limit_bytes=vmem_bytes),
        cost_estimate=cost,
    )(x2, w1, b1.reshape(1, P), w2, b2.reshape(1, D))

    return out[:M].reshape(shape)


def pallas_linear(x, w, b, *, tm=256, tn=512):
    """y = x @ w + b; rows and output (e.g. vocab) dims tiled, both axes 'parallel'."""
    shape = x.shape
    d_in = shape[-1]
    d_out = w.shape[1]
    x2 = x.reshape(-1, d_in)
    M = x2.shape[0]
    tm_eff = min(tm, _round_up(M, 8))
    M_pad = _round_up(M, tm_eff)
    if M_pad != M:
        x2 = jnp.pad(x2, ((0, M_pad - M), (0, 0)))

    if d_out <= 2048:
        tn_eff = d_out                     # small weight: keep resident, lane-dense store
    else:
        tn_eff = next(t for t in (tn, 256, 128) if d_out % t == 0)

    isz = x2.dtype.itemsize
    cost = pl.CostEstimate(
        flops=2 * M_pad * d_in * d_out,
        transcendentals=0,
        bytes_accessed=(x2.size + w.size + M_pad * d_out) * isz + b.size * 4)

    out = pl.pallas_call(
        _linear_kernel,
        out_shape=jax.ShapeDtypeStruct((M_pad, d_out), x.dtype),
        grid_spec=pltpu.PrefetchScalarGridSpec(
            num_scalar_prefetch=0,
            grid=(M_pad // tm_eff, d_out // tn_eff),
            in_specs=[
                pl.BlockSpec((tm_eff, d_in), lambda i, j: (i, 0)),
                pl.BlockSpec((d_in, tn_eff), lambda i, j: (0, j)),
                pl.BlockSpec((1, tn_eff), lambda i, j: (0, j)),
            ],
            out_specs=pl.BlockSpec((tm_eff, tn_eff), lambda i, j: (i, j)),
        ),
        compiler_params=pltpu.CompilerParams(
            dimension_semantics=("parallel", "parallel")),
        cost_estimate=cost,
    )(x2, w, b.reshape(1, d_out))
    return out[:M].reshape(*shape[:-1], d_out)


def pallas_attention(q, k, v, kpad, *, causal, need_attn, block_k=512):
    """q: [B,H,Sq,Dh]; k,v: [B,H,Sk,Dh]; kpad: [B,1,Sk] f32 (1 keep / 0 pad)."""
    B, H, Sq, Dh = q.shape
    Sk = k.shape[2]
    sm_scale = 1.0 / float(Dh) ** 0.5

    if need_attn or Sk <= block_k:
        bk, Sk_pad, nkv = Sk, Sk, 1          # single kv step (required when attn is returned)
    else:
        bk = block_k
        Sk_pad = _round_up(Sk, bk)
        nkv = Sk_pad // bk
    if Sk_pad != Sk:
        # padded keys are masked out (kpad=0); only fully-masked query rows would see them.
        k = jnp.pad(k, ((0, 0), (0, 0), (0, Sk_pad - Sk), (0, 0)))
        v = jnp.pad(v, ((0, 0), (0, 0), (0, Sk_pad - Sk), (0, 0)))
        kpad = jnp.pad(kpad, ((0, 0), (0, 0), (0, Sk_pad - Sk)))

    kernel = functools.partial(_mha_kernel, sm_scale=sm_scale, causal=causal,
                               return_attn=need_attn, block_k=bk)

    in_specs = [
        pl.BlockSpec((1, H, Sq, Dh), lambda b, j: (b, 0, 0, 0)),
        pl.BlockSpec((1, H, bk, Dh), lambda b, j: (b, 0, j, 0)),
        pl.BlockSpec((1, H, bk, Dh), lambda b, j: (b, 0, j, 0)),
        pl.BlockSpec((1, 1, bk), lambda b, j: (b, 0, j)),
    ]
    if need_attn:
        out_shape = (jax.ShapeDtypeStruct((B, H, Sq, Dh), q.dtype),
                     jax.ShapeDtypeStruct((B, H, Sq, Sk_pad), jnp.float32))
        out_specs = (pl.BlockSpec((1, H, Sq, Dh), lambda b, j: (b, 0, 0, 0)),
                     pl.BlockSpec((1, H, Sq, Sk_pad), lambda b, j: (b, 0, 0, 0)))
    else:
        out_shape = jax.ShapeDtypeStruct((B, H, Sq, Dh), q.dtype)
        out_specs = pl.BlockSpec((1, H, Sq, Dh), lambda b, j: (b, 0, 0, 0))

    isz = q.dtype.itemsize
    cost = pl.CostEstimate(
        flops=4 * B * H * Sq * Sk_pad * Dh,
        transcendentals=B * H * Sq * Sk_pad,
        bytes_accessed=(q.size + k.size + v.size + B * H * Sq * Dh) * isz
                       + kpad.size * 4
                       + (B * H * Sq * Sk_pad * 4 if need_attn else 0))

    res = pl.pallas_call(
        kernel,
        out_shape=out_shape,
        grid_spec=pltpu.PrefetchScalarGridSpec(
            num_scalar_prefetch=0,
            grid=(B, nkv),
            in_specs=in_specs,
            out_specs=out_specs,
            scratch_shapes=[pltpu.VMEM((H, Sq, 1), jnp.float32),
                            pltpu.VMEM((H, Sq, 1), jnp.float32),
                            pltpu.VMEM((H, Sq, Dh), jnp.float32)],
        ),
        compiler_params=pltpu.CompilerParams(
            dimension_semantics=("parallel", "arbitrary")),
        cost_estimate=cost,
    )(q, k, v, kpad)

    if need_attn:
        ctx, attn = res
        return ctx, attn[..., :Sk]
    return res, None


def pallas_add_layer_norm(x, y, gamma, beta, *, eps=1e-5, tm=512):
    """LayerNorm(x + y) * gamma + beta, fused residual add (mem-bound: big row tiles)."""
    shape = x.shape
    D = shape[-1]
    x2 = x.reshape(-1, D)
    y2 = y.reshape(-1, D)
    M = x2.shape[0]
    tm_eff = min(tm, _round_up(M, 8))
    M_pad = _round_up(M, tm_eff)
    if M_pad != M:
        x2 = jnp.pad(x2, ((0, M_pad - M), (0, 0)))
        y2 = jnp.pad(y2, ((0, M_pad - M), (0, 0)))
    kernel = functools.partial(_add_ln_kernel, eps=eps)

    out = pl.pallas_call(
        kernel,
        out_shape=jax.ShapeDtypeStruct((M_pad, D), x.dtype),
        grid_spec=pltpu.PrefetchScalarGridSpec(
            num_scalar_prefetch=0,
            grid=(M_pad // tm_eff,),
            in_specs=[
                pl.BlockSpec((tm_eff, D), lambda i: (i, 0)),
                pl.BlockSpec((tm_eff, D), lambda i: (i, 0)),
                pl.BlockSpec((1, D), lambda i: (0, 0)),
                pl.BlockSpec((1, D), lambda i: (0, 0)),
            ],
            out_specs=pl.BlockSpec((tm_eff, D), lambda i: (i, 0)),
        ),
        compiler_params=pltpu.CompilerParams(
            dimension_semantics=("parallel",)),
    )(x2, y2, gamma.reshape(1, D), beta.reshape(1, D))
    return out[:M].reshape(shape)


# ---------------------------------------------------------------------------
# Pure-JAX reference primitives (matched precision, for correctness checking)
# ---------------------------------------------------------------------------

def ref_linear(x, w, b):
    y = jnp.dot(x, w, preferred_element_type=jnp.float32) + b
    return y.astype(x.dtype)


def ref_feed_forward(x, w1, b1, w2, b2):
    h = jnp.maximum(jnp.dot(x, w1, preferred_element_type=jnp.float32) + b1, 0.0)
    y = jnp.dot(h.astype(w2.dtype), w2, preferred_element_type=jnp.float32) + b2
    return y.astype(x.dtype)              # dropout identity in eval


def ref_attention(q, k, v, kpad, *, causal, need_attn, block_k=512):
    B, H, Sq, Dh = q.shape
    Sk = k.shape[2]
    e = jnp.einsum("bhqd,bhkd->bhqk", q, k,
                   preferred_element_type=jnp.float32) * (1.0 / float(Dh) ** 0.5)
    valid = (kpad > 0.5)[:, :, None, :]                     # [B,1,1,Sk]
    if causal:
        causal_m = jnp.tril(jnp.ones((Sq, Sk), dtype=bool))
        valid = jnp.logical_and(valid, causal_m[None, None])
    e = jnp.where(valid, e, -1e10)
    attn = jax.nn.softmax(e, axis=-1)
    ctx = jnp.einsum("bhqk,bhkd->bhqd", attn.astype(v.dtype), v,
                     preferred_element_type=jnp.float32).astype(q.dtype)
    return ctx, (attn if need_attn else None)


def ref_add_layer_norm(x, y, gamma, beta, *, eps=1e-5):
    z = x.astype(jnp.float32) + y.astype(jnp.float32)
    mu = jnp.mean(z, axis=-1, keepdims=True)
    var = jnp.mean((z - mu) ** 2, axis=-1, keepdims=True)
    out = (z - mu) * jax.lax.rsqrt(var + eps) * gamma + beta
    return out.astype(x.dtype)


PALLAS_PRIMS = dict(linear=pallas_linear, ffn=pallas_feed_forward,
                    attention=pallas_attention, add_ln=pallas_add_layer_norm)
REF_PRIMS = dict(linear=ref_linear, ffn=ref_feed_forward,
                 attention=ref_attention, add_ln=ref_add_layer_norm)


# ---------------------------------------------------------------------------
# Transformer forward pass (same structure as the PyTorch module, eval mode)
# ---------------------------------------------------------------------------

def _split_heads(x, n_heads):
    B, S, D = x.shape
    # TODO(synk): head split/merge transposes stay in plain JAX (HBM copies); folding the
    # [B,S,D]<->[B,H,S,Dh] relayout into the attention kernel's index_map is future work.
    return x.reshape(B, S, n_heads, D // n_heads).transpose(0, 2, 1, 3)


def _merge_heads(x):
    B, H, S, Dh = x.shape
    return x.transpose(0, 2, 1, 3).reshape(B, S, H * Dh)


def self_attention_block(prims, p, x, kpad, n_heads, *, causal, need_attn=False):
    qkv = prims["linear"](x, p["wqkv"], p["bqkv"])          # fused Q|K|V projection
    q, k, v = jnp.split(qkv, 3, axis=-1)
    q = _split_heads(q, n_heads)
    k = _split_heads(k, n_heads)
    v = _split_heads(v, n_heads)
    ctx, attn = prims["attention"](q, k, v, kpad, causal=causal, need_attn=need_attn)
    out = prims["linear"](_merge_heads(ctx), p["wo"], p["bo"])
    return out, attn


def cross_attention_block(prims, p, x, mem, kpad, n_heads, *, need_attn=False):
    q = prims["linear"](x, p["wq"], p["bq"])
    kv = prims["linear"](mem, p["wkv"], p["bkv"])            # fused K|V projection
    k, v = jnp.split(kv, 2, axis=-1)
    q = _split_heads(q, n_heads)
    k = _split_heads(k, n_heads)
    v = _split_heads(v, n_heads)
    ctx, attn = prims["attention"](q, k, v, kpad, causal=False, need_attn=need_attn)
    out = prims["linear"](_merge_heads(ctx), p["wo"], p["bo"])
    return out, attn


def encoder_forward(prims, p, src, src_kpad, n_heads):
    B, S = src.shape
    D = p["tok_emb"].shape[1]
    scale = jnp.asarray(float(D) ** 0.5, p["tok_emb"].dtype)
    # TODO(synk): token/positional embedding gather stays in plain JAX (no blockwise Pallas gather).
    x = p["tok_emb"][src] * scale + p["pos_emb"][:S][None, :, :]
    for lp in p["layers"]:
        a, _ = self_attention_block(prims, lp["attn"], x, src_kpad, n_heads, causal=False)
        x = prims["add_ln"](x, a, lp["ln1_g"], lp["ln1_b"])
        f = prims["ffn"](x, lp["w1"], lp["b1"], lp["w2"], lp["b2"])
        x = prims["add_ln"](x, f, lp["ln2_g"], lp["ln2_b"])
    return x


def decoder_forward(prims, p, trg, enc_src, trg_kpad, src_kpad, n_heads, trg_vocab):
    B, T = trg.shape
    D = p["tok_emb"].shape[1]
    scale = jnp.asarray(float(D) ** 0.5, p["tok_emb"].dtype)
    x = p["tok_emb"][trg] * scale + p["pos_emb"][:T][None, :, :]
    attention = None
    n_layers = len(p["layers"])
    for li, lp in enumerate(p["layers"]):
        a, _ = self_attention_block(prims, lp["self_attn"], x, trg_kpad, n_heads,
                                    causal=True)
        x = prims["add_ln"](x, a, lp["ln1_g"], lp["ln1_b"])
        # Only the last layer's cross-attention is returned by Transformer.forward;
        # earlier layers skip the attention-matrix writeback entirely.
        need_attn = (li == n_layers - 1)
        a2, attn = cross_attention_block(prims, lp["cross_attn"], x, enc_src, src_kpad,
                                         n_heads, need_attn=need_attn)
        if need_attn:
            attention = attn
        x = prims["add_ln"](x, a2, lp["ln2_g"], lp["ln2_b"])
        f = prims["ffn"](x, lp["w1"], lp["b1"], lp["w2"], lp["b2"])
        x = prims["add_ln"](x, f, lp["ln3_g"], lp["ln3_b"])
    logits = prims["linear"](x, p["w_out"], p["b_out"])[..., :trg_vocab]
    return logits, attention


def transformer_forward(prims, params, src, trg, *, pad_idx, n_heads, trg_vocab):
    # Compact masks: key-padding vectors [B,1,S]; causal part is built inside the kernel.
    src_kpad = (src != pad_idx).astype(jnp.float32)[:, None, :]
    trg_kpad = (trg != pad_idx).astype(jnp.float32)[:, None, :]
    enc_src = encoder_forward(prims, params["encoder"], src, src_kpad, n_heads)
    output, attention = decoder_forward(prims, params["decoder"], trg, enc_src,
                                        trg_kpad, src_kpad, n_heads, trg_vocab)
    return output, attention


# ---------------------------------------------------------------------------
# Parameter init (f32, nn.Linear-transposed layout) + one-time compute prep
# ---------------------------------------------------------------------------

def _linear_init(key, d_in, d_out, dtype=jnp.float32):
    kw, kb = jax.random.split(key)
    w = jax.random.normal(kw, (d_in, d_out), dtype) * 0.02
    b = jax.random.normal(kb, (d_out,), dtype) * 0.02
    return w, b


def _mha_init(key, d_model):
    kq, kk, kv, ko = jax.random.split(key, 4)
    wq, bq = _linear_init(kq, d_model, d_model)
    wk, bk = _linear_init(kk, d_model, d_model)
    wv, bv = _linear_init(kv, d_model, d_model)
    wo, bo = _linear_init(ko, d_model, d_model)
    return dict(wq=wq, bq=bq, wk=wk, bk=bk, wv=wv, bv=bv, wo=wo, bo=bo)


def _ln_init(d_model):
    return jnp.ones((d_model,), jnp.float32), jnp.zeros((d_model,), jnp.float32)


def _encoder_layer_init(key, d_model, pff_dim):
    ka, k1, k2 = jax.random.split(key, 3)
    w1, b1 = _linear_init(k1, d_model, pff_dim)
    w2, b2 = _linear_init(k2, pff_dim, d_model)
    g1, be1 = _ln_init(d_model)
    g2, be2 = _ln_init(d_model)
    return dict(attn=_mha_init(ka, d_model),
                ln1_g=g1, ln1_b=be1, ln2_g=g2, ln2_b=be2,
                w1=w1, b1=b1, w2=w2, b2=b2)


def _decoder_layer_init(key, d_model, pff_dim):
    ks, kc, k1, k2 = jax.random.split(key, 4)
    w1, b1 = _linear_init(k1, d_model, pff_dim)
    w2, b2 = _linear_init(k2, pff_dim, d_model)
    g1, be1 = _ln_init(d_model)
    g2, be2 = _ln_init(d_model)
    g3, be3 = _ln_init(d_model)
    return dict(self_attn=_mha_init(ks, d_model), cross_attn=_mha_init(kc, d_model),
                ln1_g=g1, ln1_b=be1, ln2_g=g2, ln2_b=be2, ln3_g=g3, ln3_b=be3,
                w1=w1, b1=b1, w2=w2, b2=b2)


def init_transformer_params(key, *, src_vocab, trg_vocab, d_model, pff_dim,
                            n_layers, max_len):
    ke_tok, ke_pos, kd_tok, kd_pos, k_out, k_layers = jax.random.split(key, 6)
    k_enc_layers = jax.random.split(jax.random.fold_in(k_layers, 0), n_layers)
    k_dec_layers = jax.random.split(jax.random.fold_in(k_layers, 1), n_layers)
    w_out, b_out = _linear_init(k_out, d_model, trg_vocab)
    encoder = dict(
        tok_emb=jax.random.normal(ke_tok, (src_vocab, d_model), jnp.float32) * 0.02,
        pos_emb=jax.random.normal(ke_pos, (max_len, d_model), jnp.float32) * 0.02,
        layers=[_encoder_layer_init(k, d_model, pff_dim) for k in k_enc_layers],
    )
    decoder = dict(
        tok_emb=jax.random.normal(kd_tok, (trg_vocab, d_model), jnp.float32) * 0.02,
        pos_emb=jax.random.normal(kd_pos, (max_len, d_model), jnp.float32) * 0.02,
        layers=[_decoder_layer_init(k, d_model, pff_dim) for k in k_dec_layers],
        w_out=w_out, b_out=b_out,
    )
    return dict(encoder=encoder, decoder=decoder)


def prepare_params(raw, *, compute_dtype=jnp.bfloat16):
    """One-time prep: cast matmul weights/embeddings to bf16, fuse QKV / KV weights,
    pad pff and vocab dims to multiples of 128. Biases and LN params stay f32."""
    f32 = jnp.float32
    d_model = raw["encoder"]["tok_emb"].shape[1]
    assert d_model % 128 == 0, "d_model must be lane-aligned (multiple of 128)"

    def prep_self_mha(p):
        return dict(
            wqkv=jnp.concatenate([p["wq"], p["wk"], p["wv"]], axis=1).astype(compute_dtype),
            bqkv=jnp.concatenate([p["bq"], p["bk"], p["bv"]]).astype(f32),
            wo=p["wo"].astype(compute_dtype), bo=p["bo"].astype(f32))

    def prep_cross_mha(p):
        return dict(
            wq=p["wq"].astype(compute_dtype), bq=p["bq"].astype(f32),
            wkv=jnp.concatenate([p["wk"], p["wv"]], axis=1).astype(compute_dtype),
            bkv=jnp.concatenate([p["bk"], p["bv"]]).astype(f32),
            wo=p["wo"].astype(compute_dtype), bo=p["bo"].astype(f32))

    def prep_ffn(lp):
        P = lp["w1"].shape[1]
        P_pad = _round_up(P, 128)
        return dict(
            w1=jnp.pad(lp["w1"], ((0, 0), (0, P_pad - P))).astype(compute_dtype),
            b1=jnp.pad(lp["b1"], (0, P_pad - P)).astype(f32),
            w2=jnp.pad(lp["w2"], ((0, P_pad - P), (0, 0))).astype(compute_dtype),
            b2=lp["b2"].astype(f32))

    def prep_enc_layer(lp):
        d = dict(attn=prep_self_mha(lp["attn"]),
                 ln1_g=lp["ln1_g"].astype(f32), ln1_b=lp["ln1_b"].astype(f32),
                 ln2_g=lp["ln2_g"].astype(f32), ln2_b=lp["ln2_b"].astype(f32))
        d.update(prep_ffn(lp))
        return d

    def prep_dec_layer(lp):
        d = dict(self_attn=prep_self_mha(lp["self_attn"]),
                 cross_attn=prep_cross_mha(lp["cross_attn"]),
                 ln1_g=lp["ln1_g"].astype(f32), ln1_b=lp["ln1_b"].astype(f32),
                 ln2_g=lp["ln2_g"].astype(f32), ln2_b=lp["ln2_b"].astype(f32),
                 ln3_g=lp["ln3_g"].astype(f32), ln3_b=lp["ln3_b"].astype(f32))
        d.update(prep_ffn(lp))
        return d

    enc, dec = raw["encoder"], raw["decoder"]
    V = dec["w_out"].shape[1]
    V_pad = _round_up(V, 128)
    return dict(
        encoder=dict(
            tok_emb=enc["tok_emb"].astype(compute_dtype),
            pos_emb=enc["pos_emb"].astype(compute_dtype),
            layers=[prep_enc_layer(lp) for lp in enc["layers"]]),
        decoder=dict(
            tok_emb=dec["tok_emb"].astype(compute_dtype),
            pos_emb=dec["pos_emb"].astype(compute_dtype),
            layers=[prep_dec_layer(lp) for lp in dec["layers"]],
            w_out=jnp.pad(dec["w_out"], ((0, 0), (0, V_pad - V))).astype(compute_dtype),
            b_out=jnp.pad(dec["b_out"], (0, V_pad - V)).astype(f32)))


# ---------------------------------------------------------------------------
# Demo / correctness check
# ---------------------------------------------------------------------------

if __name__ == "__main__":
    batch = 2
    src_len, trg_len = 8, 8
    d_model, n_heads, pff_dim = 128, 4, 256     # lane-dense feature dims (128-aligned)
    n_layers = 2
    src_vocab, trg_vocab, max_len = 128, 128, 64
    pad_idx = 0

    root = jax.random.PRNGKey(0)
    k_params, k_src, k_trg = jax.random.split(root, 3)
    raw_params = init_transformer_params(
        k_params, src_vocab=src_vocab, trg_vocab=trg_vocab, d_model=d_model,
        pff_dim=pff_dim, n_layers=n_layers, max_len=max_len)
    # Cast / fuse / pad weights ONCE (outside the jitted forward).
    params = prepare_params(raw_params)

    src = jax.random.randint(k_src, (batch, src_len), 1, src_vocab, dtype=jnp.int32)
    trg = jax.random.randint(k_trg, (batch, trg_len), 1, trg_vocab, dtype=jnp.int32)
    src = src.at[1, -2:].set(pad_idx)     # trailing padding to exercise the masks
    trg = trg.at[1, -3:].set(pad_idx)

    pallas_fwd = jax.jit(functools.partial(
        transformer_forward, PALLAS_PRIMS, pad_idx=pad_idx, n_heads=n_heads,
        trg_vocab=trg_vocab))
    out, attention = pallas_fwd(params, src, trg)
    out = jax.block_until_ready(out)
    attention = jax.block_until_ready(attention)

    # Pure-JAX reference of the same forward pass at matched (bf16-MXU) precision.
    ref_fwd = jax.jit(functools.partial(
        transformer_forward, REF_PRIMS, pad_idx=pad_idx, n_heads=n_heads,
        trg_vocab=trg_vocab))
    ref_out, ref_attention = ref_fwd(params, src, trg)
    ref_out = jax.block_until_ready(ref_out)
    ref_attention = jax.block_until_ready(ref_attention)

    assert out.shape == (batch, trg_len, trg_vocab)
    assert attention.shape == (batch, n_heads, trg_len, src_len)

    out_f = out.astype(jnp.float32)
    ref_f = ref_out.astype(jnp.float32)
    assert jnp.allclose(out_f, ref_f, atol=5e-2, rtol=5e-2), (
        float(jnp.max(jnp.abs(out_f - ref_f))))
    assert jnp.allclose(attention, ref_attention, atol=2e-2, rtol=2e-2), (
        float(jnp.max(jnp.abs(attention - ref_attention))))

    print("KERNEL_OK")
</pallas_src>

<mosaic_0001>
module attributes {stable_mosaic.version = 11 : i64} {
  func.func @_linear_kernel(%arg0: i32, %arg1: i32, %arg2: memref<16x128xbf16, #tpu.memory_space<vmem>>, %arg3: memref<128x384xbf16, #tpu.memory_space<vmem>>, %arg4: memref<1x384xf32, #tpu.memory_space<vmem>>, %arg5: memref<16x384xbf16, #tpu.memory_space<vmem>>) attributes {dimension_semantics = [#tpu.dimension_semantics<parallel>, #tpu.dimension_semantics<parallel>], iteration_bounds = array<i64: 1, 1>, scalar_prefetch = 0 : i64, scratch_operands = 0 : i64, tpu.core_type = #tpu.core_type<tc>, window_params = [{transform_indices = @transform_0, window_bounds = array<i64: 16, 128>}, {transform_indices = @transform_1, window_bounds = array<i64: 128, 384>}, {transform_indices = @transform_2, window_bounds = array<i64: 1, 384>}, {transform_indices = @transform_3, window_bounds = array<i64: 16, 384>}]} {
    %c0 = arith.constant 0 : index
    %c0_0 = arith.constant 0 : index
    %0 = vector.load %arg2[%c0, %c0_0] : memref<16x128xbf16, #tpu.memory_space<vmem>>, vector<16x128xbf16>
    %c0_1 = arith.constant 0 : index
    %c0_2 = arith.constant 0 : index
    %1 = vector.load %arg3[%c0_1, %c0_2] : memref<128x384xbf16, #tpu.memory_space<vmem>>, vector<128x384xbf16>
    %cst = arith.constant dense<0.000000e+00> : vector<16x384xf32>
    %2 = tpu.matmul %0, %1, %cst {dimension_numbers = #tpu.dot_dimension_numbers<[1], [0], [0], [1], [0, 0, 1, 1], [], []>} : vector<16x128xbf16>, vector<128x384xbf16>, vector<16x384xf32> -> vector<16x384xf32>
    %c0_3 = arith.constant 0 : index
    %c0_4 = arith.constant 0 : index
    %3 = vector.load %arg4[%c0_3, %c0_4] : memref<1x384xf32, #tpu.memory_space<vmem>>, vector<1x384xf32>
    %4 = vector.broadcast %3 : vector<1x384xf32> to vector<16x384xf32>
    %5 = arith.addf %2, %4 : vector<16x384xf32>
    %6 = arith.truncf %5 : vector<16x384xf32> to vector<16x384xbf16>
    %c0_5 = arith.constant 0 : index
    %c0_6 = arith.constant 0 : index
    %7 = vector.load %arg5[%c0_5, %c0_6] : memref<16x384xbf16, #tpu.memory_space<vmem>>, vector<16x384xbf16>
    tpu.vector_store %arg5[%c0_5, %c0_6], %6 {strides = array<i32>} : memref<16x384xbf16, #tpu.memory_space<vmem>>, vector<16x384xbf16>,
    return
  }
  func.func @transform_0(%arg0: i32, %arg1: i32) -> (i32, i32) {
    %c0_i32 = arith.constant 0 : i32
    %c0_i32_0 = arith.constant 0 : i32
    return %arg0, %c0_i32 : i32, i32
  }
  func.func @transform_1(%arg0: i32, %arg1: i32) -> (i32, i32) {
    %c0_i32 = arith.constant 0 : i32
    %c0_i32_0 = arith.constant 0 : i32
    return %c0_i32, %arg1 : i32, i32
  }
  func.func @transform_2(%arg0: i32, %arg1: i32) -> (i32, i32) {
    %c0_i32 = arith.constant 0 : i32
    %c0_i32_0 = arith.constant 0 : i32
    return %c0_i32, %arg1 : i32, i32
  }
  func.func @transform_3(%arg0: i32, %arg1: i32) -> (i32, i32) {
    %c0_i32 = arith.constant 0 : i32
    return %arg0, %arg1 : i32, i32
  }
}

module attributes {stable_mosaic.version = 11 : i64} {
  func.func @_mha_kernel(%arg0: i32, %arg1: i32, %arg2: memref<1x4x8x32xbf16, #tpu.memory_space<vmem>>, %arg3: memref<1x4x8x32xbf16, #tpu.memory_space<vmem>>, %arg4: memref<1x4x8x32xbf16, #tpu.memory_space<vmem>>, %arg5: memref<1x1x8xf32, #tpu.memory_space<vmem>>, %arg6: memref<1x4x8x32xbf16, #tpu.memory_space<vmem>>, %arg7: memref<4x8x1xf32, #tpu.memory_space<vmem>>, %arg8: memref<4x8x1xf32, #tpu.memory_space<vmem>>, %arg9: memref<4x8x32xf32, #tpu.memory_space<vmem>>) attributes {dimension_semantics = [#tpu.dimension_semantics<parallel>, #tpu.dimension_semantics<arbitrary>], iteration_bounds = array<i64: 2, 1>, scalar_prefetch = 0 : i64, scratch_operands = 3 : i64, tpu.core_type = #tpu.core_type<tc>, window_params = [{transform_indices = @transform_0, window_bounds = array<i64: 1, 4, 8, 32>}, {transform_indices = @transform_1, window_bounds = array<i64: 1, 4, 8, 32>}, {transform_indices = @transform_2, window_bounds = array<i64: 1, 4, 8, 32>}, {transform_indices = @transform_3, window_bounds = array<i64: 1, 1, 8>}, {transform_indices = @transform_4, window_bounds = array<i64: 1, 4, 8, 32>}]} {
    %c0_i32 = arith.constant 0 : i32
    %0 = arith.cmpi eq, %arg1, %c0_i32 : i32
    %1 = arith.extui %0 : i1 to i32
    %c0_i32_0 = arith.constant 0 : i32
    %2 = arith.cmpi ne, %1, %c0_i32_0 : i32
    scf.if %2 {
      %cst_41 = arith.constant 0xFF800000 : f32
      %55 = vector.broadcast %cst_41 : f32 to vector<4x8x1xf32>
      %c0_42 = arith.constant 0 : index
      %c0_43 = arith.constant 0 : index
      %c0_44 = arith.constant 0 : index
      %56 = vector.load %arg7[%c0_42, %c0_43, %c0_44] : memref<4x8x1xf32, #tpu.memory_space<vmem>>, vector<4x8x1xf32>
      tpu.vector_store %arg7[%c0_42, %c0_43, %c0_44], %55 {strides = array<i32>} : memref<4x8x1xf32, #tpu.memory_space<vmem>>, vector<4x8x1xf32>,
      %cst_45 = arith.constant 0.000000e+00 : f32
      %57 = vector.broadcast %cst_45 : f32 to vector<4x8x1xf32>
      %c0_46 = arith.constant 0 : index
      %c0_47 = arith.constant 0 : index
      %c0_48 = arith.constant 0 : index
      %58 = vector.load %arg8[%c0_46, %c0_47, %c0_48] : memref<4x8x1xf32, #tpu.memory_space<vmem>>, vector<4x8x1xf32>
      tpu.vector_store %arg8[%c0_46, %c0_47, %c0_48], %57 {strides = array<i32>} : memref<4x8x1xf32, #tpu.memory_space<vmem>>, vector<4x8x1xf32>,
      %cst_49 = arith.constant 0.000000e+00 : f32
      %59 = vector.broadcast %cst_49 : f32 to vector<4x8x32xf32>
      %c0_50 = arith.constant 0 : index
      %c0_51 = arith.constant 0 : index
      %c0_52 = arith.constant 0 : index
      %60 = vector.load %arg9[%c0_50, %c0_51, %c0_52] : memref<4x8x32xf32, #tpu.memory_space<vmem>>, vector<4x8x32xf32>
      tpu.vector_store %arg9[%c0_50, %c0_51, %c0_52], %59 {strides = array<i32>} : memref<4x8x32xf32, #tpu.memory_space<vmem>>, vector<4x8x32xf32>,
    } else {
    }
    %c0 = arith.constant 0 : index
    %c0_1 = arith.constant 0 : index
    %c0_2 = arith.constant 0 : index
    %c0_3 = arith.constant 0 : index
    %3 = vector.load %arg2[%c0, %c0_1, %c0_2, %c0_3] : memref<1x4x8x32xbf16, #tpu.memory_space<vmem>>, vector<1x4x8x32xbf16>
    %4 = vector.shape_cast %3 : vector<1x4x8x32xbf16> to vector<4x8x32xbf16>
    %c0_4 = arith.constant 0 : index
    %c0_5 = arith.constant 0 : index
    %c0_6 = arith.constant 0 : index
    %c0_7 = arith.constant 0 : index
    %5 = vector.load %arg3[%c0_4, %c0_5, %c0_6, %c0_7] : memref<1x4x8x32xbf16, #tpu.memory_space<vmem>>, vector<1x4x8x32xbf16>
    %6 = vector.shape_cast %5 : vector<1x4x8x32xbf16> to vector<4x8x32xbf16>
    %c0_8 = arith.constant 0 : index
    %c0_9 = arith.constant 0 : index
    %c0_10 = arith.constant 0 : index
    %c0_11 = arith.constant 0 : index
    %7 = vector.load %arg4[%c0_8, %c0_9, %c0_10, %c0_11] : memref<1x4x8x32xbf16, #tpu.memory_space<vmem>>, vector<1x4x8x32xbf16>
    %8 = vector.shape_cast %7 : vector<1x4x8x32xbf16> to vector<4x8x32xbf16>
    "tpu.trace_start"() <{level = 10 : i32, message = "hqd,hkd->hqk"}> : () -> ()
    %cst = arith.constant dense<0.000000e+00> : vector<4x8x8xf32>
    %9 = tpu.matmul %4, %6, %cst {dimension_numbers = #tpu.dot_dimension_numbers<[2], [2], [1], [1], [0, 0, 0, 1, 1, 1], [0], [0]>} : vector<4x8x32xbf16>, vector<4x8x32xbf16>, vector<4x8x8xf32> -> vector<4x8x8xf32>
    "tpu.trace_stop"() : () -> ()
    %cst_12 = arith.constant 0.176776692 : f32
    %10 = vector.broadcast %cst_12 : f32 to vector<4x8x8xf32>
    %11 = arith.mulf %9, %10 : vector<4x8x8xf32>
    %c0_13 = arith.constant 0 : index
    %c0_14 = arith.constant 0 : index
    %c0_15 = arith.constant 0 : index
    %12 = vector.load %arg5[%c0_13, %c0_14, %c0_15] : memref<1x1x8xf32, #tpu.memory_space<vmem>>, vector<1x1x8xf32>
    %13 = vector.shape_cast %12 : vector<1x1x8xf32> to vector<1x8xf32>
    %cst_16 = arith.constant 5.000000e-01 : f32
    %14 = vector.broadcast %cst_16 : f32 to vector<1x8xf32>
    %15 = arith.cmpf ogt, %13, %14 : vector<1x8xf32>
    %16 = tpu.iota {dimensions = array<i32: 0>} : vector<8x8xi32>
    %c8_i32 = arith.constant 8 : i32
    %17 = arith.muli %arg1, %c8_i32 : i32
    %18 = tpu.iota {dimensions = array<i32: 1>} : vector<8x8xi32>
    %19 = vector.broadcast %17 : i32 to vector<8x8xi32>
    %20 = arith.addi %19, %18 : vector<8x8xi32>
    %21 = arith.cmpi sge, %16, %20 : vector<8x8xi32>
    %22 = vector.broadcast %15 : vector<1x8xi1> to vector<8x8xi1>
    %23 = arith.andi %21, %22 : vector<8x8xi1>
    %24 = vector.shape_cast %23 : vector<8x8xi1> to vector<1x8x8xi1>
    %cst_17 = arith.constant -1.000000e+10 : f32
    %25 = vector.shape_cast %24 : vector<1x8x8xi1> to vector<1x8x8xi1>
    %26 = vector.broadcast %25 : vector<1x8x8xi1> to vector<4x8x8xi1>
    %27 = vector.broadcast %cst_17 : f32 to vector<4x8x8xf32>
    %28 = arith.select %26, %11, %27 : vector<4x8x8xi1>, vector<4x8x8xf32>
    %c0_18 = arith.constant 0 : index
    %c0_19 = arith.constant 0 : index
    %c0_20 = arith.constant 0 : index
    %29 = vector.load %arg7[%c0_18, %c0_19, %c0_20] : memref<4x8x1xf32, #tpu.memory_space<vmem>>, vector<4x8x1xf32>
    %cst_21 = arith.constant dense<0xFF800000> : vector<4x8xf32>
    %30 = vector.multi_reduction <maximumf>, %28, %cst_21 [2] : vector<4x8x8xf32> to vector<4x8xf32>
    %31 = vector.shape_cast %30 : vector<4x8xf32> to vector<4x8x1xf32>
    %32 = arith.maximumf %29, %31 : vector<4x8x1xf32>
    %33 = arith.subf %29, %32 : vector<4x8x1xf32>
    %34 = math.exp %33 : vector<4x8x1xf32>
    %35 = vector.broadcast %32 : vector<4x8x1xf32> to vector<4x8x8xf32>
    %36 = arith.subf %28, %35 : vector<4x8x8xf32>
    %37 = math.exp %36 : vector<4x8x8xf32>
    %c0_22 = arith.constant 0 : index
    %c0_23 = arith.constant 0 : index
    %c0_24 = arith.constant 0 : index
    %38 = vector.load %arg8[%c0_22, %c0_23, %c0_24] : memref<4x8x1xf32, #tpu.memory_space<vmem>>, vector<4x8x1xf32>
    %39 = arith.mulf %34, %38 : vector<4x8x1xf32>
    %cst_25 = arith.constant dense<0.000000e+00> : vector<4x8xf32>
    %40 = vector.multi_reduction <add>, %37, %cst_25 [2] : vector<4x8x8xf32> to vector<4x8xf32>
    %41 = vector.shape_cast %40 : vector<4x8xf32> to vector<4x8x1xf32>
    %42 = arith.addf %39, %41 : vector<4x8x1xf32>
    %c0_26 = arith.constant 0 : index
    %c0_27 = arith.constant 0 : index
    %c0_28 = arith.constant 0 : index
    %43 = vector.load %arg8[%c0_26, %c0_27, %c0_28] : memref<4x8x1xf32, #tpu.memory_space<vmem>>, vector<4x8x1xf32>
    tpu.vector_store %arg8[%c0_26, %c0_27, %c0_28], %42 {strides = array<i32>} : memref<4x8x1xf32, #tpu.memory_space<vmem>>, vector<4x8x1xf32>,
    %c0_29 = arith.constant 0 : index
    %c0_30 = arith.constant 0 : index
    %c0_31 = arith.constant 0 : index
    %44 = vector.load %arg9[%c0_29, %c0_30, %c0_31] : memref<4x8x32xf32, #tpu.memory_space<vmem>>, vector<4x8x32xf32>
    %45 = vector.broadcast %34 : vector<4x8x1xf32> to vector<4x8x32xf32>
    %46 = arith.mulf %45, %44 : vector<4x8x32xf32>
    %47 = arith.truncf %37 : vector<4x8x8xf32> to vector<4x8x8xbf16>
    "tpu.trace_start"() <{level = 10 : i32, message = "hqk,hkd->hqd"}> : () -> ()
    %cst_32 = arith.constant dense<0.000000e+00> : vector<4x8x32xf32>
    %48 = tpu.matmul %47, %8, %cst_32 {dimension_numbers = #tpu.dot_dimension_numbers<[2], [1], [1], [2], [0, 0, 0, 1, 1, 2], [0], [0]>} : vector<4x8x8xbf16>, vector<4x8x32xbf16>, vector<4x8x32xf32> -> vector<4x8x32xf32>
    "tpu.trace_stop"() : () -> ()
    %49 = arith.addf %46, %48 : vector<4x8x32xf32>
    %c0_33 = arith.constant 0 : index
    %c0_34 = arith.constant 0 : index
    %c0_35 = arith.constant 0 : index
    %50 = vector.load %arg9[%c0_33, %c0_34, %c0_35] : memref<4x8x32xf32, #tpu.memory_space<vmem>>, vector<4x8x32xf32>
    tpu.vector_store %arg9[%c0_33, %c0_34, %c0_35], %49 {strides = array<i32>} : memref<4x8x32xf32, #tpu.memory_space<vmem>>, vector<4x8x32xf32>,
    %c0_36 = arith.constant 0 : index
    %c0_37 = arith.constant 0 : index
    %c0_38 = arith.constant 0 : index
    %51 = vector.load %arg7[%c0_36, %c0_37, %c0_38] : memref<4x8x1xf32, #tpu.memory_space<vmem>>, vector<4x8x1xf32>
    tpu.vector_store %arg7[%c0_36, %c0_37, %c0_38], %32 {strides = array<i32>} : memref<4x8x1xf32, #tpu.memory_space<vmem>>, vector<4x8x1xf32>,
    %c0_i32_39 = arith.constant 0 : i32
    %52 = arith.cmpi eq, %arg1, %c0_i32_39 : i32
    %53 = arith.extui %52 : i1 to i32
    %c0_i32_40 = arith.constant 0 : i32
    %54 = arith.cmpi ne, %53, %c0_i32_40 : i32
    scf.if %54 {
      %c0_41 = arith.constant 0 : index
      %c0_42 = arith.constant 0 : index
      %c0_43 = arith.constant 0 : index
      %55 = vector.load %arg8[%c0_41, %c0_42, %c0_43] : memref<4x8x1xf32, #tpu.memory_space<vmem>>, vector<4x8x1xf32>
      %56 = tpu.reciprocal %55 {approx = true} : vector<4x8x1xf32> -> vector<4x8x1xf32>
      %c0_44 = arith.constant 0 : index
      %c0_45 = arith.constant 0 : index
      %c0_46 = arith.constant 0 : index
      %57 = vector.load %arg9[%c0_44, %c0_45, %c0_46] : memref<4x8x32xf32, #tpu.memory_space<vmem>>, vector<4x8x32xf32>
      %58 = vector.broadcast %56 : vector<4x8x1xf32> to vector<4x8x32xf32>
      %59 = arith.mulf %57, %58 : vector<4x8x32xf32>
      %60 = arith.truncf %59 : vector<4x8x32xf32> to vector<4x8x32xbf16>
      %c0_47 = arith.constant 0 : index
      %c0_48 = arith.constant 0 : index
      %c0_49 = arith.constant 0 : index
      %c0_50 = arith.constant 0 : index
      %61 = vector.load %arg6[%c0_47, %c0_48, %c0_49, %c0_50] : memref<1x4x8x32xbf16, #tpu.memory_space<vmem>>, vector<1x4x8x32xbf16>
      %62 = vector.shape_cast %61 : vector<1x4x8x32xbf16> to vector<4x8x32xbf16>
      %63 = vector.shape_cast %60 : vector<4x8x32xbf16> to vector<1x4x8x32xbf16>
      tpu.vector_store %arg6[%c0_47, %c0_48, %c0_49, %c0_50], %63 {strides = array<i32>} : memref<1x4x8x32xbf16, #tpu.memory_space<vmem>>, vector<1x4x8x32xbf16>,
    } else {
    }
    return
  }
  func.func @transform_0(%arg0: i32, %arg1: i32) -> (i32, i32, i32, i32) {
    %c0_i32 = arith.constant 0 : i32
    %c0_i32_0 = arith.constant 0 : i32
    %c0_i32_1 = arith.constant 0 : i32
    %c0_i32_2 = arith.constant 0 : i32
    return %arg0, %c0_i32, %c0_i32_0, %c0_i32_1 : i32, i32, i32, i32
  }
  func.func @transform_1(%arg0: i32, %arg1: i32) -> (i32, i32, i32, i32) {
    %c0_i32 = arith.constant 0 : i32
    %c0_i32_0 = arith.constant 0 : i32
    %c0_i32_1 = arith.constant 0 : i32
    return %arg0, %c0_i32, %arg1, %c0_i32_0 : i32, i32, i32, i32
  }
  func.func @transform_2(%arg0: i32, %arg1: i32) -> (i32, i32, i32, i32) {
    %c0_i32 = arith.constant 0 : i32
    %c0_i32_0 = arith.constant 0 : i32
    %c0_i32_1 = arith.constant 0 : i32
    return %arg0, %c0_i32, %arg1, %c0_i32_0 : i32, i32, i32, i32
  }
  func.func @transform_3(%arg0: i32, %arg1: i32) -> (i32, i32, i32) {
    %c0_i32 = arith.constant 0 : i32
    %c0_i32_0 = arith.constant 0 : i32
    return %arg0, %c0_i32, %arg1 : i32, i32, i32
  }
  func.func @transform_4(%arg0: i32, %arg1: i32) -> (i32, i32, i32, i32) {
    %c0_i32 = arith.constant 0 : i32
    %c0_i32_0 = arith.constant 0 : i32
    %c0_i32_1 = arith.constant 0 : i32
    %c0_i32_2 = arith.constant 0 : i32
    return %arg0, %c0_i32, %c0_i32_0, %c0_i32_1 : i32, i32, i32, i32
  }
}

module attributes {stable_mosaic.version = 11 : i64} {
  func.func @_linear_kernel(%arg0: i32, %arg1: i32, %arg2: memref<16x128xbf16, #tpu.memory_space<vmem>>, %arg3: memref<128x128xbf16, #tpu.memory_space<vmem>>, %arg4: memref<1x128xf32, #tpu.memory_space<vmem>>, %arg5: memref<16x128xbf16, #tpu.memory_space<vmem>>) attributes {dimension_semantics = [#tpu.dimension_semantics<parallel>, #tpu.dimension_semantics<parallel>], iteration_bounds = array<i64: 1, 1>, scalar_prefetch = 0 : i64, scratch_operands = 0 : i64, tpu.core_type = #tpu.core_type<tc>, window_params = [{transform_indices = @transform_0, window_bounds = array<i64: 16, 128>}, {transform_indices = @transform_1, window_bounds = array<i64: 128, 128>}, {transform_indices = @transform_2, window_bounds = array<i64: 1, 128>}, {transform_indices = @transform_3, window_bounds = array<i64: 16, 128>}]} {
    %c0 = arith.constant 0 : index
    %c0_0 = arith.constant 0 : index
    %0 = vector.load %arg2[%c0, %c0_0] : memref<16x128xbf16, #tpu.memory_space<vmem>>, vector<16x128xbf16>
    %c0_1 = arith.constant 0 : index
    %c0_2 = arith.constant 0 : index
    %1 = vector.load %arg3[%c0_1, %c0_2] : memref<128x128xbf16, #tpu.memory_space<vmem>>, vector<128x128xbf16>
    %cst = arith.constant dense<0.000000e+00> : vector<16x128xf32>
    %2 = tpu.matmul %0, %1, %cst {dimension_numbers = #tpu.dot_dimension_numbers<[1], [0], [0], [1], [0, 0, 1, 1], [], []>} : vector<16x128xbf16>, vector<128x128xbf16>, vector<16x128xf32> -> vector<16x128xf32>
    %c0_3 = arith.constant 0 : index
    %c0_4 = arith.constant 0 : index
    %3 = vector.load %arg4[%c0_3, %c0_4] : memref<1x128xf32, #tpu.memory_space<vmem>>, vector<1x128xf32>
    %4 = vector.broadcast %3 : vector<1x128xf32> to vector<16x128xf32>
    %5 = arith.addf %2, %4 : vector<16x128xf32>
    %6 = arith.truncf %5 : vector<16x128xf32> to vector<16x128xbf16>
    %c0_5 = arith.constant 0 : index
    %c0_6 = arith.constant 0 : index
    %7 = vector.load %arg5[%c0_5, %c0_6] : memref<16x128xbf16, #tpu.memory_space<vmem>>, vector<16x128xbf16>
    tpu.vector_store %arg5[%c0_5, %c0_6], %6 {strides = array<i32>} : memref<16x128xbf16, #tpu.memory_space<vmem>>, vector<16x128xbf16>,
    return
  }
  func.func @transform_0(%arg0: i32, %arg1: i32) -> (i32, i32) {
    %c0_i32 = arith.constant 0 : i32
    %c0_i32_0 = arith.constant 0 : i32
    return %arg0, %c0_i32 : i32, i32
  }
  func.func @transform_1(%arg0: i32, %arg1: i32) -> (i32, i32) {
    %c0_i32 = arith.constant 0 : i32
    %c0_i32_0 = arith.constant 0 : i32
    return %c0_i32, %arg1 : i32, i32
  }
  func.func @transform_2(%arg0: i32, %arg1: i32) -> (i32, i32) {
    %c0_i32 = arith.constant 0 : i32
    %c0_i32_0 = arith.constant 0 : i32
    return %c0_i32, %arg1 : i32, i32
  }
  func.func @transform_3(%arg0: i32, %arg1: i32) -> (i32, i32) {
    %c0_i32 = arith.constant 0 : i32
    return %arg0, %arg1 : i32, i32
  }
}

module attributes {stable_mosaic.version = 11 : i64} {
  func.func @_add_ln_kernel(%arg0: i32, %arg1: memref<16x128xbf16, #tpu.memory_space<vmem>>, %arg2: memref<16x128xbf16, #tpu.memory_space<vmem>>, %arg3: memref<1x128xf32, #tpu.memory_space<vmem>>, %arg4: memref<1x128xf32, #tpu.memory_space<vmem>>, %arg5: memref<16x128xbf16, #tpu.memory_space<vmem>>) attributes {dimension_semantics = [#tpu.dimension_semantics<parallel>], iteration_bounds = array<i64: 1>, scalar_prefetch = 0 : i64, scratch_operands = 0 : i64, tpu.core_type = #tpu.core_type<tc>, window_params = [{transform_indices = @transform_0, window_bounds = array<i64: 16, 128>}, {transform_indices = @transform_1, window_bounds = array<i64: 16, 128>}, {pipeline_mode = #tpu.pipeline_mode<synchronous>, transform_indices = @transform_2, window_bounds = array<i64: 1, 128>}, {pipeline_mode = #tpu.pipeline_mode<synchronous>, transform_indices = @transform_3, window_bounds = array<i64: 1, 128>}, {transform_indices = @transform_4, window_bounds = array<i64: 16, 128>}]} {
    %c0 = arith.constant 0 : index
    %c0_0 = arith.constant 0 : index
    %0 = vector.load %arg1[%c0, %c0_0] : memref<16x128xbf16, #tpu.memory_space<vmem>>, vector<16x128xbf16>
    %1 = arith.extf %0 : vector<16x128xbf16> to vector<16x128xf32>
    %c0_1 = arith.constant 0 : index
    %c0_2 = arith.constant 0 : index
    %2 = vector.load %arg2[%c0_1, %c0_2] : memref<16x128xbf16, #tpu.memory_space<vmem>>, vector<16x128xbf16>
    %3 = arith.extf %2 : vector<16x128xbf16> to vector<16x128xf32>
    %4 = arith.addf %1, %3 : vector<16x128xf32>
    %cst = arith.constant dense<0.000000e+00> : vector<16xf32>
    %5 = vector.multi_reduction <add>, %4, %cst [1] : vector<16x128xf32> to vector<16xf32>
    %6 = vector.shape_cast %5 : vector<16xf32> to vector<16x1xf32>
    %cst_3 = arith.constant 1.280000e+02 : f32
    %7 = vector.broadcast %cst_3 : f32 to vector<16x1xf32>
    %8 = arith.divf %6, %7 : vector<16x1xf32>
    %9 = vector.broadcast %8 : vector<16x1xf32> to vector<16x128xf32>
    %10 = arith.subf %4, %9 : vector<16x128xf32>
    %11 = arith.mulf %10, %10 : vector<16x128xf32>
    %cst_4 = arith.constant dense<0.000000e+00> : vector<16xf32>
    %12 = vector.multi_reduction <add>, %11, %cst_4 [1] : vector<16x128xf32> to vector<16xf32>
    %13 = vector.shape_cast %12 : vector<16xf32> to vector<16x1xf32>
    %cst_5 = arith.constant 1.280000e+02 : f32
    %14 = vector.broadcast %cst_5 : f32 to vector<16x1xf32>
    %15 = arith.divf %13, %14 : vector<16x1xf32>
    %cst_6 = arith.constant 9.99999974E-6 : f32
    %16 = vector.broadcast %cst_6 : f32 to vector<16x1xf32>
    %17 = arith.addf %15, %16 : vector<16x1xf32>
    %18 = math.rsqrt %17 : vector<16x1xf32>
    %19 = vector.broadcast %18 : vector<16x1xf32> to vector<16x128xf32>
    %20 = arith.mulf %10, %19 : vector<16x128xf32>
    %c0_7 = arith.constant 0 : index
    %c0_8 = arith.constant 0 : index
    %21 = vector.load %arg3[%c0_7, %c0_8] : memref<1x128xf32, #tpu.memory_space<vmem>>, vector<1x128xf32>
    %22 = vector.broadcast %21 : vector<1x128xf32> to vector<16x128xf32>
    %23 = arith.mulf %20, %22 : vector<16x128xf32>
    %c0_9 = arith.constant 0 : index
    %c0_10 = arith.constant 0 : index
    %24 = vector.load %arg4[%c0_9, %c0_10] : memref<1x128xf32, #tpu.memory_space<vmem>>, vector<1x128xf32>
    %25 = vector.broadcast %24 : vector<1x128xf32> to vector<16x128xf32>
    %26 = arith.addf %23, %25 : vector<16x128xf32>
    %27 = arith.truncf %26 : vector<16x128xf32> to vector<16x128xbf16>
    %c0_11 = arith.constant 0 : index
    %c0_12 = arith.constant 0 : index
    %28 = vector.load %arg5[%c0_11, %c0_12] : memref<16x128xbf16, #tpu.memory_space<vmem>>, vector<16x128xbf16>
    tpu.vector_store %arg5[%c0_11, %c0_12], %27 {strides = array<i32>} : memref<16x128xbf16, #tpu.memory_space<vmem>>, vector<16x128xbf16>,
    return
  }
  func.func @transform_0(%arg0: i32) -> (i32, i32) {
    %c0_i32 = arith.constant 0 : i32
    %c0_i32_0 = arith.constant 0 : i32
    return %arg0, %c0_i32 : i32, i32
  }
  func.func @transform_1(%arg0: i32) -> (i32, i32) {
    %c0_i32 = arith.constant 0 : i32
    %c0_i32_0 = arith.constant 0 : i32
    return %arg0, %c0_i32 : i32, i32
  }
  func.func @transform_2(%arg0: i32) -> (i32, i32) {
    %c0_i32 = arith.constant 0 : i32
    %c0_i32_0 = arith.constant 0 : i32
    %c0_i32_1 = arith.constant 0 : i32
    return %c0_i32, %c0_i32_0 : i32, i32
  }
  func.func @transform_3(%arg0: i32) -> (i32, i32) {
    %c0_i32 = arith.constant 0 : i32
    %c0_i32_0 = arith.constant 0 : i32
    %c0_i32_1 = arith.constant 0 : i32
    return %c0_i32, %c0_i32_0 : i32, i32
  }
  func.func @transform_4(%arg0: i32) -> (i32, i32) {
    %c0_i32 = arith.constant 0 : i32
    %c0_i32_0 = arith.constant 0 : i32
    return %arg0, %c0_i32 : i32, i32
  }
}

module attributes {stable_mosaic.version = 11 : i64} {
  func.func @_mha_kernel(%arg0: i32, %arg1: i32, %arg2: memref<1x4x8x32xbf16, #tpu.memory_space<vmem>>, %arg3: memref<1x4x8x32xbf16, #tpu.memory_space<vmem>>, %arg4: memref<1x4x8x32xbf16, #tpu.memory_space<vmem>>, %arg5: memref<1x1x8xf32, #tpu.memory_space<vmem>>, %arg6: memref<1x4x8x32xbf16, #tpu.memory_space<vmem>>, %arg7: memref<4x8x1xf32, #tpu.memory_space<vmem>>, %arg8: memref<4x8x1xf32, #tpu.memory_space<vmem>>, %arg9: memref<4x8x32xf32, #tpu.memory_space<vmem>>) attributes {dimension_semantics = [#tpu.dimension_semantics<parallel>, #tpu.dimension_semantics<arbitrary>], iteration_bounds = array<i64: 2, 1>, scalar_prefetch = 0 : i64, scratch_operands = 3 : i64, tpu.core_type = #tpu.core_type<tc>, window_params = [{transform_indices = @transform_0, window_bounds = array<i64: 1, 4, 8, 32>}, {transform_indices = @transform_1, window_bounds = array<i64: 1, 4, 8, 32>}, {transform_indices = @transform_2, window_bounds = array<i64: 1, 4, 8, 32>}, {transform_indices = @transform_3, window_bounds = array<i64: 1, 1, 8>}, {transform_indices = @transform_4, window_bounds = array<i64: 1, 4, 8, 32>}]} {
    %c0_i32 = arith.constant 0 : i32
    %0 = arith.cmpi eq, %arg1, %c0_i32 : i32
    %1 = arith.extui %0 : i1 to i32
    %c0_i32_0 = arith.constant 0 : i32
    %2 = arith.cmpi ne, %1, %c0_i32_0 : i32
    scf.if %2 {
      %cst_41 = arith.constant 0xFF800000 : f32
      %47 = vector.broadcast %cst_41 : f32 to vector<4x8x1xf32>
      %c0_42 = arith.constant 0 : index
      %c0_43 = arith.constant 0 : index
      %c0_44 = arith.constant 0 : index
      %48 = vector.load %arg7[%c0_42, %c0_43, %c0_44] : memref<4x8x1xf32, #tpu.memory_space<vmem>>, vector<4x8x1xf32>
      tpu.vector_store %arg7[%c0_42, %c0_43, %c0_44], %47 {strides = array<i32>} : memref<4x8x1xf32, #tpu.memory_space<vmem>>, vector<4x8x1xf32>,
      %cst_45 = arith.constant 0.000000e+00 : f32
      %49 = vector.broadcast %cst_45 : f32 to vector<4x8x1xf32>
      %c0_46 = arith.constant 0 : index
      %c0_47 = arith.constant 0 : index
      %c0_48 = arith.constant 0 : index
      %50 = vector.load %arg8[%c0_46, %c0_47, %c0_48] : memref<4x8x1xf32, #tpu.memory_space<vmem>>, vector<4x8x1xf32>
      tpu.vector_store %arg8[%c0_46, %c0_47, %c0_48], %49 {strides = array<i32>} : memref<4x8x1xf32, #tpu.memory_space<vmem>>, vector<4x8x1xf32>,
      %cst_49 = arith.constant 0.000000e+00 : f32
      %51 = vector.broadcast %cst_49 : f32 to vector<4x8x32xf32>
      %c0_50 = arith.constant 0 : index
      %c0_51 = arith.constant 0 : index
      %c0_52 = arith.constant 0 : index
      %52 = vector.load %arg9[%c0_50, %c0_51, %c0_52] : memref<4x8x32xf32, #tpu.memory_space<vmem>>, vector<4x8x32xf32>
      tpu.vector_store %arg9[%c0_50, %c0_51, %c0_52], %51 {strides = array<i32>} : memref<4x8x32xf32, #tpu.memory_space<vmem>>, vector<4x8x32xf32>,
    } else {
    }
    %c0 = arith.constant 0 : index
    %c0_1 = arith.constant 0 : index
    %c0_2 = arith.constant 0 : index
    %c0_3 = arith.constant 0 : index
    %3 = vector.load %arg2[%c0, %c0_1, %c0_2, %c0_3] : memref<1x4x8x32xbf16, #tpu.memory_space<vmem>>, vector<1x4x8x32xbf16>
    %4 = vector.shape_cast %3 : vector<1x4x8x32xbf16> to vector<4x8x32xbf16>
    %c0_4 = arith.constant 0 : index
    %c0_5 = arith.constant 0 : index
    %c0_6 = arith.constant 0 : index
    %c0_7 = arith.constant 0 : index
    %5 = vector.load %arg3[%c0_4, %c0_5, %c0_6, %c0_7] : memref<1x4x8x32xbf16, #tpu.memory_space<vmem>>, vector<1x4x8x32xbf16>
    %6 = vector.shape_cast %5 : vector<1x4x8x32xbf16> to vector<4x8x32xbf16>
    %c0_8 = arith.constant 0 : index
    %c0_9 = arith.constant 0 : index
    %c0_10 = arith.constant 0 : index
    %c0_11 = arith.constant 0 : index
    %7 = vector.load %arg4[%c0_8, %c0_9, %c0_10, %c0_11] : memref<1x4x8x32xbf16, #tpu.memory_space<vmem>>, vector<1x4x8x32xbf16>
    %8 = vector.shape_cast %7 : vector<1x4x8x32xbf16> to vector<4x8x32xbf16>
    "tpu.trace_start"() <{level = 10 : i32, message = "hqd,hkd->hqk"}> : () -> ()
    %cst = arith.constant dense<0.000000e+00> : vector<4x8x8xf32>
    %9 = tpu.matmul %4, %6, %cst {dimension_numbers = #tpu.dot_dimension_numbers<[2], [2], [1], [1], [0, 0, 0, 1, 1, 1], [0], [0]>} : vector<4x8x32xbf16>, vector<4x8x32xbf16>, vector<4x8x8xf32> -> vector<4x8x8xf32>
    "tpu.trace_stop"() : () -> ()
    %cst_12 = arith.constant 0.176776692 : f32
    %10 = vector.broadcast %cst_12 : f32 to vector<4x8x8xf32>
    %11 = arith.mulf %9, %10 : vector<4x8x8xf32>
    %c0_13 = arith.constant 0 : index
    %c0_14 = arith.constant 0 : index
    %c0_15 = arith.constant 0 : index
    %12 = vector.load %arg5[%c0_13, %c0_14, %c0_15] : memref<1x1x8xf32, #tpu.memory_space<vmem>>, vector<1x1x8xf32>
    %13 = vector.shape_cast %12 : vector<1x1x8xf32> to vector<1x8xf32>
    %cst_16 = arith.constant 5.000000e-01 : f32
    %14 = vector.broadcast %cst_16 : f32 to vector<1x8xf32>
    %15 = arith.cmpf ogt, %13, %14 : vector<1x8xf32>
    %16 = vector.shape_cast %15 : vector<1x8xi1> to vector<1x1x8xi1>
    %cst_17 = arith.constant -1.000000e+10 : f32
    %17 = vector.shape_cast %16 : vector<1x1x8xi1> to vector<1x1x8xi1>
    %18 = vector.broadcast %17 : vector<1x1x8xi1> to vector<4x8x8xi1>
    %19 = vector.broadcast %cst_17 : f32 to vector<4x8x8xf32>
    %20 = arith.select %18, %11, %19 : vector<4x8x8xi1>, vector<4x8x8xf32>
    %c0_18 = arith.constant 0 : index
    %c0_19 = arith.constant 0 : index
    %c0_20 = arith.constant 0 : index
    %21 = vector.load %arg7[%c0_18, %c0_19, %c0_20] : memref<4x8x1xf32, #tpu.memory_space<vmem>>, vector<4x8x1xf32>
    %cst_21 = arith.constant dense<0xFF800000> : vector<4x8xf32>
    %22 = vector.multi_reduction <maximumf>, %20, %cst_21 [2] : vector<4x8x8xf32> to vector<4x8xf32>
    %23 = vector.shape_cast %22 : vector<4x8xf32> to vector<4x8x1xf32>
    %24 = arith.maximumf %21, %23 : vector<4x8x1xf32>
    %25 = arith.subf %21, %24 : vector<4x8x1xf32>
    %26 = math.exp %25 : vector<4x8x1xf32>
    %27 = vector.broadcast %24 : vector<4x8x1xf32> to vector<4x8x8xf32>
    %28 = arith.subf %20, %27 : vector<4x8x8xf32>
    %29 = math.exp %28 : vector<4x8x8xf32>
    %c0_22 = arith.constant 0 : index
    %c0_23 = arith.constant 0 : index
    %c0_24 = arith.constant 0 : index
    %30 = vector.load %arg8[%c0_22, %c0_23, %c0_24] : memref<4x8x1xf32, #tpu.memory_space<vmem>>, vector<4x8x1xf32>
    %31 = arith.mulf %26, %30 : vector<4x8x1xf32>
    %cst_25 = arith.constant dense<0.000000e+00> : vector<4x8xf32>
    %32 = vector.multi_reduction <add>, %29, %cst_25 [2] : vector<4x8x8xf32> to vector<4x8xf32>
    %33 = vector.shape_cast %32 : vector<4x8xf32> to vector<4x8x1xf32>
    %34 = arith.addf %31, %33 : vector<4x8x1xf32>
    %c0_26 = arith.constant 0 : index
    %c0_27 = arith.constant 0 : index
    %c0_28 = arith.constant 0 : index
    %35 = vector.load %arg8[%c0_26, %c0_27, %c0_28] : memref<4x8x1xf32, #tpu.memory_space<vmem>>, vector<4x8x1xf32>
    tpu.vector_store %arg8[%c0_26, %c0_27, %c0_28], %34 {strides = array<i32>} : memref<4x8x1xf32, #tpu.memory_space<vmem>>, vector<4x8x1xf32>,
    %c0_29 = arith.constant 0 : index
    %c0_30 = arith.constant 0 : index
    %c0_31 = arith.constant 0 : index
    %36 = vector.load %arg9[%c0_29, %c0_30, %c0_31] : memref<4x8x32xf32, #tpu.memory_space<vmem>>, vector<4x8x32xf32>
    %37 = vector.broadcast %26 : vector<4x8x1xf32> to vector<4x8x32xf32>
    %38 = arith.mulf %37, %36 : vector<4x8x32xf32>
    %39 = arith.truncf %29 : vector<4x8x8xf32> to vector<4x8x8xbf16>
    "tpu.trace_start"() <{level = 10 : i32, message = "hqk,hkd->hqd"}> : () -> ()
    %cst_32 = arith.constant dense<0.000000e+00> : vector<4x8x32xf32>
    %40 = tpu.matmul %39, %8, %cst_32 {dimension_numbers = #tpu.dot_dimension_numbers<[2], [1], [1], [2], [0, 0, 0, 1, 1, 2], [0], [0]>} : vector<4x8x8xbf16>, vector<4x8x32xbf16>, vector<4x8x32xf32> -> vector<4x8x32xf32>
    "tpu.trace_stop"() : () -> ()
    %41 = arith.addf %38, %40 : vector<4x8x32xf32>
    %c0_33 = arith.constant 0 : index
    %c0_34 = arith.constant 0 : index
    %c0_35 = arith.constant 0 : index
    %42 = vector.load %arg9[%c0_33, %c0_34, %c0_35] : memref<4x8x32xf32, #tpu.memory_space<vmem>>, vector<4x8x32xf32>
    tpu.vector_store %arg9[%c0_33, %c0_34, %c0_35], %41 {strides = array<i32>} : memref<4x8x32xf32, #tpu.memory_space<vmem>>, vector<4x8x32xf32>,
    %c0_36 = arith.constant 0 : index
    %c0_37 = arith.constant 0 : index
    %c0_38 = arith.constant 0 : index
    %43 = vector.load %arg7[%c0_36, %c0_37, %c0_38] : memref<4x8x1xf32, #tpu.memory_space<vmem>>, vector<4x8x1xf32>
    tpu.vector_store %arg7[%c0_36, %c0_37, %c0_38], %24 {strides = array<i32>} : memref<4x8x1xf32, #tpu.memory_space<vmem>>, vector<4x8x1xf32>,
    %c0_i32_39 = arith.constant 0 : i32
    %44 = arith.cmpi eq, %arg1, %c0_i32_39 : i32
    %45 = arith.extui %44 : i1 to i32
    %c0_i32_40 = arith.constant 0 : i32
    %46 = arith.cmpi ne, %45, %c0_i32_40 : i32
    scf.if %46 {
      %c0_41 = arith.constant 0 : index
      %c0_42 = arith.constant 0 : index
      %c0_43 = arith.constant 0 : index
      %47 = vector.load %arg8[%c0_41, %c0_42, %c0_43] : memref<4x8x1xf32, #tpu.memory_space<vmem>>, vector<4x8x1xf32>
      %48 = tpu.reciprocal %47 {approx = true} : vector<4x8x1xf32> -> vector<4x8x1xf32>
      %c0_44 = arith.constant 0 : index
      %c0_45 = arith.constant 0 : index
      %c0_46 = arith.constant 0 : index
      %49 = vector.load %arg9[%c0_44, %c0_45, %c0_46] : memref<4x8x32xf32, #tpu.memory_space<vmem>>, vector<4x8x32xf32>
      %50 = vector.broadcast %48 : vector<4x8x1xf32> to vector<4x8x32xf32>
      %51 = arith.mulf %49, %50 : vector<4x8x32xf32>
      %52 = arith.truncf %51 : vector<4x8x32xf32> to vector<4x8x32xbf16>
      %c0_47 = arith.constant 0 : index
      %c0_48 = arith.constant 0 : index
      %c0_49 = arith.constant 0 : index
      %c0_50 = arith.constant 0 : index
      %53 = vector.load %arg6[%c0_47, %c0_48, %c0_49, %c0_50] : memref<1x4x8x32xbf16, #tpu.memory_space<vmem>>, vector<1x4x8x32xbf16>
      %54 = vector.shape_cast %53 : vector<1x4x8x32xbf16> to vector<4x8x32xbf16>
      %55 = vector.shape_cast %52 : vector<4x8x32xbf16> to vector<1x4x8x32xbf16>
      tpu.vector_store %arg6[%c0_47, %c0_48, %c0_49, %c0_50], %55 {strides = array<i32>} : memref<1x4x8x32xbf16, #tpu.memory_space<vmem>>, vector<1x4x8x32xbf16>,
    } else {
    }
    return
  }
  func.func @transform_0(%arg0: i32, %arg1: i32) -> (i32, i32, i32, i32) {
    %c0_i32 = arith.constant 0 : i32
    %c0_i32_0 = arith.constant 0 : i32
    %c0_i32_1 = arith.constant 0 : i32
    %c0_i32_2 = arith.constant 0 : i32
    return %arg0, %c0_i32, %c0_i32_0, %c0_i32_1 : i32, i32, i32, i32
  }
  func.func @transform_1(%arg0: i32, %arg1: i32) -> (i32, i32, i32, i32) {
    %c0_i32 = arith.constant 0 : i32
    %c0_i32_0 = arith.constant 0 : i32
    %c0_i32_1 = arith.constant 0 : i32
    return %arg0, %c0_i32, %arg1, %c0_i32_0 : i32, i32, i32, i32
  }
  func.func @transform_2(%arg0: i32, %arg1: i32) -> (i32, i32, i32, i32) {
    %c0_i32 = arith.constant 0 : i32
    %c0_i32_0 = arith.constant 0 : i32
    %c0_i32_1 = arith.constant 0 : i32
    return %arg0, %c0_i32, %arg1, %c0_i32_0 : i32, i32, i32, i32
  }
  func.func @transform_3(%arg0: i32, %arg1: i32) -> (i32, i32, i32) {
    %c0_i32 = arith.constant 0 : i32
    %c0_i32_0 = arith.constant 0 : i32
    return %arg0, %c0_i32, %arg1 : i32, i32, i32
  }
  func.func @transform_4(%arg0: i32, %arg1: i32) -> (i32, i32, i32, i32) {
    %c0_i32 = arith.constant 0 : i32
    %c0_i32_0 = arith.constant 0 : i32
    %c0_i32_1 = arith.constant 0 : i32
    %c0_i32_2 = arith.constant 0 : i32
    return %arg0, %c0_i32, %c0_i32_0, %c0_i32_1 : i32, i32, i32, i32
  }
}

module attributes {stable_mosaic.version = 11 : i64} {
  func.func @_linear_kernel(%arg0: i32, %arg1: i32, %arg2: memref<16x128xbf16, #tpu.memory_space<vmem>>, %arg3: memref<128x256xbf16, #tpu.memory_space<vmem>>, %arg4: memref<1x256xf32, #tpu.memory_space<vmem>>, %arg5: memref<16x256xbf16, #tpu.memory_space<vmem>>) attributes {dimension_semantics = [#tpu.dimension_semantics<parallel>, #tpu.dimension_semantics<parallel>], iteration_bounds = array<i64: 1, 1>, scalar_prefetch = 0 : i64, scratch_operands = 0 : i64, tpu.core_type = #tpu.core_type<tc>, window_params = [{transform_indices = @transform_0, window_bounds = array<i64: 16, 128>}, {transform_indices = @transform_1, window_bounds = array<i64: 128, 256>}, {transform_indices = @transform_2, window_bounds = array<i64: 1, 256>}, {transform_indices = @transform_3, window_bounds = array<i64: 16, 256>}]} {
    %c0 = arith.constant 0 : index
    %c0_0 = arith.constant 0 : index
    %0 = vector.load %arg2[%c0, %c0_0] : memref<16x128xbf16, #tpu.memory_space<vmem>>, vector<16x128xbf16>
    %c0_1 = arith.constant 0 : index
    %c0_2 = arith.constant 0 : index
    %1 = vector.load %arg3[%c0_1, %c0_2] : memref<128x256xbf16, #tpu.memory_space<vmem>>, vector<128x256xbf16>
    %cst = arith.constant dense<0.000000e+00> : vector<16x256xf32>
    %2 = tpu.matmul %0, %1, %cst {dimension_numbers = #tpu.dot_dimension_numbers<[1], [0], [0], [1], [0, 0, 1, 1], [], []>} : vector<16x128xbf16>, vector<128x256xbf16>, vector<16x256xf32> -> vector<16x256xf32>
    %c0_3 = arith.constant 0 : index
    %c0_4 = arith.constant 0 : index
    %3 = vector.load %arg4[%c0_3, %c0_4] : memref<1x256xf32, #tpu.memory_space<vmem>>, vector<1x256xf32>
    %4 = vector.broadcast %3 : vector<1x256xf32> to vector<16x256xf32>
    %5 = arith.addf %2, %4 : vector<16x256xf32>
    %6 = arith.truncf %5 : vector<16x256xf32> to vector<16x256xbf16>
    %c0_5 = arith.constant 0 : index
    %c0_6 = arith.constant 0 : index
    %7 = vector.load %arg5[%c0_5, %c0_6] : memref<16x256xbf16, #tpu.memory_space<vmem>>, vector<16x256xbf16>
    tpu.vector_store %arg5[%c0_5, %c0_6], %6 {strides = array<i32>} : memref<16x256xbf16, #tpu.memory_space<vmem>>, vector<16x256xbf16>,
    return
  }
  func.func @transform_0(%arg0: i32, %arg1: i32) -> (i32, i32) {
    %c0_i32 = arith.constant 0 : i32
    %c0_i32_0 = arith.constant 0 : i32
    return %arg0, %c0_i32 : i32, i32
  }
  func.func @transform_1(%arg0: i32, %arg1: i32) -> (i32, i32) {
    %c0_i32 = arith.constant 0 : i32
    %c0_i32_0 = arith.constant 0 : i32
    return %c0_i32, %arg1 : i32, i32
  }
  func.func @transform_2(%arg0: i32, %arg1: i32) -> (i32, i32) {
    %c0_i32 = arith.constant 0 : i32
    %c0_i32_0 = arith.constant 0 : i32
    return %c0_i32, %arg1 : i32, i32
  }
  func.func @transform_3(%arg0: i32, %arg1: i32) -> (i32, i32) {
    %c0_i32 = arith.constant 0 : i32
    return %arg0, %arg1 : i32, i32
  }
}

module attributes {stable_mosaic.version = 11 : i64} {
  func.func @_ffn_kernel(%arg0: i32, %arg1: i32, %arg2: memref<16x128xbf16, #tpu.memory_space<vmem>>, %arg3: memref<128x256xbf16, #tpu.memory_space<vmem>>, %arg4: memref<1x256xf32, #tpu.memory_space<vmem>>, %arg5: memref<256x128xbf16, #tpu.memory_space<vmem>>, %arg6: memref<1x128xf32, #tpu.memory_space<vmem>>, %arg7: memref<16x128xbf16, #tpu.memory_space<vmem>>, %arg8: memref<16x128xf32, #tpu.memory_space<vmem>>) attributes {dimension_semantics = [#tpu.dimension_semantics<parallel>, #tpu.dimension_semantics<arbitrary>], iteration_bounds = array<i64: 1, 1>, scalar_prefetch = 0 : i64, scratch_operands = 1 : i64, tpu.core_type = #tpu.core_type<tc>, window_params = [{transform_indices = @transform_0, window_bounds = array<i64: 16, 128>}, {transform_indices = @transform_1, window_bounds = array<i64: 128, 256>}, {transform_indices = @transform_2, window_bounds = array<i64: 1, 256>}, {transform_indices = @transform_3, window_bounds = array<i64: 256, 128>}, {pipeline_mode = #tpu.pipeline_mode<synchronous>, transform_indices = @transform_4, window_bounds = array<i64: 1, 128>}, {transform_indices = @transform_5, window_bounds = array<i64: 16, 128>}]} {
    %c0_i32 = arith.constant 0 : i32
    %0 = arith.cmpi eq, %arg1, %c0_i32 : i32
    %1 = arith.extui %0 : i1 to i32
    %c0_i32_0 = arith.constant 0 : i32
    %2 = arith.cmpi ne, %1, %c0_i32_0 : i32
    scf.if %2 {
      %cst_16 = arith.constant 0.000000e+00 : f32
      %20 = vector.broadcast %cst_16 : f32 to vector<16x128xf32>
      %c0_17 = arith.constant 0 : index
      %c0_18 = arith.constant 0 : index
      %21 = vector.load %arg8[%c0_17, %c0_18] : memref<16x128xf32, #tpu.memory_space<vmem>>, vector<16x128xf32>
      tpu.vector_store %arg8[%c0_17, %c0_18], %20 {strides = array<i32>} : memref<16x128xf32, #tpu.memory_space<vmem>>, vector<16x128xf32>,
    } else {
    }
    %c0 = arith.constant 0 : index
    %c0_1 = arith.constant 0 : index
    %3 = vector.load %arg2[%c0, %c0_1] : memref<16x128xbf16, #tpu.memory_space<vmem>>, vector<16x128xbf16>
    %c0_2 = arith.constant 0 : index
    %c0_3 = arith.constant 0 : index
    %4 = vector.load %arg3[%c0_2, %c0_3] : memref<128x256xbf16, #tpu.memory_space<vmem>>, vector<128x256xbf16>
    %cst = arith.constant dense<0.000000e+00> : vector<16x256xf32>
    %5 = tpu.matmul %3, %4, %cst {dimension_numbers = #tpu.dot_dimension_numbers<[1], [0], [0], [1], [0, 0, 1, 1], [], []>} : vector<16x128xbf16>, vector<128x256xbf16>, vector<16x256xf32> -> vector<16x256xf32>
    %c0_4 = arith.constant 0 : index
    %c0_5 = arith.constant 0 : index
    %6 = vector.load %arg4[%c0_4, %c0_5] : memref<1x256xf32, #tpu.memory_space<vmem>>, vector<1x256xf32>
    %7 = vector.broadcast %6 : vector<1x256xf32> to vector<16x256xf32>
    %8 = arith.addf %5, %7 : vector<16x256xf32>
    %cst_6 = arith.constant 0.000000e+00 : f32
    %9 = vector.broadcast %cst_6 : f32 to vector<16x256xf32>
    %10 = arith.maximumf %8, %9 : vector<16x256xf32>
    %c0_7 = arith.constant 0 : index
    %c0_8 = arith.constant 0 : index
    %11 = vector.load %arg8[%c0_7, %c0_8] : memref<16x128xf32, #tpu.memory_space<vmem>>, vector<16x128xf32>
    %12 = arith.truncf %10 : vector<16x256xf32> to vector<16x256xbf16>
    %c0_9 = arith.constant 0 : index
    %c0_10 = arith.constant 0 : index
    %13 = vector.load %arg5[%c0_9, %c0_10] : memref<256x128xbf16, #tpu.memory_space<vmem>>, vector<256x128xbf16>
    %cst_11 = arith.constant dense<0.000000e+00> : vector<16x128xf32>
    %14 = tpu.matmul %12, %13, %cst_11 {dimension_numbers = #tpu.dot_dimension_numbers<[1], [0], [0], [1], [0, 0, 1, 1], [], []>} : vector<16x256xbf16>, vector<256x128xbf16>, vector<16x128xf32> -> vector<16x128xf32>
    %15 = arith.addf %11, %14 : vector<16x128xf32>
    %c0_12 = arith.constant 0 : index
    %c0_13 = arith.constant 0 : index
    %16 = vector.load %arg8[%c0_12, %c0_13] : memref<16x128xf32, #tpu.memory_space<vmem>>, vector<16x128xf32>
    tpu.vector_store %arg8[%c0_12, %c0_13], %15 {strides = array<i32>} : memref<16x128xf32, #tpu.memory_space<vmem>>, vector<16x128xf32>,
    %c0_i32_14 = arith.constant 0 : i32
    %17 = arith.cmpi eq, %arg1, %c0_i32_14 : i32
    %18 = arith.extui %17 : i1 to i32
    %c0_i32_15 = arith.constant 0 : i32
    %19 = arith.cmpi ne, %18, %c0_i32_15 : i32
    scf.if %19 {
      %c0_16 = arith.constant 0 : index
      %c0_17 = arith.constant 0 : index
      %20 = vector.load %arg8[%c0_16, %c0_17] : memref<16x128xf32, #tpu.memory_space<vmem>>, vector<16x128xf32>
      %c0_18 = arith.constant 0 : index
      %c0_19 = arith.constant 0 : index
      %21 = vector.load %arg6[%c0_18, %c0_19] : memref<1x128xf32, #tpu.memory_space<vmem>>, vector<1x128xf32>
      %22 = vector.broadcast %21 : vector<1x128xf32> to vector<16x128xf32>
      %23 = arith.addf %20, %22 : vector<16x128xf32>
      %24 = arith.truncf %23 : vector<16x128xf32> to vector<16x128xbf16>
      %c0_20 = arith.constant 0 : index
      %c0_21 = arith.constant 0 : index
      %25 = vector.load %arg7[%c0_20, %c0_21] : memref<16x128xbf16, #tpu.memory_space<vmem>>, vector<16x128xbf16>
      tpu.vector_store %arg7[%c0_20, %c0_21], %24 {strides = array<i32>} : memref<16x128xbf16, #tpu.memory_space<vmem>>, vector<16x128xbf16>,
    } else {
    }
    return
  }
  func.func @transform_0(%arg0: i32, %arg1: i32) -> (i32, i32) {
    %c0_i32 = arith.constant 0 : i32
    %c0_i32_0 = arith.constant 0 : i32
    return %arg0, %c0_i32 : i32, i32
  }
  func.func @transform_1(%arg0: i32, %arg1: i32) -> (i32, i32) {
    %c0_i32 = arith.constant 0 : i32
    %c0_i32_0 = arith.constant 0 : i32
    return %c0_i32, %arg1 : i32, i32
  }
  func.func @transform_2(%arg0: i32, %arg1: i32) -> (i32, i32) {
    %c0_i32 = arith.constant 0 : i32
    %c0_i32_0 = arith.constant 0 : i32
    return %c0_i32, %arg1 : i32, i32
  }
  func.func @transform_3(%arg0: i32, %arg1: i32) -> (i32, i32) {
    %c0_i32 = arith.constant 0 : i32
    %c0_i32_0 = arith.constant 0 : i32
    return %arg1, %c0_i32 : i32, i32
  }
  func.func @transform_4(%arg0: i32, %arg1: i32) -> (i32, i32) {
    %c0_i32 = arith.constant 0 : i32
    %c0_i32_0 = arith.constant 0 : i32
    %c0_i32_1 = arith.constant 0 : i32
    return %c0_i32, %c0_i32_0 : i32, i32
  }
  func.func @transform_5(%arg0: i32, %arg1: i32) -> (i32, i32) {
    %c0_i32 = arith.constant 0 : i32
    %c0_i32_0 = arith.constant 0 : i32
    return %arg0, %c0_i32 : i32, i32
  }
}

module attributes {stable_mosaic.version = 11 : i64} {
  func.func @_mha_kernel(%arg0: i32, %arg1: i32, %arg2: memref<1x4x8x32xbf16, #tpu.memory_space<vmem>>, %arg3: memref<1x4x8x32xbf16, #tpu.memory_space<vmem>>, %arg4: memref<1x4x8x32xbf16, #tpu.memory_space<vmem>>, %arg5: memref<1x1x8xf32, #tpu.memory_space<vmem>>, %arg6: memref<1x4x8x32xbf16, #tpu.memory_space<vmem>>, %arg7: memref<1x4x8x8xf32, #tpu.memory_space<vmem>>, %arg8: memref<4x8x1xf32, #tpu.memory_space<vmem>>, %arg9: memref<4x8x1xf32, #tpu.memory_space<vmem>>, %arg10: memref<4x8x32xf32, #tpu.memory_space<vmem>>) attributes {dimension_semantics = [#tpu.dimension_semantics<parallel>, #tpu.dimension_semantics<arbitrary>], iteration_bounds = array<i64: 2, 1>, scalar_prefetch = 0 : i64, scratch_operands = 3 : i64, tpu.core_type = #tpu.core_type<tc>, window_params = [{transform_indices = @transform_0, window_bounds = array<i64: 1, 4, 8, 32>}, {transform_indices = @transform_1, window_bounds = array<i64: 1, 4, 8, 32>}, {transform_indices = @transform_2, window_bounds = array<i64: 1, 4, 8, 32>}, {transform_indices = @transform_3, window_bounds = array<i64: 1, 1, 8>}, {transform_indices = @transform_4, window_bounds = array<i64: 1, 4, 8, 32>}, {transform_indices = @transform_5, window_bounds = array<i64: 1, 4, 8, 8>}]} {
    %c0_i32 = arith.constant 0 : i32
    %0 = arith.cmpi eq, %arg1, %c0_i32 : i32
    %1 = arith.extui %0 : i1 to i32
    %c0_i32_0 = arith.constant 0 : i32
    %2 = arith.cmpi ne, %1, %c0_i32_0 : i32
    scf.if %2 {
      %cst_41 = arith.constant 0xFF800000 : f32
      %47 = vector.broadcast %cst_41 : f32 to vector<4x8x1xf32>
      %c0_42 = arith.constant 0 : index
      %c0_43 = arith.constant 0 : index
      %c0_44 = arith.constant 0 : index
      %48 = vector.load %arg8[%c0_42, %c0_43, %c0_44] : memref<4x8x1xf32, #tpu.memory_space<vmem>>, vector<4x8x1xf32>
      tpu.vector_store %arg8[%c0_42, %c0_43, %c0_44], %47 {strides = array<i32>} : memref<4x8x1xf32, #tpu.memory_space<vmem>>, vector<4x8x1xf32>,
      %cst_45 = arith.constant 0.000000e+00 : f32
      %49 = vector.broadcast %cst_45 : f32 to vector<4x8x1xf32>
      %c0_46 = arith.constant 0 : index
      %c0_47 = arith.constant 0 : index
      %c0_48 = arith.constant 0 : index
      %50 = vector.load %arg9[%c0_46, %c0_47, %c0_48] : memref<4x8x1xf32, #tpu.memory_space<vmem>>, vector<4x8x1xf32>
      tpu.vector_store %arg9[%c0_46, %c0_47, %c0_48], %49 {strides = array<i32>} : memref<4x8x1xf32, #tpu.memory_space<vmem>>, vector<4x8x1xf32>,
      %cst_49 = arith.constant 0.000000e+00 : f32
      %51 = vector.broadcast %cst_49 : f32 to vector<4x8x32xf32>
      %c0_50 = arith.constant 0 : index
      %c0_51 = arith.constant 0 : index
      %c0_52 = arith.constant 0 : index
      %52 = vector.load %arg10[%c0_50, %c0_51, %c0_52] : memref<4x8x32xf32, #tpu.memory_space<vmem>>, vector<4x8x32xf32>
      tpu.vector_store %arg10[%c0_50, %c0_51, %c0_52], %51 {strides = array<i32>} : memref<4x8x32xf32, #tpu.memory_space<vmem>>, vector<4x8x32xf32>,
    } else {
    }
    %c0 = arith.constant 0 : index
    %c0_1 = arith.constant 0 : index
    %c0_2 = arith.constant 0 : index
    %c0_3 = arith.constant 0 : index
    %3 = vector.load %arg2[%c0, %c0_1, %c0_2, %c0_3] : memref<1x4x8x32xbf16, #tpu.memory_space<vmem>>, vector<1x4x8x32xbf16>
    %4 = vector.shape_cast %3 : vector<1x4x8x32xbf16> to vector<4x8x32xbf16>
    %c0_4 = arith.constant 0 : index
    %c0_5 = arith.constant 0 : index
    %c0_6 = arith.constant 0 : index
    %c0_7 = arith.constant 0 : index
    %5 = vector.load %arg3[%c0_4, %c0_5, %c0_6, %c0_7] : memref<1x4x8x32xbf16, #tpu.memory_space<vmem>>, vector<1x4x8x32xbf16>
    %6 = vector.shape_cast %5 : vector<1x4x8x32xbf16> to vector<4x8x32xbf16>
    %c0_8 = arith.constant 0 : index
    %c0_9 = arith.constant 0 : index
    %c0_10 = arith.constant 0 : index
    %c0_11 = arith.constant 0 : index
    %7 = vector.load %arg4[%c0_8, %c0_9, %c0_10, %c0_11] : memref<1x4x8x32xbf16, #tpu.memory_space<vmem>>, vector<1x4x8x32xbf16>
    %8 = vector.shape_cast %7 : vector<1x4x8x32xbf16> to vector<4x8x32xbf16>
    "tpu.trace_start"() <{level = 10 : i32, message = "hqd,hkd->hqk"}> : () -> ()
    %cst = arith.constant dense<0.000000e+00> : vector<4x8x8xf32>
    %9 = tpu.matmul %4, %6, %cst {dimension_numbers = #tpu.dot_dimension_numbers<[2], [2], [1], [1], [0, 0, 0, 1, 1, 1], [0], [0]>} : vector<4x8x32xbf16>, vector<4x8x32xbf16>, vector<4x8x8xf32> -> vector<4x8x8xf32>
    "tpu.trace_stop"() : () -> ()
    %cst_12 = arith.constant 0.176776692 : f32
    %10 = vector.broadcast %cst_12 : f32 to vector<4x8x8xf32>
    %11 = arith.mulf %9, %10 : vector<4x8x8xf32>
    %c0_13 = arith.constant 0 : index
    %c0_14 = arith.constant 0 : index
    %c0_15 = arith.constant 0 : index
    %12 = vector.load %arg5[%c0_13, %c0_14, %c0_15] : memref<1x1x8xf32, #tpu.memory_space<vmem>>, vector<1x1x8xf32>
    %13 = vector.shape_cast %12 : vector<1x1x8xf32> to vector<1x8xf32>
    %cst_16 = arith.constant 5.000000e-01 : f32
    %14 = vector.broadcast %cst_16 : f32 to vector<1x8xf32>
    %15 = arith.cmpf ogt, %13, %14 : vector<1x8xf32>
    %16 = vector.shape_cast %15 : vector<1x8xi1> to vector<1x1x8xi1>
    %cst_17 = arith.constant -1.000000e+10 : f32
    %17 = vector.shape_cast %16 : vector<1x1x8xi1> to vector<1x1x8xi1>
    %18 = vector.broadcast %17 : vector<1x1x8xi1> to vector<4x8x8xi1>
    %19 = vector.broadcast %cst_17 : f32 to vector<4x8x8xf32>
    %20 = arith.select %18, %11, %19 : vector<4x8x8xi1>, vector<4x8x8xf32>
    %c0_18 = arith.constant 0 : index
    %c0_19 = arith.constant 0 : index
    %c0_20 = arith.constant 0 : index
    %21 = vector.load %arg8[%c0_18, %c0_19, %c0_20] : memref<4x8x1xf32, #tpu.memory_space<vmem>>, vector<4x8x1xf32>
    %cst_21 = arith.constant dense<0xFF800000> : vector<4x8xf32>
    %22 = vector.multi_reduction <maximumf>, %20, %cst_21 [2] : vector<4x8x8xf32> to vector<4x8xf32>
    %23 = vector.shape_cast %22 : vector<4x8xf32> to vector<4x8x1xf32>
    %24 = arith.maximumf %21, %23 : vector<4x8x1xf32>
    %25 = arith.subf %21, %24 : vector<4x8x1xf32>
    %26 = math.exp %25 : vector<4x8x1xf32>
    %27 = vector.broadcast %24 : vector<4x8x1xf32> to vector<4x8x8xf32>
    %28 = arith.subf %20, %27 : vector<4x8x8xf32>
    %29 = math.exp %28 : vector<4x8x8xf32>
    %c0_22 = arith.constant 0 : index
    %c0_23 = arith.constant 0 : index
    %c0_24 = arith.constant 0 : index
    %30 = vector.load %arg9[%c0_22, %c0_23, %c0_24] : memref<4x8x1xf32, #tpu.memory_space<vmem>>, vector<4x8x1xf32>
    %31 = arith.mulf %26, %30 : vector<4x8x1xf32>
    %cst_25 = arith.constant dense<0.000000e+00> : vector<4x8xf32>
    %32 = vector.multi_reduction <add>, %29, %cst_25 [2] : vector<4x8x8xf32> to vector<4x8xf32>
    %33 = vector.shape_cast %32 : vector<4x8xf32> to vector<4x8x1xf32>
    %34 = arith.addf %31, %33 : vector<4x8x1xf32>
    %c0_26 = arith.constant 0 : index
    %c0_27 = arith.constant 0 : index
    %c0_28 = arith.constant 0 : index
    %35 = vector.load %arg9[%c0_26, %c0_27, %c0_28] : memref<4x8x1xf32, #tpu.memory_space<vmem>>, vector<4x8x1xf32>
    tpu.vector_store %arg9[%c0_26, %c0_27, %c0_28], %34 {strides = array<i32>} : memref<4x8x1xf32, #tpu.memory_space<vmem>>, vector<4x8x1xf32>,
    %c0_29 = arith.constant 0 : index
    %c0_30 = arith.constant 0 : index
    %c0_31 = arith.constant 0 : index
    %36 = vector.load %arg10[%c0_29, %c0_30, %c0_31] : memref<4x8x32xf32, #tpu.memory_space<vmem>>, vector<4x8x32xf32>
    %37 = vector.broadcast %26 : vector<4x8x1xf32> to vector<4x8x32xf32>
    %38 = arith.mulf %37, %36 : vector<4x8x32xf32>
    %39 = arith.truncf %29 : vector<4x8x8xf32> to vector<4x8x8xbf16>
    "tpu.trace_start"() <{level = 10 : i32, message = "hqk,hkd->hqd"}> : () -> ()
    %cst_32 = arith.constant dense<0.000000e+00> : vector<4x8x32xf32>
    %40 = tpu.matmul %39, %8, %cst_32 {dimension_numbers = #tpu.dot_dimension_numbers<[2], [1], [1], [2], [0, 0, 0, 1, 1, 2], [0], [0]>} : vector<4x8x8xbf16>, vector<4x8x32xbf16>, vector<4x8x32xf32> -> vector<4x8x32xf32>
    "tpu.trace_stop"() : () -> ()
    %41 = arith.addf %38, %40 : vector<4x8x32xf32>
    %c0_33 = arith.constant 0 : index
    %c0_34 = arith.constant 0 : index
    %c0_35 = arith.constant 0 : index
    %42 = vector.load %arg10[%c0_33, %c0_34, %c0_35] : memref<4x8x32xf32, #tpu.memory_space<vmem>>, vector<4x8x32xf32>
    tpu.vector_store %arg10[%c0_33, %c0_34, %c0_35], %41 {strides = array<i32>} : memref<4x8x32xf32, #tpu.memory_space<vmem>>, vector<4x8x32xf32>,
    %c0_36 = arith.constant 0 : index
    %c0_37 = arith.constant 0 : index
    %c0_38 = arith.constant 0 : index
    %43 = vector.load %arg8[%c0_36, %c0_37, %c0_38] : memref<4x8x1xf32, #tpu.memory_space<vmem>>, vector<4x8x1xf32>
    tpu.vector_store %arg8[%c0_36, %c0_37, %c0_38], %24 {strides = array<i32>} : memref<4x8x1xf32, #tpu.memory_space<vmem>>, vector<4x8x1xf32>,
    %c0_i32_39 = arith.constant 0 : i32
    %44 = arith.cmpi eq, %arg1, %c0_i32_39 : i32
    %45 = arith.extui %44 : i1 to i32
    %c0_i32_40 = arith.constant 0 : i32
    %46 = arith.cmpi ne, %45, %c0_i32_40 : i32
    scf.if %46 {
      %c0_41 = arith.constant 0 : index
      %c0_42 = arith.constant 0 : index
      %c0_43 = arith.constant 0 : index
      %47 = vector.load %arg9[%c0_41, %c0_42, %c0_43] : memref<4x8x1xf32, #tpu.memory_space<vmem>>, vector<4x8x1xf32>
      %48 = tpu.reciprocal %47 {approx = true} : vector<4x8x1xf32> -> vector<4x8x1xf32>
      %c0_44 = arith.constant 0 : index
      %c0_45 = arith.constant 0 : index
      %c0_46 = arith.constant 0 : index
      %49 = vector.load %arg10[%c0_44, %c0_45, %c0_46] : memref<4x8x32xf32, #tpu.memory_space<vmem>>, vector<4x8x32xf32>
      %50 = vector.broadcast %48 : vector<4x8x1xf32> to vector<4x8x32xf32>
      %51 = arith.mulf %49, %50 : vector<4x8x32xf32>
      %52 = arith.truncf %51 : vector<4x8x32xf32> to vector<4x8x32xbf16>
      %c0_47 = arith.constant 0 : index
      %c0_48 = arith.constant 0 : index
      %c0_49 = arith.constant 0 : index
      %c0_50 = arith.constant 0 : index
      %53 = vector.load %arg6[%c0_47, %c0_48, %c0_49, %c0_50] : memref<1x4x8x32xbf16, #tpu.memory_space<vmem>>, vector<1x4x8x32xbf16>
      %54 = vector.shape_cast %53 : vector<1x4x8x32xbf16> to vector<4x8x32xbf16>
      %55 = vector.shape_cast %52 : vector<4x8x32xbf16> to vector<1x4x8x32xbf16>
      tpu.vector_store %arg6[%c0_47, %c0_48, %c0_49, %c0_50], %55 {strides = array<i32>} : memref<1x4x8x32xbf16, #tpu.memory_space<vmem>>, vector<1x4x8x32xbf16>,
      %56 = vector.broadcast %48 : vector<4x8x1xf32> to vector<4x8x8xf32>
      %57 = arith.mulf %29, %56 : vector<4x8x8xf32>
      %c0_51 = arith.constant 0 : index
      %c0_52 = arith.constant 0 : index
      %c0_53 = arith.constant 0 : index
      %c0_54 = arith.constant 0 : index
      %58 = vector.load %arg7[%c0_51, %c0_52, %c0_53, %c0_54] : memref<1x4x8x8xf32, #tpu.memory_space<vmem>>, vector<1x4x8x8xf32>
      %59 = vector.shape_cast %58 : vector<1x4x8x8xf32> to vector<4x8x8xf32>
      %60 = vector.shape_cast %57 : vector<4x8x8xf32> to vector<1x4x8x8xf32>
      tpu.vector_store %arg7[%c0_51, %c0_52, %c0_53, %c0_54], %60 {strides = array<i32>} : memref<1x4x8x8xf32, #tpu.memory_space<vmem>>, vector<1x4x8x8xf32>,
    } else {
    }
    return
  }
  func.func @transform_0(%arg0: i32, %arg1: i32) -> (i32, i32, i32, i32) {
    %c0_i32 = arith.constant 0 : i32
    %c0_i32_0 = arith.constant 0 : i32
    %c0_i32_1 = arith.constant 0 : i32
    %c0_i32_2 = arith.constant 0 : i32
    return %arg0, %c0_i32, %c0_i32_0, %c0_i32_1 : i32, i32, i32, i32
  }
  func.func @transform_1(%arg0: i32, %arg1: i32) -> (i32, i32, i32, i32) {
    %c0_i32 = arith.constant 0 : i32
    %c0_i32_0 = arith.constant 0 : i32
    %c0_i32_1 = arith.constant 0 : i32
    return %arg0, %c0_i32, %arg1, %c0_i32_0 : i32, i32, i32, i32
  }
  func.func @transform_2(%arg0: i32, %arg1: i32) -> (i32, i32, i32, i32) {
    %c0_i32 = arith.constant 0 : i32
    %c0_i32_0 = arith.constant 0 : i32
    %c0_i32_1 = arith.constant 0 : i32
    return %arg0, %c0_i32, %arg1, %c0_i32_0 : i32, i32, i32, i32
  }
  func.func @transform_3(%arg0: i32, %arg1: i32) -> (i32, i32, i32) {
    %c0_i32 = arith.constant 0 : i32
    %c0_i32_0 = arith.constant 0 : i32
    return %arg0, %c0_i32, %arg1 : i32, i32, i32
  }
  func.func @transform_4(%arg0: i32, %arg1: i32) -> (i32, i32, i32, i32) {
    %c0_i32 = arith.constant 0 : i32
    %c0_i32_0 = arith.constant 0 : i32
    %c0_i32_1 = arith.constant 0 : i32
    %c0_i32_2 = arith.constant 0 : i32
    return %arg0, %c0_i32, %c0_i32_0, %c0_i32_1 : i32, i32, i32, i32
  }
  func.func @transform_5(%arg0: i32, %arg1: i32) -> (i32, i32, i32, i32) {
    %c0_i32 = arith.constant 0 : i32
    %c0_i32_0 = arith.constant 0 : i32
    %c0_i32_1 = arith.constant 0 : i32
    %c0_i32_2 = arith.constant 0 : i32
    return %arg0, %c0_i32, %c0_i32_0, %c0_i32_1 : i32, i32, i32, i32
  }
}

module attributes {stable_mosaic.version = 11 : i64} {
  func.func @_linear_kernel(%arg0: i32, %arg1: i32, %arg2: memref<16x128xbf16, #tpu.memory_space<vmem>>, %arg3: memref<128x128xbf16, #tpu.memory_space<vmem>>, %arg4: memref<1x128xf32, #tpu.memory_space<vmem>>, %arg5: memref<16x128xbf16, #tpu.memory_space<vmem>>) attributes {dimension_semantics = [#tpu.dimension_semantics<parallel>, #tpu.dimension_semantics<parallel>], iteration_bounds = array<i64: 1, 1>, scalar_prefetch = 0 : i64, scratch_operands = 0 : i64, tpu.core_type = #tpu.core_type<tc>, window_params = [{transform_indices = @transform_0, window_bounds = array<i64: 16, 128>}, {transform_indices = @transform_1, window_bounds = array<i64: 128, 128>}, {transform_indices = @transform_2, window_bounds = array<i64: 1, 128>}, {transform_indices = @transform_3, window_bounds = array<i64: 16, 128>}]} {
    %c0 = arith.constant 0 : index
    %c0_0 = arith.constant 0 : index
    %0 = vector.load %arg2[%c0, %c0_0] : memref<16x128xbf16, #tpu.memory_space<vmem>>, vector<16x128xbf16>
    %c0_1 = arith.constant 0 : index
    %c0_2 = arith.constant 0 : index
    %1 = vector.load %arg3[%c0_1, %c0_2] : memref<128x128xbf16, #tpu.memory_space<vmem>>, vector<128x128xbf16>
    %cst = arith.constant dense<0.000000e+00> : vector<16x128xf32>
    %2 = tpu.matmul %0, %1, %cst {dimension_numbers = #tpu.dot_dimension_numbers<[1], [0], [0], [1], [0, 0, 1, 1], [], []>} : vector<16x128xbf16>, vector<128x128xbf16>, vector<16x128xf32> -> vector<16x128xf32>
    %c0_3 = arith.constant 0 : index
    %c0_4 = arith.constant 0 : index
    %3 = vector.load %arg4[%c0_3, %c0_4] : memref<1x128xf32, #tpu.memory_space<vmem>>, vector<1x128xf32>
    %4 = vector.broadcast %3 : vector<1x128xf32> to vector<16x128xf32>
    %5 = arith.addf %2, %4 : vector<16x128xf32>
    %6 = arith.truncf %5 : vector<16x128xf32> to vector<16x128xbf16>
    %c0_5 = arith.constant 0 : index
    %c0_6 = arith.constant 0 : index
    %7 = vector.load %arg5[%c0_5, %c0_6] : memref<16x128xbf16, #tpu.memory_space<vmem>>, vector<16x128xbf16>
    tpu.vector_store %arg5[%c0_5, %c0_6], %6 {strides = array<i32>} : memref<16x128xbf16, #tpu.memory_space<vmem>>, vector<16x128xbf16>,
    return
  }
  func.func @transform_0(%arg0: i32, %arg1: i32) -> (i32, i32) {
    %c0_i32 = arith.constant 0 : i32
    %c0_i32_0 = arith.constant 0 : i32
    return %arg0, %c0_i32 : i32, i32
  }
  func.func @transform_1(%arg0: i32, %arg1: i32) -> (i32, i32) {
    %c0_i32 = arith.constant 0 : i32
    %c0_i32_0 = arith.constant 0 : i32
    return %c0_i32, %arg1 : i32, i32
  }
  func.func @transform_2(%arg0: i32, %arg1: i32) -> (i32, i32) {
    %c0_i32 = arith.constant 0 : i32
    %c0_i32_0 = arith.constant 0 : i32
    return %c0_i32, %arg1 : i32, i32
  }
  func.func @transform_3(%arg0: i32, %arg1: i32) -> (i32, i32) {
    %c0_i32 = arith.constant 0 : i32
    return %arg0, %arg1 : i32, i32
  }
}

</mosaic_0001>

<llo_original>
// kernel: transformer_forward.49
$region0: #{transformer_forward.49}
  #allocation0 [shape = 'u32[]', space=smem, size = 0x4, offset = 0x4, fixed_abs, tag = 'smem constant byte address 0x4 - core index']
  #allocation1 [shape = 'u32[144,128]{1,0:T(1,128)}', space=vmem, size = 0x12000, scoped, tag = 'internal scratch']
  %s0 = inlined_call_operand.vmem [shape: bf16[16,128], index: 0, kind: input, shape index: {}]
  %s1 = inlined_call_operand.vmem [shape: bf16[128,128], index: 1, kind: input, shape index: {}]
  %s2 = inlined_call_operand.vmem [shape: f32[1,128], index: 2, kind: input, shape index: {}]
  %s3 = inlined_call_operand.vmem [shape: bf16[16,128], index: 3, kind: output, shape index: {}]
  %s4 = sld [smem:[#allocation0]]
  $region22: #{transformer_forward.49} parent=0
    _
  %s6 = ssub.s32 1, %s4
  %s7 = scalar_select 0, %s6, %s4
  // Predicated region
  $region2: #{transformer_forward.49} parent=0 // pred_check
    _
  $region3: #{transformer_forward.49} parent=0 // pred_check_branch
    %9 = sbr.rel (0) target = $region5
  $region4: #{transformer_forward.49} parent=0 // pred_region
    _
  $region5: #{transformer_forward.49} parent=0 // pred_fallthru
    _
  // Predicated region
  $region6: #{transformer_forward.49} parent=0 // pred_check
    _
  $region7: #{transformer_forward.49} parent=0 // pred_check_branch
    %11 = sbr.rel (0) target = $region9
  $region8: #{transformer_forward.49} parent=0 // pred_region
    _
  $region9: #{transformer_forward.49} parent=0 // pred_fallthru
    _
  // Predicated region
  $region10: #{transformer_forward.49} parent=0 // pred_check
    _
  $region11: #{transformer_forward.49} parent=0 // pred_check_branch
    %13 = sbr.rel (0) target = $region13
  $region12: #{transformer_forward.49} parent=0 // pred_region
    _
  $region13: #{transformer_forward.49} parent=0 // pred_fallthru
    _
  %v15 = vld [vmem:[%s0] sm:$0xf]
  %v16 = vld [vmem:[%s0 + $0x4] sm:$0xf]
  %v17 = vld [vmem:[%s1] sm:$0xf]
  %v18 = vld [vmem:[%s1 + $0x4] sm:$0xf]
  %v19 = vld [vmem:[%s1 + $0x8] sm:$0xf]
  %v20 = vld [vmem:[%s1 + $0xc] sm:$0xf]
  %v21 = vld [vmem:[%s1 + $0x10] sm:$0xf]
  %v22 = vld [vmem:[%s1 + $0x14] sm:$0xf]
  %v23 = vld [vmem:[%s1 + $0x18] sm:$0xf]
  %v24 = vld [vmem:[%s1 + $0x1c] sm:$0xf]
  %v25 = vld [vmem:[%s1 + $0x20] sm:$0xf]
  %v26 = vld [vmem:[%s1 + $0x24] sm:$0xf]
  %v27 = vld [vmem:[%s1 + $0x28] sm:$0xf]
  %v28 = vld [vmem:[%s1 + $0x2c] sm:$0xf]
  %v29 = vld [vmem:[%s1 + $0x30] sm:$0xf]
  %v30 = vld [vmem:[%s1 + $0x34] sm:$0xf]
  %v31 = vld [vmem:[%s1 + $0x38] sm:$0xf]
  %v32 = vld [vmem:[%s1 + $0x3c] sm:$0xf]
  %v33 = vld [vmem:[%s2] sm:$0x1]
  %v35 = vlaneseq
  %v36 = vshrl.u32 %v35, 7
  %v37 = vsub.s32 0, %v36
  %v38 = vrot.slane %v33, %v37
  %v42 = vunpack.c.l.b16 %v15
  %v43 = vunpack.c.l.b16 %v16
  %v44 = vpack.c.b16 %v43, %v42
  %v62 = vunpack.c.l.b16 %v17
  %v63 = vunpack.c.l.b16 %v18
  %v64 = vunpack.c.l.b16 %v19
  %v65 = vunpack.c.l.b16 %v20
  %v66 = vunpack.c.l.b16 %v21
  %v67 = vunpack.c.l.b16 %v22
  %v68 = vunpack.c.l.b16 %v23
  %v69 = vunpack.c.l.b16 %v24
  %v70 = vunpack.c.l.b16 %v25
  %v71 = vunpack.c.l.b16 %v26
  %v72 = vunpack.c.l.b16 %v27
  %v73 = vunpack.c.l.b16 %v28
  %v74 = vunpack.c.l.b16 %v29
  %v75 = vunpack.c.l.b16 %v30
  %v76 = vunpack.c.l.b16 %v31
  %v77 = vunpack.c.l.b16 %v32
  %v78 = vpack.c.b16 %v63, %v62
  %v79 = vpack.c.b16 %v65, %v64
  %v80 = vpack.c.b16 %v67, %v66
  %v81 = vpack.c.b16 %v69, %v68
  %v82 = vpack.c.b16 %v71, %v70
  %v83 = vpack.c.b16 %v73, %v72
  %v84 = vpack.c.b16 %v75, %v74
  %v85 = vpack.c.b16 %v77, %v76
  %94 = vmatprep.subr.bf16.mxu0 0
  %95 = vmatpush1.bf16.msra.mxu0 %v78
  %96 = vmatprep.subr.bf16.mxu0 0
  %97 = vmatpush1.bf16.msra.mxu0 %v79
  %98 = vmatprep.subr.bf16.mxu0 0
  %99 = vmatpush1.bf16.msra.mxu0 %v80
  %100 = vmatprep.subr.bf16.mxu0 0
  %101 = vmatpush1.bf16.msra.mxu0 %v81
  %102 = vmatprep.subr.bf16.mxu0 0
  %103 = vmatpush1.bf16.msra.mxu0 %v82
  %104 = vmatprep.subr.bf16.mxu0 0
  %105 = vmatpush1.bf16.msra.mxu0 %v83
  %106 = vmatprep.subr.bf16.mxu0 0
  %107 = vmatpush1.bf16.msra.mxu0 %v84
  %108 = vmatprep.subr.bf16.mxu0 0
  %109 = vmatpush1.bf16.msra.mxu0 %v85
  %110 = vmatprep.subr.bf16.mxu0 0
  %111 = vmatpush1.bf16.msra.mxu0 0
  %112 = vmatprep.subr.bf16.mxu0 0
  %113 = vmatpush1.bf16.msra.mxu0 0
  %114 = vmatprep.subr.bf16.mxu0 0
  %115 = vmatpush1.bf16.msra.mxu0 0
  %116 = vmatprep.subr.bf16.mxu0 0
  %117 = vmatpush1.bf16.msra.mxu0 0
  %118 = vmatprep.subr.bf16.mxu0 0
  %119 = vmatpush1.bf16.msra.mxu0 0
  %120 = vmatprep.subr.bf16.mxu0 0
  %121 = vmatpush1.bf16.msra.mxu0 0
  %122 = vmatprep.subr.bf16.mxu0 0
  %123 = vmatpush1.bf16.msra.mxu0 0
  %124 = vmatprep.subr.bf16.mxu0 0
  %125 = vmatpush1.bf16.msra.mxu0 0
  %126 = vmatprep.mubr.bf16.mxu0 0
  %127 = vmatmul.mubr.bf16.gmra.mrb[0].mxu0 %v44
  %v128 = vpop.f32.mrb[0].mxu0
  %v129 = vadd.f32 %v38, %v128
  %v130 = vpop.f32.mrb[0].mxu0
  %v131 = vpop.f32.mrb[0].mxu0
  %v132 = vadd.f32 %v38, %v131
  %v133 = vpop.f32.mrb[0].mxu0
  %134 = vdwg.mxu0
  %v135 = vpack.c.bf16 %v132, %v129
  %v137 = vunpack.c.l.b16 %v135
  %v138 = vunpack.c.h.b16 %v135
  %v139 = vpack.c.b16 %v137, %v137
  %v140 = vpack.c.b16 %v138, %v138
  %143 = vst [vmem:[%s3] sm:$0xf] %v139
  %144 = vst [vmem:[%s3 + $0x4] sm:$0xf] %v140
  // Predicated region
  $region14: #{transformer_forward.49} parent=0 // pred_check
    _
  $region15: #{transformer_forward.49} parent=0 // pred_check_branch
    %146 = sbr.rel (0) target = $region17
  $region16: #{transformer_forward.49} parent=0 // pred_region
    _
  $region17: #{transformer_forward.49} parent=0 // pred_fallthru
    _
  // Predicated region
  $region18: #{transformer_forward.49} parent=0 // pred_check
    _
  $region19: #{transformer_forward.49} parent=0 // pred_check_branch
    %148 = sbr.rel (0) target = $region21
  $region20: #{transformer_forward.49} parent=0 // pred_region
    _
  $region21: #{transformer_forward.49} parent=0 // pred_fallthru
    _

// kernel: transformer_forward.35
$region0: #{transformer_forward.35}
  #allocation0 [shape = 'u32[]', space=smem, size = 0x4, offset = 0x4, fixed_abs, tag = 'smem constant byte address 0x4 - core index']
  #allocation1 [shape = 'u32[144,128]{1,0:T(1,128)}', space=vmem, size = 0x12000, scoped, tag = 'internal scratch']
  %s0 = inlined_call_operand.vmem [shape: bf16[16,128], index: 0, kind: input, shape index: {}]
  %s1 = inlined_call_operand.vmem [shape: bf16[128,384], index: 1, kind: input, shape index: {}]
  %s2 = inlined_call_operand.vmem [shape: f32[1,384], index: 2, kind: input, shape index: {}]
  %s3 = inlined_call_operand.vmem [shape: bf16[16,384], index: 3, kind: output, shape index: {}]
  %s4 = sld [smem:[#allocation0]]
  $region22: #{transformer_forward.35} parent=0
    _
  %s6 = ssub.s32 1, %s4
  %s7 = scalar_select 0, %s6, %s4
  // Predicated region
  $region2: #{transformer_forward.35} parent=0 // pred_check
    _
  $region3: #{transformer_forward.35} parent=0 // pred_check_branch
    %9 = sbr.rel (0) target = $region5
  $region4: #{transformer_forward.35} parent=0 // pred_region
    _
  $region5: #{transformer_forward.35} parent=0 // pred_fallthru
    _
  // Predicated region
  $region6: #{transformer_forward.35} parent=0 // pred_check
    _
  $region7: #{transformer_forward.35} parent=0 // pred_check_branch
    %11 = sbr.rel (0) target = $region9
  $region8: #{transformer_forward.35} parent=0 // pred_region
    _
  $region9: #{transformer_forward.35} parent=0 // pred_fallthru
    _
  // Predicated region
  $region10: #{transformer_forward.35} parent=0 // pred_check
    _
  $region11: #{transformer_forward.35} parent=0 // pred_check_branch
    %13 = sbr.rel (0) target = $region13
  $region12: #{transformer_forward.35} parent=0 // pred_region
    _
  $region13: #{transformer_forward.35} parent=0 // pred_fallthru
    _
  %v15 = vld [vmem:[%s0] sm:$0xf]
  %v16 = vld [vmem:[%s0 + $0x4] sm:$0xf]
  %v17 = vld [vmem:[%s1] sm:$0xff]
  %v18 = vld [vmem:[%s1 + $0x8] sm:$0xf]
  %v19 = vld [vmem:[%s1 + $0xc] sm:$0xff]
  %v20 = vld [vmem:[%s1 + $0x14] sm:$0xf]
  %v21 = vld [vmem:[%s1 + $0x18] sm:$0xff]
  %v22 = vld [vmem:[%s1 + $0x20] sm:$0xf]
  %v23 = vld [vmem:[%s1 + $0x24] sm:$0xff]
  %v24 = vld [vmem:[%s1 + $0x2c] sm:$0xf]
  %v25 = vld [vmem:[%s1 + $0x30] sm:$0xff]
  %v26 = vld [vmem:[%s1 + $0x38] sm:$0xf]
  %v27 = vld [vmem:[%s1 + $0x3c] sm:$0xff]
  %v28 = vld [vmem:[%s1 + $0x44] sm:$0xf]
  %v29 = vld [vmem:[%s1 + $0x48] sm:$0xff]
  %v30 = vld [vmem:[%s1 + $0x50] sm:$0xf]
  %v31 = vld [vmem:[%s1 + $0x54] sm:$0xff]
  %v32 = vld [vmem:[%s1 + $0x5c] sm:$0xf]
  %v33 = vld [vmem:[%s1 + $0x60] sm:$0xff]
  %v34 = vld [vmem:[%s1 + $0x68] sm:$0xf]
  %v35 = vld [vmem:[%s1 + $0x6c] sm:$0xff]
  %v36 = vld [vmem:[%s1 + $0x74] sm:$0xf]
  %v37 = vld [vmem:[%s1 + $0x78] sm:$0xff]
  %v38 = vld [vmem:[%s1 + $0x80] sm:$0xf]
  %v39 = vld [vmem:[%s1 + $0x84] sm:$0xff]
  %v40 = vld [vmem:[%s1 + $0x8c] sm:$0xf]
  %v41 = vld [vmem:[%s1 + $0x90] sm:$0xff]
  %v42 = vld [vmem:[%s1 + $0x98] sm:$0xf]
  %v43 = vld [vmem:[%s1 + $0x9c] sm:$0xff]
  %v44 = vld [vmem:[%s1 + $0xa4] sm:$0xf]
  %v45 = vld [vmem:[%s1 + $0xa8] sm:$0xff]
  %v46 = vld [vmem:[%s1 + $0xb0] sm:$0xf]
  %v47 = vld [vmem:[%s1 + $0xb4] sm:$0xff]
  %v48 = vld [vmem:[%s1 + $0xbc] sm:$0xf]
  %v49 = vld [vmem:[%s2] sm:$0x7]
  %v51 = vlaneseq
  %v52 = vshrl.u32 %v51, 7
  %v53 = vsub.s32 0, %v52
  %v54 = vrot.slane %v49, %v53
  %v55 = vlaneseq
  %v56 = vshrl.u32 %v55, 7
  %v57 = vsub.s32 1, %v56
  %v58 = vrot.slane %v49, %v57
  %v59 = vlaneseq
  %v60 = vshrl.u32 %v59, 7
  %v61 = vsub.s32 2, %v60
  %v62 = vrot.slane %v49, %v61
  %v68 = vunpack.c.l.b16 %v15
  %v69 = vunpack.c.l.b16 %v16
  %v70 = vpack.c.b16 %v69, %v68
  %v104 = vunpack.c.l.b16 %v17
  %v105 = vunpack.c.h.b16 %v17
  %v106 = vunpack.c.l.b16 %v18
  %v107 = vunpack.c.l.b16 %v19
  %v108 = vunpack.c.h.b16 %v19
  %v109 = vunpack.c.l.b16 %v20
  %v110 = vunpack.c.l.b16 %v21
  %v111 = vunpack.c.h.b16 %v21
  %v112 = vunpack.c.l.b16 %v22
  %v113 = vunpack.c.l.b16 %v23
  %v114 = vunpack.c.h.b16 %v23
  %v115 = vunpack.c.l.b16 %v24
  %v116 = vunpack.c.l.b16 %v25
  %v117 = vunpack.c.h.b16 %v25
  %v118 = vunpack.c.l.b16 %v26
  %v119 = vunpack.c.l.b16 %v27
  %v120 = vunpack.c.h.b16 %v27
  %v121 = vunpack.c.l.b16 %v28
  %v122 = vunpack.c.l.b16 %v29
  %v123 = vunpack.c.h.b16 %v29
  %v124 = vunpack.c.l.b16 %v30
  %v125 = vunpack.c.l.b16 %v31
  %v126 = vunpack.c.h.b16 %v31
  %v127 = vunpack.c.l.b16 %v32
  %v128 = vunpack.c.l.b16 %v33
  %v129 = vunpack.c.h.b16 %v33
  %v130 = vunpack.c.l.b16 %v34
  %v131 = vunpack.c.l.b16 %v35
  %v132 = vunpack.c.h.b16 %v35
  %v133 = vunpack.c.l.b16 %v36
  %v134 = vunpack.c.l.b16 %v37
  %v135 = vunpack.c.h.b16 %v37
  %v136 = vunpack.c.l.b16 %v38
  %v137 = vunpack.c.l.b16 %v39
  %v138 = vunpack.c.h.b16 %v39
  %v139 = vunpack.c.l.b16 %v40
  %v140 = vunpack.c.l.b16 %v41
  %v141 = vunpack.c.h.b16 %v41
  %v142 = vunpack.c.l.b16 %v42
  %v143 = vunpack.c.l.b16 %v43
  %v144 = vunpack.c.h.b16 %v43
  %v145 = vunpack.c.l.b16 %v44
  %v146 = vunpack.c.l.b16 %v45
  %v147 = vunpack.c.h.b16 %v45
  %v148 = vunpack.c.l.b16 %v46
  %v149 = vunpack.c.l.b16 %v47
  %v150 = vunpack.c.h.b16 %v47
  %v151 = vunpack.c.l.b16 %v48
  %v152 = vpack.c.b16 %v107, %v104
  %v153 = vpack.c.b16 %v108, %v105
  %v154 = vpack.c.b16 %v109, %v106
  %v155 = vpack.c.b16 %v113, %v110
  %v156 = vpack.c.b16 %v114, %v111
  %v157 = vpack.c.b16 %v115, %v112
  %v158 = vpack.c.b16 %v119, %v116
  %v159 = vpack.c.b16 %v120, %v117
  %v160 = vpack.c.b16 %v121, %v118
  %v161 = vpack.c.b16 %v125, %v122
  %v162 = vpack.c.b16 %v126, %v123
  %v163 = vpack.c.b16 %v127, %v124
  %v164 = vpack.c.b16 %v131, %v128
  %v165 = vpack.c.b16 %v132, %v129
  %v166 = vpack.c.b16 %v133, %v130
  %v167 = vpack.c.b16 %v137, %v134
  %v168 = vpack.c.b16 %v138, %v135
  %v169 = vpack.c.b16 %v139, %v136
  %v170 = vpack.c.b16 %v143, %v140
  %v171 = vpack.c.b16 %v144, %v141
  %v172 = vpack.c.b16 %v145, %v142
  %v173 = vpack.c.b16 %v149, %v146
  %v174 = vpack.c.b16 %v150, %v147
  %v175 = vpack.c.b16 %v151, %v148
  %200 = vmatprep.subr.bf16.mxu0 %v153
  %201 = vmatpush1.bf16.msra.mxu0 %v152
  %202 = vmatprep.subr.bf16.mxu0 %v156
  %203 = vmatpush1.bf16.msra.mxu0 %v155
  %204 = vmatprep.subr.bf16.mxu0 %v159
  %205 = vmatpush1.bf16.msra.mxu0 %v158
  %206 = vmatprep.subr.bf16.mxu0 %v162
  %207 = vmatpush1.bf16.msra.mxu0 %v161
  %208 = vmatprep.subr.bf16.mxu0 %v165
  %209 = vmatpush1.bf16.msra.mxu0 %v164
  %210 = vmatprep.subr.bf16.mxu0 %v168
  %211 = vmatpush1.bf16.msra.mxu0 %v167
  %212 = vmatprep.subr.bf16.mxu0 %v171
  %213 = vmatpush1.bf16.msra.mxu0 %v170
  %214 = vmatprep.subr.bf16.mxu0 %v174
  %215 = vmatpush1.bf16.msra.mxu0 %v173
  %216 = vmatprep.subr.bf16.mxu0 0
  %217 = vmatpush1.bf16.msra.mxu0 0
  %218 = vmatprep.subr.bf16.mxu0 0
  %219 = vmatpush1.bf16.msra.mxu0 0
  %220 = vmatprep.subr.bf16.mxu0 0
  %221 = vmatpush1.bf16.msra.mxu0 0
  %222 = vmatprep.subr.bf16.mxu0 0
  %223 = vmatpush1.bf16.msra.mxu0 0
  %224 = vmatprep.subr.bf16.mxu0 0
  %225 = vmatpush1.bf16.msra.mxu0 0
  %226 = vmatprep.subr.bf16.mxu0 0
  %227 = vmatpush1.bf16.msra.mxu0 0
  %228 = vmatprep.subr.bf16.mxu0 0
  %229 = vmatpush1.bf16.msra.mxu0 0
  %230 = vmatprep.subr.bf16.mxu0 0
  %231 = vmatpush1.bf16.msra.mxu0 0
  %232 = vmatprep.mubr.bf16.mxu0 0
  %233 = vmatmul.mubr.bf16.gmra.mrb[0].mxu0 %v70
  %v234 = vpop.f32.mrb[0].mxu0
  %v235 = vadd.f32 %v54, %v234
  %v236 = vpop.f32.mrb[0].mxu0
  %v237 = vadd.f32 %v58, %v236
  %v238 = vpop.f32.mrb[0].mxu0
  %v239 = vadd.f32 %v54, %v238
  %v240 = vpop.f32.mrb[0].mxu0
  %v241 = vadd.f32 %v58, %v240
  %242 = vdwg.mxu0
  %243 = vmatprep.subr.bf16.mxu0 0
  %244 = vmatpush1.bf16.msra.mxu0 %v154
  %245 = vmatprep.subr.bf16.mxu0 0
  %246 = vmatpush1.bf16.msra.mxu0 %v157
  %247 = vmatprep.subr.bf16.mxu0 0
  %248 = vmatpush1.bf16.msra.mxu0 %v160
  %249 = vmatprep.subr.bf16.mxu0 0
  %250 = vmatpush1.bf16.msra.mxu0 %v163
  %251 = vmatprep.subr.bf16.mxu0 0
  %252 = vmatpush1.bf16.msra.mxu0 %v166
  %253 = vmatprep.subr.bf16.mxu0 0
  %254 = vmatpush1.bf16.msra.mxu0 %v169
  %255 = vmatprep.subr.bf16.mxu0 0
  %256 = vmatpush1.bf16.msra.mxu0 %v172
  %257 = vmatprep.subr.bf16.mxu0 0
  %258 = vmatpush1.bf16.msra.mxu0 %v175
  %259 = vmatprep.subr.bf16.mxu0 0
  %260 = vmatpush1.bf16.msra.mxu0 0
  %261 = vmatprep.subr.bf16.mxu0 0
  %262 = vmatpush1.bf16.msra.mxu0 0
  %263 = vmatprep.subr.bf16.mxu0 0
  %264 = vmatpush1.bf16.msra.mxu0 0
  %265 = vmatprep.subr.bf16.mxu0 0
  %266 = vmatpush1.bf16.msra.mxu0 0
  %267 = vmatprep.subr.bf16.mxu0 0
  %268 = vmatpush1.bf16.msra.mxu0 0
  %269 = vmatprep.subr.bf16.mxu0 0
  %270 = vmatpush1.bf16.msra.mxu0 0
  %271 = vmatprep.subr.bf16.mxu0 0
  %272 = vmatpush1.bf16.msra.mxu0 0
  %273 = vmatprep.subr.bf16.mxu0 0
  %274 = vmatpush1.bf16.msra.mxu0 0
  %275 = vmatprep.mubr.bf16.mxu0 0
  %276 = vmatmul.mubr.bf16.gmra.mrb[0].mxu0 %v70
  %v277 = vpop.f32.mrb[0].mxu0
  %v278 = vadd.f32 %v62, %v277
  %v279 = vpop.f32.mrb[0].mxu0
  %v280 = vpop.f32.mrb[0].mxu0
  %v281 = vadd.f32 %v62, %v280
  %v282 = vpop.f32.mrb[0].mxu0
  %283 = vdwg.mxu0
  %v284 = vpack.c.bf16 %v239, %v235
  %v285 = vpack.c.bf16 %v241, %v237
  %v286 = vpack.c.bf16 %v281, %v278
  %v290 = vunpack.c.l.b16 %v284
  %v291 = vunpack.c.l.b16 %v285
  %v292 = vunpack.c.l.b16 %v286
  %v293 = vunpack.c.h.b16 %v284
  %v294 = vunpack.c.h.b16 %v285
  %v295 = vunpack.c.h.b16 %v286
  %v296 = vpack.c.b16 %v291, %v290
  %v297 = vpack.c.b16 %v292, %v292
  %v298 = vpack.c.b16 %v294, %v293
  %v299 = vpack.c.b16 %v295, %v295
  %304 = vst [vmem:[%s3] sm:$0xff] %v296
  %305 = vst [vmem:[%s3 + $0x8] sm:$0xf] %v297
  %306 = vst [vmem:[%s3 + $0xc] sm:$0xff] %v298
  %307 = vst [vmem:[%s3 + $0x14] sm:$0xf] %v299
  // Predicated region
  $region14: #{transformer_forward.35} parent=0 // pred_check
    _
  $region15: #{transformer_forward.35} parent=0 // pred_check_branch
    %309 = sbr.rel (0) target = $region17
  $region16: #{transformer_forward.35} parent=0 // pred_region
    _
  $region17: #{transformer_forward.35} parent=0 // pred_fallthru
    _
  // Predicated region
  $region18: #{transformer_forward.35} parent=0 // pred_check
    _
  $region19: #{transformer_forward.35} parent=0 // pred_check_branch
    %311 = sbr.rel (0) target = $region21
  $region20: #{transformer_forward.35} parent=0 // pred_region
    _
  $region21: #{transformer_forward.35} parent=0 // pred_fallthru
    _

// kernel: transformer_forward.50
$region0: #{transformer_forward.50}
  #allocation0 [shape = 'u32[]', space=smem, size = 0x4, offset = 0x4, fixed_abs, tag = 'smem constant byte address 0x4 - core index']
  #allocation1 [shape = 'u32[144,128]{1,0:T(1,128)}', space=vmem, size = 0x12000, scoped, tag = 'internal scratch']
  %s0 = inlined_call_operand.vmem [shape: bf16[16,128], index: 0, kind: input, shape index: {}]
  %s1 = inlined_call_operand.vmem [shape: bf16[16,128], index: 1, kind: input, shape index: {}]
  %s2 = inlined_call_operand.vmem [shape: f32[1,128], index: 2, kind: input, shape index: {}]
  %s3 = inlined_call_operand.vmem [shape: f32[1,128], index: 3, kind: input, shape index: {}]
  %s4 = inlined_call_operand.vmem [shape: bf16[16,128], index: 4, kind: output, shape index: {}]
  %s5 = sld [smem:[#allocation0]]
  $region26: #{transformer_forward.50} parent=0
    _
  %s7 = ssub.s32 1, %s5
  %s8 = scalar_select 0, %s7, %s5
  // Predicated region
  $region2: #{transformer_forward.50} parent=0 // pred_check
    _
  $region3: #{transformer_forward.50} parent=0 // pred_check_branch
    %10 = sbr.rel (0) target = $region5
  $region4: #{transformer_forward.50} parent=0 // pred_region
    _
  $region5: #{transformer_forward.50} parent=0 // pred_fallthru
    _
  // Predicated region
  $region6: #{transformer_forward.50} parent=0 // pred_check
    _
  $region7: #{transformer_forward.50} parent=0 // pred_check_branch
    %12 = sbr.rel (0) target = $region9
  $region8: #{transformer_forward.50} parent=0 // pred_region
    _
  $region9: #{transformer_forward.50} parent=0 // pred_fallthru
    _
  // Predicated region
  $region10: #{transformer_forward.50} parent=0 // pred_check
    _
  $region11: #{transformer_forward.50} parent=0 // pred_check_branch
    %14 = sbr.rel (0) target = $region13
  $region12: #{transformer_forward.50} parent=0 // pred_region
    _
  $region13: #{transformer_forward.50} parent=0 // pred_fallthru
    _
  // Predicated region
  $region14: #{transformer_forward.50} parent=0 // pred_check
    _
  $region15: #{transformer_forward.50} parent=0 // pred_check_branch
    %16 = sbr.rel (0) target = $region17
  $region16: #{transformer_forward.50} parent=0 // pred_region
    _
  $region17: #{transformer_forward.50} parent=0 // pred_fallthru
    _
  %v17 = vld [vmem:[%s0] sm:$0xf]
  %v18 = vld [vmem:[%s0 + $0x4] sm:$0xf]
  %v19 = vunpack.c.l.bf16 %v17
  %v20 = vunpack.c.l.bf16 %v18
  %v21 = vld [vmem:[%s1] sm:$0xf]
  %v22 = vld [vmem:[%s1 + $0x4] sm:$0xf]
  %v23 = vunpack.c.l.bf16 %v21
  %v24 = vunpack.c.l.bf16 %v22
  %v25 = vadd.f32 %v19, %v23
  %v26 = vadd.f32 %v20, %v24
  %27 = vadd.xlane.f32.xlu0 %v25
  %v28 = vpop.xlane.xlu0 %27
  %29 = vadd.xlane.f32.xlu0 %v26
  %v30 = vpop.xlane.xlu0 %29
  %v31 = vrcp.pop 128.0
  %v32 = vmul.f32 %v28, %v31
  %v33 = vmul.f32 %v30, %v31
  %v34 = vsub.f32 %v25, %v32
  %v35 = vsub.f32 %v26, %v33
  %v36 = vmul.f32 %v34, %v34
  %v37 = vmul.f32 %v35, %v35
  %38 = vadd.xlane.f32.xlu0 %v36
  %v39 = vpop.xlane.xlu0 %38
  %40 = vadd.xlane.f32.xlu0 %v37
  %v41 = vpop.xlane.xlu0 %40
  %v42 = vmul.f32 %v39, %v31
  %v43 = vmul.f32 %v41, %v31
  %v44 = vadd.f32 %v42, 1e-05
  %v45 = vadd.f32 %v43, 1e-05
  %v46 = vrsqrt.pop %v44
  %v47 = vrsqrt.pop %v45
  %v48 = vmul.f32 %v34, %v46
  %v49 = vmul.f32 %v35, %v47
  %v50 = vld [vmem:[%s2] sm:$0x1]
  %v52 = vlaneseq
  %v53 = vshrl.u32 %v52, 7
  %v54 = vsub.s32 0, %v53
  %v55 = vrot.slane %v50, %v54
  %v57 = vmul.f32 %v48, %v55
  %v58 = vmul.f32 %v49, %v55
  %v59 = vld [vmem:[%s3] sm:$0x1]
  %v61 = vlaneseq
  %v62 = vshrl.u32 %v61, 7
  %v63 = vsub.s32 0, %v62
  %v64 = vrot.slane %v59, %v63
  %v66 = vadd.f32 %v57, %v64
  %v67 = vadd.f32 %v58, %v64
  %v68 = vpack.c.bf16 %v67, %v66
  %v70 = vunpack.c.l.b16 %v68
  %v71 = vunpack.c.h.b16 %v68
  %v72 = vpack.c.b16 %v70, %v70
  %v73 = vpack.c.b16 %v71, %v71
  %76 = vst [vmem:[%s4] sm:$0xf] %v72
  %77 = vst [vmem:[%s4 + $0x4] sm:$0xf] %v73
  // Predicated region
  $region18: #{transformer_forward.50} parent=0 // pred_check
    _
  $region19: #{transformer_forward.50} parent=0 // pred_check_branch
    %79 = sbr.rel (0) target = $region21
  $region20: #{transformer_forward.50} parent=0 // pred_region
    _
  $region21: #{transformer_forward.50} parent=0 // pred_fallthru
    _
  // Predicated region
  $region22: #{transformer_forward.50} parent=0 // pred_check
    _
  $region23: #{transformer_forward.50} parent=0 // pred_check_branch
    %81 = sbr.rel (0) target = $region25
  $region24: #{transformer_forward.50} parent=0 // pred_region
    _
  $region25: #{transformer_forward.50} parent=0 // pred_fallthru
    _

// kernel: transformer_forward.48
$region0: #{transformer_forward.48}
  #allocation0 [shape = 'u32[]', space=smem, size = 0x4, offset = 0x4, fixed_abs, tag = 'smem constant byte address 0x4 - core index']
  #allocation1 [shape = 'u32[144,128]{1,0:T(1,128)}', space=vmem, size = 0x12000, scoped, tag = 'internal scratch']
  #allocation2 [shape = 'f32[4,8,1]{2,1,0:T(8,128)}', space=vmem, size = 0x4000, scoped, tag = 'scratch operand']
  #allocation3 [shape = 'f32[4,8,1]{2,1,0:T(8,128)}', space=vmem, size = 0x4000, scoped, tag = 'scratch operand']
  #allocation4 [shape = 'f32[4,8,32]{2,1,0:T(8,128)}', space=vmem, size = 0x4000, scoped, tag = 'scratch operand']
  %s0 = inlined_call_operand.vmem [shape: bf16[2,4,8,32], index: 0, kind: input, shape index: {}]
  %s1 = inlined_call_operand.vmem [shape: bf16[2,4,8,32], index: 1, kind: input, shape index: {}]
  %s2 = inlined_call_operand.vmem [shape: bf16[2,4,8,32], index: 2, kind: input, shape index: {}]
  %s3 = inlined_call_operand.vmem [shape: f32[2,1,8], index: 3, kind: input, shape index: {}]
  %s4 = inlined_call_operand.vmem [shape: bf16[2,4,8,32], index: 4, kind: output, shape index: {}]
  %s5 = sld [smem:[#allocation0]]
  $region57: #{transformer_forward.48} parent=0
    _
  %s7 = ssub.s32 1, %s5
  %s8 = scalar_select 0, %s7, %s5
  loop: start=0, step=1, limit=4
  $region2: #{transformer_forward.48} parent=0 // loop_pre_header
    _
  $region3: #{transformer_forward.48} parent=0 // loop_header
    %s10 = sphi 0, %s14
    %p11 = scmp.ge.s32.totalorder %s10, 4
    %s17 = sphi 0, %s29
    %s18 = sphi 0, %s25
    %s19 = sphi 0, %s17
    %s20 = sphi 0, %s18
    %s21 = sphi 0, %s19
    %s22 = sphi 0, %s20
    %s32 = sphi 0, %s34
    %s35 = sphi 0, %s32
    %s36 = sphi 0, %s35
    %s52 = sphi 0, %s36
    %s60 = sphi 0, %s62
    %s63 = sphi 0, %s60
    %s64 = sphi 0, %s63
    %s80 = sphi 0, %s64
    %s88 = sphi 0, %s90
    %s91 = sphi 0, %s88
    %s92 = sphi 0, %s91
    %s108 = sphi 0, %s92
    %s116 = sphi 0, %s118
    %s119 = sphi 0, %s116
    %s120 = sphi 0, %s119
    %s136 = sphi 0, %s120
    %s142 = sphi 0, %s144
    %s145 = sphi 0, %s142
    %s146 = sphi 0, %s145
    %s162 = sphi 0, %s146
  $region4: #{transformer_forward.48} parent=0 // loop_header_branch
    %13 = sbr.rel (%p11) target = $region8
  $region5: #{transformer_forward.48} parent=0 // loop_body
    %s15 = ssub.s32 %s10, 1
    %s16 = ssub.s32 %s10, 2
    %s23 = sadd.s32 1, %s18
    %p24 = scmp.ge.s32.totalorder %s23, 1
    %s25 = scalar_select %p24, 0, %s23
    %s26 = sadd.s32 1, %s17
    %s27 = scalar_select %p24, %s26, %s17
    %p28 = scmp.ge.s32.totalorder %s27, 2
    %s29 = scalar_select %p28, 0, %s27
    %s30 = ssub.s32 %s17, %s29
    %p31 = scmp.eq.s32.totalorder %s30, 0
    %s33 = sadd.s32 %s32, 1
    %s34 = scalar_select %p31, %s32, %s33
    %p37 = pneg %p31
    %p38 = scmp.eq.s32.totalorder %s10, 1
    %p39 = por %p37, %p38
    %p40 = scmp.ne.s32.totalorder %s32, %s35
    %p41 = scmp.eq.s32.totalorder %s10, 0
    %p42 = por %p40, %p41
    %p43 = scmp.ne.s32.totalorder %s32, %s35
    %p44 = scmp.eq.s32.totalorder %s15, 1
    %p45 = por %p43, %p44
    %p46 = scmp.ne.s32.totalorder %s35, %s36
    %p47 = scmp.eq.s32.totalorder %s15, 0
    %p48 = por %p46, %p47
    %p49 = scmp.ne.s32.totalorder %s35, %s36
    %p50 = scmp.eq.s32.totalorder %s16, 1
    %p51 = por %p49, %p50
    %p53 = scmp.ne.s32.totalorder %s36, %s52
    %p54 = scmp.eq.s32.totalorder %s16, 0
    %p55 = por %p53, %p54
    %s56 = ssub.s32 %s17, %s29
    %s57 = ssub.s32 %s18, %s25
    %s58 = sor.u32 %s56, %s57
    %p59 = scmp.eq.s32.totalorder %s58, 0
    %s61 = sadd.s32 %s60, 1
    %s62 = scalar_select %p59, %s60, %s61
    %p65 = pneg %p59
    %p66 = scmp.eq.s32.totalorder %s10, 1
    %p67 = por %p65, %p66
    %p68 = scmp.ne.s32.totalorder %s60, %s63
    %p69 = scmp.eq.s32.totalorder %s10, 0
    %p70 = por %p68, %p69
    %p71 = scmp.ne.s32.totalorder %s60, %s63
    %p72 = scmp.eq.s32.totalorder %s15, 1
    %p73 = por %p71, %p72
    %p74 = scmp.ne.s32.totalorder %s63, %s64
    %p75 = scmp.eq.s32.totalorder %s15, 0
    %p76 = por %p74, %p75
    %p77 = scmp.ne.s32.totalorder %s63, %s64
    %p78 = scmp.eq.s32.totalorder %s16, 1
    %p79 = por %p77, %p78
    %p81 = scmp.ne.s32.totalorder %s64, %s80
    %p82 = scmp.eq.s32.totalorder %s16, 0
    %p83 = por %p81, %p82
    %s84 = ssub.s32 %s17, %s29
    %s85 = ssub.s32 %s18, %s25
    %s86 = sor.u32 %s84, %s85
    %p87 = scmp.eq.s32.totalorder %s86, 0
    %s89 = sadd.s32 %s88, 1
    %s90 = scalar_select %p87, %s88, %s89
    %p93 = pneg %p87
    %p94 = scmp.eq.s32.totalorder %s10, 1
    %p95 = por %p93, %p94
    %p96 = scmp.ne.s32.totalorder %s88, %s91
    %p97 = scmp.eq.s32.totalorder %s10, 0
    %p98 = por %p96, %p97
    %p99 = scmp.ne.s32.totalorder %s88, %s91
    %p100 = scmp.eq.s32.totalorder %s15, 1
    %p101 = por %p99, %p100
    %p102 = scmp.ne.s32.totalorder %s91, %s92
    %p103 = scmp.eq.s32.totalorder %s15, 0
    %p104 = por %p102, %p103
    %p105 = scmp.ne.s32.totalorder %s91, %s92
    %p106 = scmp.eq.s32.totalorder %s16, 1
    %p107 = por %p105, %p106
    %p109 = scmp.ne.s32.totalorder %s92, %s108
    %p110 = scmp.eq.s32.totalorder %s16, 0
    %p111 = por %p109, %p110
    %s112 = ssub.s32 %s17, %s29
    %s113 = ssub.s32 %s18, %s25
    %s114 = sor.u32 %s112, %s113
    %p115 = scmp.eq.s32.totalorder %s114, 0
    %s117 = sadd.s32 %s116, 1
    %s118 = scalar_select %p115, %s116, %s117
    %p121 = pneg %p115
    %p122 = scmp.eq.s32.totalorder %s10, 1
    %p123 = por %p121, %p122
    %p124 = scmp.ne.s32.totalorder %s116, %s119
    %p125 = scmp.eq.s32.totalorder %s10, 0
    %p126 = por %p124, %p125
    %p127 = scmp.ne.s32.totalorder %s116, %s119
    %p128 = scmp.eq.s32.totalorder %s15, 1
    %p129 = por %p127, %p128
    %p130 = scmp.ne.s32.totalorder %s119, %s120
    %p131 = scmp.eq.s32.totalorder %s15, 0
    %p132 = por %p130, %p131
    %p133 = scmp.ne.s32.totalorder %s119, %s120
    %p134 = scmp.eq.s32.totalorder %s16, 1
    %p135 = por %p133, %p134
    %p137 = scmp.ne.s32.totalorder %s120, %s136
    %p138 = scmp.eq.s32.totalorder %s16, 0
    %p139 = por %p137, %p138
    %s140 = ssub.s32 %s17, %s29
    %p141 = scmp.eq.s32.totalorder %s140, 0
    %s143 = sadd.s32 %s142, 1
    %s144 = scalar_select %p141, %s142, %s143
    %p147 = pneg %p141
    %p148 = scmp.eq.s32.totalorder %s10, 1
    %p149 = por %p147, %p148
    %p150 = scmp.ne.s32.totalorder %s142, %s145
    %p151 = scmp.eq.s32.totalorder %s10, 0
    %p152 = por %p150, %p151
    %p153 = scmp.ne.s32.totalorder %s142, %s145
    %p154 = scmp.eq.s32.totalorder %s15, 1
    %p155 = por %p153, %p154
    %p156 = scmp.ne.s32.totalorder %s145, %s146
    %p157 = scmp.eq.s32.totalorder %s15, 0
    %p158 = por %p156, %p157
    %p159 = scmp.ne.s32.totalorder %s145, %s146
    %p160 = scmp.eq.s32.totalorder %s16, 1
    %p161 = por %p159, %p160
    %p163 = scmp.ne.s32.totalorder %s146, %s162
    %p164 = scmp.eq.s32.totalorder %s16, 0
    %p165 = por %p163, %p164
    %p166 = scmp.le.s32.totalorder 1, %s10
    %p167 = scmp.lt.s32.totalorder %s10, 3
    %p168 = pnand %p166, %p167
    %p169 = pneg %p168
    // Predicated region
    $region9: #{transformer_forward.48} parent=5 // pred_check
      _
    $region10: #{transformer_forward.48} parent=5 // pred_check_branch
      %171 = sbr.rel (%p168) target = $region12
    $region11: #{transformer_forward.48} parent=5 // pred_region
      %s172 = ssub.s32 %s10, 1
    $region12: #{transformer_forward.48} parent=5 // pred_fallthru
      _
    %p173 = scmp.lt.s32.totalorder %s10, 2
    // Predicated region
    $region13: #{transformer_forward.48} parent=5 // pred_check
      %p174 = pneg %p173
    $region14: #{transformer_forward.48} parent=5 // pred_check_branch
      %176 = sbr.rel (%p174) target = $region16
    $region15: #{transformer_forward.48} parent=5 // pred_region
      // Predicated region
      $region17: #{transformer_forward.48} parent=15 // pred_check
        %p177 = pneg %p42
      $region18: #{transformer_forward.48} parent=15 // pred_check_branch
        %179 = sbr.rel (%p177) target = $region20
      $region19: #{transformer_forward.48} parent=15 // pred_region
        %p180 = scmp.lt.s32.totalorder %s17, 1
        %s181 = scalar_select %p180, %s17, 1
        %s182 = smul.addr %s181, 4
        %s183 = smul.addr %s182, 4
        %s184 = scalar_lea.vmem %s0, %s183
      $region20: #{transformer_forward.48} parent=15 // pred_fallthru
        _
      // Predicated region
      $region21: #{transformer_forward.48} parent=15 // pred_check
        %p185 = pneg %p70
      $region22: #{transformer_forward.48} parent=15 // pred_check_branch
        %187 = sbr.rel (%p185) target = $region24
      $region23: #{transformer_forward.48} parent=15 // pred_region
        %p188 = scmp.lt.s32.totalorder %s17, 1
        %s189 = scalar_select %p188, %s17, 1
        %p190 = scmp.lt.s32.totalorder %s18, 0
        %s191 = scalar_select %p190, %s18, 0
        %s192 = smul.addr %s189, 4
        %s193 = sadd.s32 %s191, %s192
        %s194 = smul.addr %s193, 4
        %s195 = scalar_lea.vmem %s1, %s194
      $region24: #{transformer_forward.48} parent=15 // pred_fallthru
        _
      // Predicated region
      $region25: #{transformer_forward.48} parent=15 // pred_check
        %p196 = pneg %p98
      $region26: #{transformer_forward.48} parent=15 // pred_check_branch
        %198 = sbr.rel (%p196) target = $region28
      $region27: #{transformer_forward.48} parent=15 // pred_region
        %p199 = scmp.lt.s32.totalorder %s17, 1
        %s200 = scalar_select %p199, %s17, 1
        %p201 = scmp.lt.s32.totalorder %s18, 0
        %s202 = scalar_select %p201, %s18, 0
        %s203 = smul.addr %s200, 4
        %s204 = sadd.s32 %s202, %s203
        %s205 = smul.addr %s204, 4
        %s206 = scalar_lea.vmem %s2, %s205
      $region28: #{transformer_forward.48} parent=15 // pred_fallthru
        _
      // Predicated region
      $region29: #{transformer_forward.48} parent=15 // pred_check
        %p207 = pneg %p126
      $region30: #{transformer_forward.48} parent=15 // pred_check_branch
        %209 = sbr.rel (%p207) target = $region32
      $region31: #{transformer_forward.48} parent=15 // pred_region
        %p210 = scmp.lt.s32.totalorder %s17, 1
        %s211 = scalar_select %p210, %s17, 1
        %p212 = scmp.lt.s32.totalorder %s18, 0
        %s213 = scalar_select %p212, %s18, 0
        %s214 = sadd.s32 %s213, %s211
        %s215 = scalar_lea.vmem %s3, %s214
      $region32: #{transformer_forward.48} parent=15 // pred_fallthru
        _
    $region16: #{transformer_forward.48} parent=5 // pred_fallthru
      _
    %p216 = scmp.le.s32.totalorder 1, %s10
    %p217 = scmp.lt.s32.totalorder %s10, 3
    %p218 = pnand %p216, %p217
    %p219 = pneg %p218
    // Predicated region
    $region33: #{transformer_forward.48} parent=5 // pred_check
      _
    $region34: #{transformer_forward.48} parent=5 // pred_check_branch
      %221 = sbr.rel (%p218) target = $region36
    $region35: #{transformer_forward.48} parent=5 // pred_region
      %s222 = ssub.s32 %s10, 1
      %p223 = scmp.lt.s32.totalorder %s19, 1
      %s224 = scalar_select %p223, %s19, 1
      %s225 = smul.addr %s224, 4
      %s226 = smul.addr %s225, 4
      %s227 = scalar_lea.vmem %s0, %s226
      %p228 = pneg %p48
      %p229 = pneg %p45
      %p230 = scmp.lt.s32.totalorder %s19, 1
      %s231 = scalar_select %p230, %s19, 1
      %p232 = scmp.lt.s32.totalorder %s20, 0
      %s233 = scalar_select %p232, %s20, 0
      %s234 = smul.addr %s231, 4
      %s235 = sadd.s32 %s233, %s234
      %s236 = smul.addr %s235, 4
      %s237 = scalar_lea.vmem %s1, %s236
      %p238 = pneg %p76
      %p239 = pneg %p73
      %p240 = scmp.lt.s32.totalorder %s19, 1
      %s241 = scalar_select %p240, %s19, 1
      %p242 = scmp.lt.s32.totalorder %s20, 0
      %s243 = scalar_select %p242, %s20, 0
      %s244 = smul.addr %s241, 4
      %s245 = sadd.s32 %s243, %s244
      %s246 = smul.addr %s245, 4
      %s247 = scalar_lea.vmem %s2, %s246
      %p248 = pneg %p104
      %p249 = pneg %p101
      %p250 = scmp.lt.s32.totalorder %s19, 1
      %s251 = scalar_select %p250, %s19, 1
      %p252 = scmp.lt.s32.totalorder %s20, 0
      %s253 = scalar_select %p252, %s20, 0
      %s254 = sadd.s32 %s253, %s251
      %s255 = scalar_lea.vmem %s3, %s254
      %p256 = pneg %p132
      %p257 = pneg %p129
      %p258 = pneg %p158
      %p259 = pneg %p155
      %p260 = scmp.lt.s32.totalorder %s19, 1
      %s261 = scalar_select %p260, %s19, 1
      %s262 = smul.addr %s261, 4
      %s263 = smul.addr %s262, 4
      %s264 = scalar_lea.vmem %s4, %s263
      %p265 = scmp.lt.s32.totalorder %s19, 1
      %s266 = scalar_select %p265, %s19, 1
      %s267 = smul.addr %s266, 4
      %s268 = smul.addr %s267, 4
      %s269 = scalar_lea.vmem %s0, %s268
      %p270 = scmp.lt.s32.totalorder %s19, 1
      %s271 = scalar_select %p270, %s19, 1
      %p272 = scmp.lt.s32.totalorder %s20, 0
      %s273 = scalar_select %p272, %s20, 0
      %s274 = smul.addr %s271, 4
      %s275 = sadd.s32 %s273, %s274
      %s276 = smul.addr %s275, 4
      %s277 = scalar_lea.vmem %s1, %s276
      %p278 = scmp.lt.s32.totalorder %s19, 1
      %s279 = scalar_select %p278, %s19, 1
      %p280 = scmp.lt.s32.totalorder %s20, 0
      %s281 = scalar_select %p280, %s20, 0
      %s282 = smul.addr %s279, 4
      %s283 = sadd.s32 %s281, %s282
      %s284 = smul.addr %s283, 4
      %s285 = scalar_lea.vmem %s2, %s284
      %p286 = scmp.lt.s32.totalorder %s19, 1
      %s287 = scalar_select %p286, %s19, 1
      %p288 = scmp.lt.s32.totalorder %s20, 0
      %s289 = scalar_select %p288, %s20, 0
      %s290 = sadd.s32 %s289, %s287
      %s291 = scalar_lea.vmem %s3, %s290
      %p292 = scmp.lt.s32.totalorder %s19, 1
      %s293 = scalar_select %p292, %s19, 1
      %s294 = smul.addr %s293, 4
      %s295 = smul.addr %s294, 4
      %s296 = scalar_lea.vmem %s4, %s295
      %p298 = scmp.eq.s32.totalorder %s20, 0
      // Predicated region
      $region37: #{transformer_forward.48} parent=35 // pred_check
        %p299 = pneg %p298
      $region38: #{transformer_forward.48} parent=35 // pred_check_branch
        %301 = sbr.rel (%p299) target = $region40
      $region39: #{transformer_forward.48} parent=35 // pred_region
        %vm302 = vcmask 7168
        %303 = vst.msk [vmem:[#allocation2] sm:$0xff] %vm302, -inf
        %304 = vst.msk [vmem:[#allocation2 + $0x8] sm:$0xff] %vm302, -inf
        %305 = vst.msk [vmem:[#allocation2 + $0x10] sm:$0xff] %vm302, -inf
        %306 = vst.msk [vmem:[#allocation2 + $0x18] sm:$0xff] %vm302, -inf
        %307 = vst.msk [vmem:[#allocation3] sm:$0xff] %vm302, 0.0
        %308 = vst.msk [vmem:[#allocation3 + $0x8] sm:$0xff] %vm302, 0.0
        %309 = vst.msk [vmem:[#allocation3 + $0x10] sm:$0xff] %vm302, 0.0
        %310 = vst.msk [vmem:[#allocation3 + $0x18] sm:$0xff] %vm302, 0.0
        %vm311 = vcmask 261120
        %312 = vst.msk [vmem:[#allocation4] sm:$0xff] %vm311, 0.0
        %313 = vst.msk [vmem:[#allocation4 + $0x8] sm:$0xff] %vm311, 0.0
        %314 = vst.msk [vmem:[#allocation4 + $0x10] sm:$0xff] %vm311, 0.0
        %315 = vst.msk [vmem:[#allocation4 + $0x18] sm:$0xff] %vm311, 0.0
      $region40: #{transformer_forward.48} parent=35 // pred_fallthru
        _
      %v316 = vld [vmem:[%s269] sm:$0xf]
      %v317 = vld [vmem:[%s269 + $0x4] sm:$0xf]
      %v318 = vld [vmem:[%s269 + $0x8] sm:$0xf]
      %v319 = vld [vmem:[%s269 + $0xc] sm:$0xf]
      %v320 = vld [vmem:[%s277] sm:$0xf]
      %v321 = vld [vmem:[%s277 + $0x4] sm:$0xf]
      %v322 = vld [vmem:[%s277 + $0x8] sm:$0xf]
      %v323 = vld [vmem:[%s277 + $0xc] sm:$0xf]
      %v324 = vld [vmem:[%s285] sm:$0xf]
      %v325 = vld [vmem:[%s285 + $0x4] sm:$0xf]
      %v326 = vld [vmem:[%s285 + $0x8] sm:$0xf]
      %v327 = vld [vmem:[%s285 + $0xc] sm:$0xf]
      %vm328 = vcmask 261120
      %v330 = vsel %vm328, %v316, 0
      %v333 = vsel %vm328, %v320, 0
      %335 = vmatprep.subr.bf16.mxu0 0
      %336 = vmatpush1.bf16.xpose.msra.mxu0 %v333
      %337 = vmatprep.subr.bf16.mxu0 0
      %338 = vmatpush1.bf16.xpose.msra.mxu0 0
      %339 = vmatprep.subr.bf16.mxu0 0
      %340 = vmatpush1.bf16.xpose.msra.mxu0 0
      %341 = vmatprep.subr.bf16.mxu0 0
      %342 = vmatpush1.bf16.xpose.msra.mxu0 0
      %343 = vmatprep.subr.bf16.mxu0 0
      %344 = vmatpush1.bf16.xpose.msra.mxu0 0
      %345 = vmatprep.subr.bf16.mxu0 0
      %346 = vmatpush1.bf16.xpose.msra.mxu0 0
      %347 = vmatprep.subr.bf16.mxu0 0
      %348 = vmatpush1.bf16.xpose.msra.mxu0 0
      %349 = vmatprep.subr.bf16.mxu0 0
      %350 = vmatpush1.bf16.xpose.msra.mxu0 0
      %351 = vmatprep.subr.bf16.mxu0 0
      %352 = vmatpush1.bf16.xpose.msra.mxu0 0
      %353 = vmatprep.subr.bf16.mxu0 0
      %354 = vmatpush1.bf16.xpose.msra.mxu0 0
      %355 = vmatprep.subr.bf16.mxu0 0
      %356 = vmatpush1.bf16.xpose.msra.mxu0 0
      %357 = vmatprep.subr.bf16.mxu0 0
      %358 = vmatpush1.bf16.xpose.msra.mxu0 0
      %359 = vmatprep.subr.bf16.mxu0 0
      %360 = vmatpush1.bf16.xpose.msra.mxu0 0
      %361 = vmatprep.subr.bf16.mxu0 0
      %362 = vmatpush1.bf16.xpose.msra.mxu0 0
      %363 = vmatprep.subr.bf16.mxu0 0
      %364 = vmatpush1.bf16.xpose.msra.mxu0 0
      %365 = vmatprep.subr.bf16.mxu0 0
      %366 = vmatpush1.bf16.xpose.msra.mxu0 0
      %367 = vmatprep.mubr.bf16.mxu0 0
      %368 = vmatmul.mubr.bf16.gmra.mrb[0].mxu0 %v330
      %v369 = vpop.f32.mrb[0].mxu0
      %v370 = vadd.f32 0.0, %v369
      %v371 = vpop.f32.mrb[0].mxu0
      %v372 = vpop.f32.mrb[0].mxu0
      %v373 = vpop.f32.mrb[0].mxu0
      %374 = vdwg.mxu0
      %v376 = vsel %vm328, %v317, 0
      %v379 = vsel %vm328, %v321, 0
      %381 = vmatprep.subr.bf16.mxu0 0
      %382 = vmatpush1.bf16.xpose.msra.mxu0 %v379
      %383 = vmatprep.subr.bf16.mxu0 0
      %384 = vmatpush1.bf16.xpose.msra.mxu0 0
      %385 = vmatprep.subr.bf16.mxu0 0
      %386 = vmatpush1.bf16.xpose.msra.mxu0 0
      %387 = vmatprep.subr.bf16.mxu0 0
      %388 = vmatpush1.bf16.xpose.msra.mxu0 0
      %389 = vmatprep.subr.bf16.mxu0 0
      %390 = vmatpush1.bf16.xpose.msra.mxu0 0
      %391 = vmatprep.subr.bf16.mxu0 0
      %392 = vmatpush1.bf16.xpose.msra.mxu0 0
      %393 = vmatprep.subr.bf16.mxu0 0
      %394 = vmatpush1.bf16.xpose.msra.mxu0 0
      %395 = vmatprep.subr.bf16.mxu0 0
      %396 = vmatpush1.bf16.xpose.msra.mxu0 0
      %397 = vmatprep.subr.bf16.mxu0 0
      %398 = vmatpush1.bf16.xpose.msra.mxu0 0
      %399 = vmatprep.subr.bf16.mxu0 0
      %400 = vmatpush1.bf16.xpose.msra.mxu0 0
      %401 = vmatprep.subr.bf16.mxu0 0
      %402 = vmatpush1.bf16.xpose.msra.mxu0 0
      %403 = vmatprep.subr.bf16.mxu0 0
      %404 = vmatpush1.bf16.xpose.msra.mxu0 0
      %405 = vmatprep.subr.bf16.mxu0 0
      %406 = vmatpush1.bf16.xpose.msra.mxu0 0
      %407 = vmatprep.subr.bf16.mxu0 0
      %408 = vmatpush1.bf16.xpose.msra.mxu0 0
      %409 = vmatprep.subr.bf16.mxu0 0
      %410 = vmatpush1.bf16.xpose.msra.mxu0 0
      %411 = vmatprep.subr.bf16.mxu0 0
      %412 = vmatpush1.bf16.xpose.msra.mxu0 0
      %413 = vmatprep.mubr.bf16.mxu0 0
      %414 = vmatmul.mubr.bf16.gmra.mrb[0].mxu0 %v376
      %v415 = vpop.f32.mrb[0].mxu0
      %v416 = vadd.f32 0.0, %v415
      %v417 = vpop.f32.mrb[0].mxu0
      %v418 = vpop.f32.mrb[0].mxu0
      %v419 = vpop.f32.mrb[0].mxu0
      %420 = vdwg.mxu0
      %v422 = vsel %vm328, %v318, 0
      %v425 = vsel %vm328, %v322, 0
      %427 = vmatprep.subr.bf16.mxu0 0
      %428 = vmatpush1.bf16.xpose.msra.mxu0 %v425
      %429 = vmatprep.subr.bf16.mxu0 0
      %430 = vmatpush1.bf16.xpose.msra.mxu0 0
      %431 = vmatprep.subr.bf16.mxu0 0
      %432 = vmatpush1.bf16.xpose.msra.mxu0 0
      %433 = vmatprep.subr.bf16.mxu0 0
      %434 = vmatpush1.bf16.xpose.msra.mxu0 0
      %435 = vmatprep.subr.bf16.mxu0 0
      %436 = vmatpush1.bf16.xpose.msra.mxu0 0
      %437 = vmatprep.subr.bf16.mxu0 0
      %438 = vmatpush1.bf16.xpose.msra.mxu0 0
      %439 = vmatprep.subr.bf16.mxu0 0
      %440 = vmatpush1.bf16.xpose.msra.mxu0 0
      %441 = vmatprep.subr.bf16.mxu0 0
      %442 = vmatpush1.bf16.xpose.msra.mxu0 0
      %443 = vmatprep.subr.bf16.mxu0 0
      %444 = vmatpush1.bf16.xpose.msra.mxu0 0
      %445 = vmatprep.subr.bf16.mxu0 0
      %446 = vmatpush1.bf16.xpose.msra.mxu0 0
      %447 = vmatprep.subr.bf16.mxu0 0
      %448 = vmatpush1.bf16.xpose.msra.mxu0 0
      %449 = vmatprep.subr.bf16.mxu0 0
      %450 = vmatpush1.bf16.xpose.msra.mxu0 0
      %451 = vmatprep.subr.bf16.mxu0 0
      %452 = vmatpush1.bf16.xpose.msra.mxu0 0
      %453 = vmatprep.subr.bf16.mxu0 0
      %454 = vmatpush1.bf16.xpose.msra.mxu0 0
      %455 = vmatprep.subr.bf16.mxu0 0
      %456 = vmatpush1.bf16.xpose.msra.mxu0 0
      %457 = vmatprep.subr.bf16.mxu0 0
      %458 = vmatpush1.bf16.xpose.msra.mxu0 0
      %459 = vmatprep.mubr.bf16.mxu0 0
      %460 = vmatmul.mubr.bf16.gmra.mrb[0].mxu0 %v422
      %v461 = vpop.f32.mrb[0].mxu0
      %v462 = vadd.f32 0.0, %v461
      %v463 = vpop.f32.mrb[0].mxu0
      %v464 = vpop.f32.mrb[0].mxu0
      %v465 = vpop.f32.mrb[0].mxu0
      %466 = vdwg.mxu0
      %v468 = vsel %vm328, %v319, 0
      %v471 = vsel %vm328, %v323, 0
      %473 = vmatprep.subr.bf16.mxu0 0
      %474 = vmatpush1.bf16.xpose.msra.mxu0 %v471
      %475 = vmatprep.subr.bf16.mxu0 0
      %476 = vmatpush1.bf16.xpose.msra.mxu0 0
      %477 = vmatprep.subr.bf16.mxu0 0
      %478 = vmatpush1.bf16.xpose.msra.mxu0 0
      %479 = vmatprep.subr.bf16.mxu0 0
      %480 = vmatpush1.bf16.xpose.msra.mxu0 0
      %481 = vmatprep.subr.bf16.mxu0 0
      %482 = vmatpush1.bf16.xpose.msra.mxu0 0
      %483 = vmatprep.subr.bf16.mxu0 0
      %484 = vmatpush1.bf16.xpose.msra.mxu0 0
      %485 = vmatprep.subr.bf16.mxu0 0
      %486 = vmatpush1.bf16.xpose.msra.mxu0 0
      %487 = vmatprep.subr.bf16.mxu0 0
      %488 = vmatpush1.bf16.xpose.msra.mxu0 0
      %489 = vmatprep.subr.bf16.mxu0 0
      %490 = vmatpush1.bf16.xpose.msra.mxu0 0
      %491 = vmatprep.subr.bf16.mxu0 0
      %492 = vmatpush1.bf16.xpose.msra.mxu0 0
      %493 = vmatprep.subr.bf16.mxu0 0
      %494 = vmatpush1.bf16.xpose.msra.mxu0 0
      %495 = vmatprep.subr.bf16.mxu0 0
      %496 = vmatpush1.bf16.xpose.msra.mxu0 0
      %497 = vmatprep.subr.bf16.mxu0 0
      %498 = vmatpush1.bf16.xpose.msra.mxu0 0
      %499 = vmatprep.subr.bf16.mxu0 0
      %500 = vmatpush1.bf16.xpose.msra.mxu0 0
      %501 = vmatprep.subr.bf16.mxu0 0
      %502 = vmatpush1.bf16.xpose.msra.mxu0 0
      %503 = vmatprep.subr.bf16.mxu0 0
      %504 = vmatpush1.bf16.xpose.msra.mxu0 0
      %505 = vmatprep.mubr.bf16.mxu0 0
      %506 = vmatmul.mubr.bf16.gmra.mrb[0].mxu0 %v468
      %v507 = vpop.f32.mrb[0].mxu0
      %v508 = vadd.f32 0.0, %v507
      %v509 = vpop.f32.mrb[0].mxu0
      %v510 = vpop.f32.mrb[0].mxu0
      %v511 = vpop.f32.mrb[0].mxu0
      %512 = vdwg.mxu0
      %v513 = vmul.f32 %v370, 0.17677669
      %v514 = vmul.f32 %v416, 0.17677669
      %v515 = vmul.f32 %v462, 0.17677669
      %v516 = vmul.f32 %v508, 0.17677669
      %v517 = vld [vmem:[%s291] sm:$0x1]
      %vm518 = vcmp.gt.f32.partialorder %v517, 0.5
      %v519 = vlaneseq
      %v520 = vshrl.u32 %v519, 7
      %s521 = smul.u32 %s20, 8
      %v522 = vlaneseq
      %v523 = vand.u32 %v522, 127
      %v524 = vstv %s521
      %v525 = vadd.s32 %v524, %v523
      %vm526 = vcmp.ge.s32.totalorder %v520, %v525
      %v527 = vsel %vm518, 1, 0
      %v528 = vlaneseq
      %v529 = vshrl.u32 %v528, 7
      %v530 = vsub.s32 0, %v529
      %v531 = vrot.slane %v527, %v530
      %vm532 = vcmp.eq.s32.totalorder %v531, 1
      %vm533 = vmand %vm526, %vm532
      %v534 = vsel %vm533, 1, 0
      %vm535 = vcmp.eq.s32.totalorder %v534, 1
      %v536 = vsel %vm535, %v513, -1e+10
      %v537 = vsel %vm535, %v514, -1e+10
      %v538 = vsel %vm535, %v515, -1e+10
      %v539 = vsel %vm535, %v516, -1e+10
      %v540 = vld [vmem:[#allocation2] sm:$0xff]
      %v541 = vld [vmem:[#allocation2 + $0x8] sm:$0xff]
      %v542 = vld [vmem:[#allocation2 + $0x10] sm:$0xff]
      %v543 = vld [vmem:[#allocation2 + $0x18] sm:$0xff]
      %vm544 = vcmask 64512
      %v545 = vsel %vm544, %v536, -inf
      %546 = vmax.xlane.f32.xlu0 %v545
      %v547 = vpop.xlane.xlu0 %546
      %v548 = vsel %vm544, %v537, -inf
      %549 = vmax.xlane.f32.xlu0 %v548
      %v550 = vpop.xlane.xlu0 %549
      %v551 = vsel %vm544, %v538, -inf
      %552 = vmax.xlane.f32.xlu0 %v551
      %v553 = vpop.xlane.xlu0 %552
      %v554 = vsel %vm544, %v539, -inf
      %555 = vmax.xlane.f32.xlu0 %v554
      %v556 = vpop.xlane.xlu0 %555
      %v557 = vmax.f32 %v540, %v547
      %v558 = vmax.f32 %v541, %v550
      %v559 = vmax.f32 %v542, %v553
      %v560 = vmax.f32 %v543, %v556
      %v561 = vsub.f32 %v540, %v557
      %v562 = vsub.f32 %v541, %v558
      %v563 = vsub.f32 %v542, %v559
      %v564 = vsub.f32 %v543, %v560
      %v565 = vmul.f32 %v561, 1.442695
      %v566 = vpow.pop %v565
      %v567 = vmul.f32 %v562, 1.442695
      %v568 = vpow.pop %v567
      %v569 = vmul.f32 %v563, 1.442695
      %v570 = vpow.pop %v569
      %v571 = vmul.f32 %v564, 1.442695
      %v572 = vpow.pop %v571
      %574 = vset.pattern.permute.xlu0 0
      %575 = vperm.xlu0 %574, %v557
      %v576 = vpop.permute.xlu0 %575
      %579 = vset.pattern.permute.xlu0 0
      %580 = vperm.xlu0 %579, %v558
      %v581 = vpop.permute.xlu0 %580
      %584 = vset.pattern.permute.xlu0 0
      %585 = vperm.xlu0 %584, %v559
      %v586 = vpop.permute.xlu0 %585
      %589 = vset.pattern.permute.xlu0 0
      %590 = vperm.xlu0 %589, %v560
      %v591 = vpop.permute.xlu0 %590
      %v593 = vsub.f32 %v536, %v576
      %v594 = vsub.f32 %v537, %v581
      %v595 = vsub.f32 %v538, %v586
      %v596 = vsub.f32 %v539, %v591
      %v597 = vmul.f32 %v593, 1.442695
      %v598 = vpow.pop %v597
      %v599 = vmul.f32 %v594, 1.442695
      %v600 = vpow.pop %v599
      %v601 = vmul.f32 %v595, 1.442695
      %v602 = vpow.pop %v601
      %v603 = vmul.f32 %v596, 1.442695
      %v604 = vpow.pop %v603
      %v605 = vld [vmem:[#allocation3] sm:$0xff]
      %v606 = vld [vmem:[#allocation3 + $0x8] sm:$0xff]
      %v607 = vld [vmem:[#allocation3 + $0x10] sm:$0xff]
      %v608 = vld [vmem:[#allocation3 + $0x18] sm:$0xff]
      %v609 = vmul.f32 %v566, %v605
      %v610 = vmul.f32 %v568, %v606
      %v611 = vmul.f32 %v570, %v607
      %v612 = vmul.f32 %v572, %v608
      %v613 = vsel %vm544, %v598, 0.0
      %614 = vadd.xlane.f32.xlu0 %v613
      %v615 = vpop.xlane.xlu0 %614
      %v616 = vsel %vm544, %v600, 0.0
      %617 = vadd.xlane.f32.xlu0 %v616
      %v618 = vpop.xlane.xlu0 %617
      %v619 = vsel %vm544, %v602, 0.0
      %620 = vadd.xlane.f32.xlu0 %v619
      %v621 = vpop.xlane.xlu0 %620
      %v622 = vsel %vm544, %v604, 0.0
      %623 = vadd.xlane.f32.xlu0 %v622
      %v624 = vpop.xlane.xlu0 %623
      %v625 = vadd.f32 %v609, %v615
      %v626 = vadd.f32 %v610, %v618
      %v627 = vadd.f32 %v611, %v621
      %v628 = vadd.f32 %v612, %v624
      %vm629 = vcmask 7168
      %630 = vst.msk [vmem:[#allocation3] sm:$0xff] %vm629, %v625
      %631 = vst.msk [vmem:[#allocation3 + $0x8] sm:$0xff] %vm629, %v626
      %632 = vst.msk [vmem:[#allocation3 + $0x10] sm:$0xff] %vm629, %v627
      %633 = vst.msk [vmem:[#allocation3 + $0x18] sm:$0xff] %vm629, %v628
      %v634 = vld [vmem:[#allocation4] sm:$0xff]
      %v635 = vld [vmem:[#allocation4 + $0x8] sm:$0xff]
      %v636 = vld [vmem:[#allocation4 + $0x10] sm:$0xff]
      %v637 = vld [vmem:[#allocation4 + $0x18] sm:$0xff]
      %639 = vset.pattern.permute.xlu0 0
      %640 = vperm.xlu0 %639, %v566
      %v641 = vpop.permute.xlu0 %640
      %644 = vset.pattern.permute.xlu0 0
      %645 = vperm.xlu0 %644, %v568
      %v646 = vpop.permute.xlu0 %645
      %649 = vset.pattern.permute.xlu0 0
      %650 = vperm.xlu0 %649, %v570
      %v651 = vpop.permute.xlu0 %650
      %654 = vset.pattern.permute.xlu0 0
      %655 = vperm.xlu0 %654, %v572
      %v656 = vpop.permute.xlu0 %655
      %v658 = vmul.f32 %v641, %v634
      %v659 = vmul.f32 %v646, %v635
      %v660 = vmul.f32 %v651, %v636
      %v661 = vmul.f32 %v656, %v637
      %v662 = vpack.c.bf16 %v598, %v598
      %v663 = vpack.c.bf16 %v600, %v600
      %v664 = vpack.c.bf16 %v602, %v602
      %v665 = vpack.c.bf16 %v604, %v604
      %v667 = vsel %vm544, %v662, 0
      %vm669 = vcmask 1043456
      %v671 = vsel %vm669, %v324, 0
      %673 = vmatprep.subr.bf16.mxu0 0
      %674 = vmatpush1.bf16.msra.mxu0 %v671
      %675 = vmatprep.subr.bf16.mxu0 0
      %676 = vmatpush1.bf16.msra.mxu0 0
      %677 = vmatprep.subr.bf16.mxu0 0
      %678 = vmatpush1.bf16.msra.mxu0 0
      %679 = vmatprep.subr.bf16.mxu0 0
      %680 = vmatpush1.bf16.msra.mxu0 0
      %681 = vmatprep.subr.bf16.mxu0 0
      %682 = vmatpush1.bf16.msra.mxu0 0
      %683 = vmatprep.subr.bf16.mxu0 0
      %684 = vmatpush1.bf16.msra.mxu0 0
      %685 = vmatprep.subr.bf16.mxu0 0
      %686 = vmatpush1.bf16.msra.mxu0 0
      %687 = vmatprep.subr.bf16.mxu0 0
      %688 = vmatpush1.bf16.msra.mxu0 0
      %689 = vmatprep.subr.bf16.mxu0 0
      %690 = vmatpush1.bf16.msra.mxu0 0
      %691 = vmatprep.subr.bf16.mxu0 0
      %692 = vmatpush1.bf16.msra.mxu0 0
      %693 = vmatprep.subr.bf16.mxu0 0
      %694 = vmatpush1.bf16.msra.mxu0 0
      %695 = vmatprep.subr.bf16.mxu0 0
      %696 = vmatpush1.bf16.msra.mxu0 0
      %697 = vmatprep.subr.bf16.mxu0 0
      %698 = vmatpush1.bf16.msra.mxu0 0
      %699 = vmatprep.subr.bf16.mxu0 0
      %700 = vmatpush1.bf16.msra.mxu0 0
      %701 = vmatprep.subr.bf16.mxu0 0
      %702 = vmatpush1.bf16.msra.mxu0 0
      %703 = vmatprep.subr.bf16.mxu0 0
      %704 = vmatpush1.bf16.msra.mxu0 0
      %705 = vmatprep.mubr.bf16.mxu0 0
      %706 = vmatmul.mubr.bf16.gmra.mrb[0].mxu0 %v667
      %v707 = vpop.f32.mrb[0].mxu0
      %v708 = vadd.f32 0.0, %v707
      %v709 = vpop.f32.mrb[0].mxu0
      %v710 = vpop.f32.mrb[0].mxu0
      %v711 = vpop.f32.mrb[0].mxu0
      %712 = vdwg.mxu0
      %v714 = vsel %vm544, %v663, 0
      %v717 = vsel %vm669, %v325, 0
      %719 = vmatprep.subr.bf16.mxu0 0
      %720 = vmatpush1.bf16.msra.mxu0 %v717
      %721 = vmatprep.subr.bf16.mxu0 0
      %722 = vmatpush1.bf16.msra.mxu0 0
      %723 = vmatprep.subr.bf16.mxu0 0
      %724 = vmatpush1.bf16.msra.mxu0 0
      %725 = vmatprep.subr.bf16.mxu0 0
      %726 = vmatpush1.bf16.msra.mxu0 0
      %727 = vmatprep.subr.bf16.mxu0 0
      %728 = vmatpush1.bf16.msra.mxu0 0
      %729 = vmatprep.subr.bf16.mxu0 0
      %730 = vmatpush1.bf16.msra.mxu0 0
      %731 = vmatprep.subr.bf16.mxu0 0
      %732 = vmatpush1.bf16.msra.mxu0 0
      %733 = vmatprep.subr.bf16.mxu0 0
      %734 = vmatpush1.bf16.msra.mxu0 0
      %735 = vmatprep.subr.bf16.mxu0 0
      %736 = vmatpush1.bf16.msra.mxu0 0
      %737 = vmatprep.subr.bf16.mxu0 0
      %738 = vmatpush1.bf16.msra.mxu0 0
      %739 = vmatprep.subr.bf16.mxu0 0
      %740 = vmatpush1.bf16.msra.mxu0 0
      %741 = vmatprep.subr.bf16.mxu0 0
      %742 = vmatpush1.bf16.msra.mxu0 0
      %743 = vmatprep.subr.bf16.mxu0 0
      %744 = vmatpush1.bf16.msra.mxu0 0
      %745 = vmatprep.subr.bf16.mxu0 0
      %746 = vmatpush1.bf16.msra.mxu0 0
      %747 = vmatprep.subr.bf16.mxu0 0
      %748 = vmatpush1.bf16.msra.mxu0 0
      %749 = vmatprep.subr.bf16.mxu0 0
      %750 = vmatpush1.bf16.msra.mxu0 0
      %751 = vmatprep.mubr.bf16.mxu0 0
      %752 = vmatmul.mubr.bf16.gmra.mrb[0].mxu0 %v714
      %v753 = vpop.f32.mrb[0].mxu0
      %v754 = vadd.f32 0.0, %v753
      %v755 = vpop.f32.mrb[0].mxu0
      %v756 = vpop.f32.mrb[0].mxu0
      %v757 = vpop.f32.mrb[0].mxu0
      %758 = vdwg.mxu0
      %v760 = vsel %vm544, %v664, 0
      %v763 = vsel %vm669, %v326, 0
      %765 = vmatprep.subr.bf16.mxu0 0
      %766 = vmatpush1.bf16.msra.mxu0 %v763
      %767 = vmatprep.subr.bf16.mxu0 0
      %768 = vmatpush1.bf16.msra.mxu0 0
      %769 = vmatprep.subr.bf16.mxu0 0
      %770 = vmatpush1.bf16.msra.mxu0 0
      %771 = vmatprep.subr.bf16.mxu0 0
      %772 = vmatpush1.bf16.msra.mxu0 0
      %773 = vmatprep.subr.bf16.mxu0 0
      %774 = vmatpush1.bf16.msra.mxu0 0
      %775 = vmatprep.subr.bf16.mxu0 0
      %776 = vmatpush1.bf16.msra.mxu0 0
      %777 = vmatprep.subr.bf16.mxu0 0
      %778 = vmatpush1.bf16.msra.mxu0 0
      %779 = vmatprep.subr.bf16.mxu0 0
      %780 = vmatpush1.bf16.msra.mxu0 0
      %781 = vmatprep.subr.bf16.mxu0 0
      %782 = vmatpush1.bf16.msra.mxu0 0
      %783 = vmatprep.subr.bf16.mxu0 0
      %784 = vmatpush1.bf16.msra.mxu0 0
      %785 = vmatprep.subr.bf16.mxu0 0
      %786 = vmatpush1.bf16.msra.mxu0 0
      %787 = vmatprep.subr.bf16.mxu0 0
      %788 = vmatpush1.bf16.msra.mxu0 0
      %789 = vmatprep.subr.bf16.mxu0 0
      %790 = vmatpush1.bf16.msra.mxu0 0
      %791 = vmatprep.subr.bf16.mxu0 0
      %792 = vmatpush1.bf16.msra.mxu0 0
      %793 = vmatprep.subr.bf16.mxu0 0
      %794 = vmatpush1.bf16.msra.mxu0 0
      %795 = vmatprep.subr.bf16.mxu0 0
      %796 = vmatpush1.bf16.msra.mxu0 0
      %797 = vmatprep.mubr.bf16.mxu0 0
      %798 = vmatmul.mubr.bf16.gmra.mrb[0].mxu0 %v760
      %v799 = vpop.f32.mrb[0].mxu0
      %v800 = vadd.f32 0.0, %v799
      %v801 = vpop.f32.mrb[0].mxu0
      %v802 = vpop.f32.mrb[0].mxu0
      %v803 = vpop.f32.mrb[0].mxu0
      %804 = vdwg.mxu0
      %v806 = vsel %vm544, %v665, 0
      %v809 = vsel %vm669, %v327, 0
      %811 = vmatprep.subr.bf16.mxu0 0
      %812 = vmatpush1.bf16.msra.mxu0 %v809
      %813 = vmatprep.subr.bf16.mxu0 0
      %814 = vmatpush1.bf16.msra.mxu0 0
      %815 = vmatprep.subr.bf16.mxu0 0
      %816 = vmatpush1.bf16.msra.mxu0 0
      %817 = vmatprep.subr.bf16.mxu0 0
      %818 = vmatpush1.bf16.msra.mxu0 0
      %819 = vmatprep.subr.bf16.mxu0 0
      %820 = vmatpush1.bf16.msra.mxu0 0
      %821 = vmatprep.subr.bf16.mxu0 0
      %822 = vmatpush1.bf16.msra.mxu0 0
      %823 = vmatprep.subr.bf16.mxu0 0
      %824 = vmatpush1.bf16.msra.mxu0 0
      %825 = vmatprep.subr.bf16.mxu0 0
      %826 = vmatpush1.bf16.msra.mxu0 0
      %827 = vmatprep.subr.bf16.mxu0 0
      %828 = vmatpush1.bf16.msra.mxu0 0
      %829 = vmatprep.subr.bf16.mxu0 0
      %830 = vmatpush1.bf16.msra.mxu0 0
      %831 = vmatprep.subr.bf16.mxu0 0
      %832 = vmatpush1.bf16.msra.mxu0 0
      %833 = vmatprep.subr.bf16.mxu0 0
      %834 = vmatpush1.bf16.msra.mxu0 0
      %835 = vmatprep.subr.bf16.mxu0 0
      %836 = vmatpush1.bf16.msra.mxu0 0
      %837 = vmatprep.subr.bf16.mxu0 0
      %838 = vmatpush1.bf16.msra.mxu0 0
      %839 = vmatprep.subr.bf16.mxu0 0
      %840 = vmatpush1.bf16.msra.mxu0 0
      %841 = vmatprep.subr.bf16.mxu0 0
      %842 = vmatpush1.bf16.msra.mxu0 0
      %843 = vmatprep.mubr.bf16.mxu0 0
      %844 = vmatmul.mubr.bf16.gmra.mrb[0].mxu0 %v806
      %v845 = vpop.f32.mrb[0].mxu0
      %v846 = vadd.f32 0.0, %v845
      %v847 = vpop.f32.mrb[0].mxu0
      %v848 = vpop.f32.mrb[0].mxu0
      %v849 = vpop.f32.mrb[0].mxu0
      %850 = vdwg.mxu0
      %v851 = vadd.f32 %v658, %v708
      %v852 = vadd.f32 %v659, %v754
      %v853 = vadd.f32 %v660, %v800
      %v854 = vadd.f32 %v661, %v846
      %855 = vst.msk [vmem:[#allocation4] sm:$0xff] %vm328, %v851
      %856 = vst.msk [vmem:[#allocation4 + $0x8] sm:$0xff] %vm328, %v852
      %857 = vst.msk [vmem:[#allocation4 + $0x10] sm:$0xff] %vm328, %v853
      %858 = vst.msk [vmem:[#allocation4 + $0x18] sm:$0xff] %vm328, %v854
      %859 = vst.msk [vmem:[#allocation2] sm:$0xff] %vm629, %v557
      %860 = vst.msk [vmem:[#allocation2 + $0x8] sm:$0xff] %vm629, %v558
      %861 = vst.msk [vmem:[#allocation2 + $0x10] sm:$0xff] %vm629, %v559
      %862 = vst.msk [vmem:[#allocation2 + $0x18] sm:$0xff] %vm629, %v560
      // Predicated region
      $region41: #{transformer_forward.48} parent=35 // pred_check
        %p863 = pneg %p298
      $region42: #{transformer_forward.48} parent=35 // pred_check_branch
        %865 = sbr.rel (%p863) target = $region44
      $region43: #{transformer_forward.48} parent=35 // pred_region
        %v866 = vld [vmem:[#allocation3] sm:$0xff]
        %v867 = vld [vmem:[#allocation3 + $0x8] sm:$0xff]
        %v868 = vld [vmem:[#allocation3 + $0x10] sm:$0xff]
        %v869 = vld [vmem:[#allocation3 + $0x18] sm:$0xff]
        %v870 = vrcp.pop %v866
        %v871 = vrcp.pop %v867
        %v872 = vrcp.pop %v868
        %v873 = vrcp.pop %v869
        %v874 = vld [vmem:[#allocation4] sm:$0xff]
        %v875 = vld [vmem:[#allocation4 + $0x8] sm:$0xff]
        %v876 = vld [vmem:[#allocation4 + $0x10] sm:$0xff]
        %v877 = vld [vmem:[#allocation4 + $0x18] sm:$0xff]
        %879 = vset.pattern.permute.xlu0 0
        %880 = vperm.xlu0 %879, %v870
        %v881 = vpop.permute.xlu0 %880
        %884 = vset.pattern.permute.xlu0 0
        %885 = vperm.xlu0 %884, %v871
        %v886 = vpop.permute.xlu0 %885
        %889 = vset.pattern.permute.xlu0 0
        %890 = vperm.xlu0 %889, %v872
        %v891 = vpop.permute.xlu0 %890
        %894 = vset.pattern.permute.xlu0 0
        %895 = vperm.xlu0 %894, %v873
        %v896 = vpop.permute.xlu0 %895
        %v898 = vmul.f32 %v874, %v881
        %v899 = vmul.f32 %v875, %v886
        %v900 = vmul.f32 %v876, %v891
        %v901 = vmul.f32 %v877, %v896
        %v902 = vpack.c.bf16 %v898, %v898
        %v903 = vpack.c.bf16 %v899, %v899
        %v904 = vpack.c.bf16 %v900, %v900
        %v905 = vpack.c.bf16 %v901, %v901
        %vm906 = vcmask 257024
        %907 = vst.msk [vmem:[%s296] sm:$0xf] %vm906, %v902
        %908 = vst.msk [vmem:[%s296 + $0x4] sm:$0xf] %vm906, %v903
        %909 = vst.msk [vmem:[%s296 + $0x8] sm:$0xf] %vm906, %v904
        %910 = vst.msk [vmem:[%s296 + $0xc] sm:$0xf] %vm906, %v905
      $region44: #{transformer_forward.48} parent=35 // pred_fallthru
        _
      %p911 = scmp.lt.s32.totalorder %s19, 1
      %s912 = scalar_select %p911, %s19, 1
      %s913 = smul.addr %s912, 4
      %s914 = smul.addr %s913, 4
      %s915 = scalar_lea.vmem %s4, %s914
      // Predicated region
      $region45: #{transformer_forward.48} parent=35 // pred_check
        %p916 = pneg %p155
      $region46: #{transformer_forward.48} parent=35 // pred_check_branch
        %918 = sbr.rel (%p916) target = $region48
      $region47: #{transformer_forward.48} parent=35 // pred_region
        _
      $region48: #{transformer_forward.48} parent=35 // pred_fallthru
        _
    $region36: #{transformer_forward.48} parent=5 // pred_fallthru
      _
    %p919 = scmp.le.s32.totalorder 2, %s10
    // Predicated region
    $region49: #{transformer_forward.48} parent=5 // pred_check
      %p920 = pneg %p919
    $region50: #{transformer_forward.48} parent=5 // pred_check_branch
      %922 = sbr.rel (%p920) target = $region52
    $region51: #{transformer_forward.48} parent=5 // pred_region
      %s923 = ssub.s32 %s10, 2
      // Predicated region
      $region53: #{transformer_forward.48} parent=51 // pred_check
        %p924 = pneg %p161
      $region54: #{transformer_forward.48} parent=51 // pred_check_branch
        %926 = sbr.rel (%p924) target = $region56
      $region55: #{transformer_forward.48} parent=51 // pred_region
        %p927 = scmp.lt.s32.totalorder %s21, 1
        %s928 = scalar_select %p927, %s21, 1
        %s929 = smul.addr %s928, 4
        %s930 = smul.addr %s929, 4
        %s931 = scalar_lea.vmem %s4, %s930
      $region56: #{transformer_forward.48} parent=51 // pred_fallthru
        _
    $region52: #{transformer_forward.48} parent=5 // pred_fallthru
      _
  $region6: #{transformer_forward.48} parent=0 // loop_footer
    %s14 = sadd.s32 1, %s10
  $region7: #{transformer_forward.48} parent=0 // loop_footer_branch
    %9 = sbr.rel target = $region3
  $region8: #{transformer_forward.48} parent=0 // loop_exit
    _

// kernel: transformer_forward.63
$region0: #{transformer_forward.63}
  #allocation0 [shape = 'u32[]', space=smem, size = 0x4, offset = 0x4, fixed_abs, tag = 'smem constant byte address 0x4 - core index']
  #allocation1 [shape = 'u32[144,128]{1,0:T(1,128)}', space=vmem, size = 0x12000, scoped, tag = 'internal scratch']
  %s0 = inlined_call_operand.vmem [shape: bf16[16,128], index: 0, kind: input, shape index: {}]
  %s1 = inlined_call_operand.vmem [shape: bf16[128,256], index: 1, kind: input, shape index: {}]
  %s2 = inlined_call_operand.vmem [shape: f32[1,256], index: 2, kind: input, shape index: {}]
  %s3 = inlined_call_operand.vmem [shape: bf16[16,256], index: 3, kind: output, shape index: {}]
  %s4 = sld [smem:[#allocation0]]
  $region22: #{transformer_forward.63} parent=0
    _
  %s6 = ssub.s32 1, %s4
  %s7 = scalar_select 0, %s6, %s4
  // Predicated region
  $region2: #{transformer_forward.63} parent=0 // pred_check
    _
  $region3: #{transformer_forward.63} parent=0 // pred_check_branch
    %9 = sbr.rel (0) target = $region5
  $region4: #{transformer_forward.63} parent=0 // pred_region
    _
  $region5: #{transformer_forward.63} parent=0 // pred_fallthru
    _
  // Predicated region
  $region6: #{transformer_forward.63} parent=0 // pred_check
    _
  $region7: #{transformer_forward.63} parent=0 // pred_check_branch
    %11 = sbr.rel (0) target = $region9
  $region8: #{transformer_forward.63} parent=0 // pred_region
    _
  $region9: #{transformer_forward.63} parent=0 // pred_fallthru
    _
  // Predicated region
  $region10: #{transformer_forward.63} parent=0 // pred_check
    _
  $region11: #{transformer_forward.63} parent=0 // pred_check_branch
    %13 = sbr.rel (0) target = $region13
  $region12: #{transformer_forward.63} parent=0 // pred_region
    _
  $region13: #{transformer_forward.63} parent=0 // pred_fallthru
    _
  %v15 = vld [vmem:[%s0] sm:$0xf]
  %v16 = vld [vmem:[%s0 + $0x4] sm:$0xf]
  %v17 = vld [vmem:[%s1] sm:$0xff]
  %v18 = vld [vmem:[%s1 + $0x8] sm:$0xff]
  %v19 = vld [vmem:[%s1 + $0x10] sm:$0xff]
  %v20 = vld [vmem:[%s1 + $0x18] sm:$0xff]
  %v21 = vld [vmem:[%s1 + $0x20] sm:$0xff]
  %v22 = vld [vmem:[%s1 + $0x28] sm:$0xff]
  %v23 = vld [vmem:[%s1 + $0x30] sm:$0xff]
  %v24 = vld [vmem:[%s1 + $0x38] sm:$0xff]
  %v25 = vld [vmem:[%s1 + $0x40] sm:$0xff]
  %v26 = vld [vmem:[%s1 + $0x48] sm:$0xff]
  %v27 = vld [vmem:[%s1 + $0x50] sm:$0xff]
  %v28 = vld [vmem:[%s1 + $0x58] sm:$0xff]
  %v29 = vld [vmem:[%s1 + $0x60] sm:$0xff]
  %v30 = vld [vmem:[%s1 + $0x68] sm:$0xff]
  %v31 = vld [vmem:[%s1 + $0x70] sm:$0xff]
  %v32 = vld [vmem:[%s1 + $0x78] sm:$0xff]
  %v33 = vld [vmem:[%s2] sm:$0x3]
  %v35 = vlaneseq
  %v36 = vshrl.u32 %v35, 7
  %v37 = vsub.s32 0, %v36
  %v38 = vrot.slane %v33, %v37
  %v39 = vlaneseq
  %v40 = vshrl.u32 %v39, 7
  %v41 = vsub.s32 1, %v40
  %v42 = vrot.slane %v33, %v41
  %v47 = vunpack.c.l.b16 %v15
  %v48 = vunpack.c.l.b16 %v16
  %v49 = vpack.c.b16 %v48, %v47
  %v67 = vunpack.c.l.b16 %v17
  %v68 = vunpack.c.h.b16 %v17
  %v69 = vunpack.c.l.b16 %v18
  %v70 = vunpack.c.h.b16 %v18
  %v71 = vunpack.c.l.b16 %v19
  %v72 = vunpack.c.h.b16 %v19
  %v73 = vunpack.c.l.b16 %v20
  %v74 = vunpack.c.h.b16 %v20
  %v75 = vunpack.c.l.b16 %v21
  %v76 = vunpack.c.h.b16 %v21
  %v77 = vunpack.c.l.b16 %v22
  %v78 = vunpack.c.h.b16 %v22
  %v79 = vunpack.c.l.b16 %v23
  %v80 = vunpack.c.h.b16 %v23
  %v81 = vunpack.c.l.b16 %v24
  %v82 = vunpack.c.h.b16 %v24
  %v83 = vunpack.c.l.b16 %v25
  %v84 = vunpack.c.h.b16 %v25
  %v85 = vunpack.c.l.b16 %v26
  %v86 = vunpack.c.h.b16 %v26
  %v87 = vunpack.c.l.b16 %v27
  %v88 = vunpack.c.h.b16 %v27
  %v89 = vunpack.c.l.b16 %v28
  %v90 = vunpack.c.h.b16 %v28
  %v91 = vunpack.c.l.b16 %v29
  %v92 = vunpack.c.h.b16 %v29
  %v93 = vunpack.c.l.b16 %v30
  %v94 = vunpack.c.h.b16 %v30
  %v95 = vunpack.c.l.b16 %v31
  %v96 = vunpack.c.h.b16 %v31
  %v97 = vunpack.c.l.b16 %v32
  %v98 = vunpack.c.h.b16 %v32
  %v99 = vpack.c.b16 %v69, %v67
  %v100 = vpack.c.b16 %v70, %v68
  %v101 = vpack.c.b16 %v73, %v71
  %v102 = vpack.c.b16 %v74, %v72
  %v103 = vpack.c.b16 %v77, %v75
  %v104 = vpack.c.b16 %v78, %v76
  %v105 = vpack.c.b16 %v81, %v79
  %v106 = vpack.c.b16 %v82, %v80
  %v107 = vpack.c.b16 %v85, %v83
  %v108 = vpack.c.b16 %v86, %v84
  %v109 = vpack.c.b16 %v89, %v87
  %v110 = vpack.c.b16 %v90, %v88
  %v111 = vpack.c.b16 %v93, %v91
  %v112 = vpack.c.b16 %v94, %v92
  %v113 = vpack.c.b16 %v97, %v95
  %v114 = vpack.c.b16 %v98, %v96
  %131 = vmatprep.subr.bf16.mxu0 %v100
  %132 = vmatpush1.bf16.msra.mxu0 %v99
  %133 = vmatprep.subr.bf16.mxu0 %v102
  %134 = vmatpush1.bf16.msra.mxu0 %v101
  %135 = vmatprep.subr.bf16.mxu0 %v104
  %136 = vmatpush1.bf16.msra.mxu0 %v103
  %137 = vmatprep.subr.bf16.mxu0 %v106
  %138 = vmatpush1.bf16.msra.mxu0 %v105
  %139 = vmatprep.subr.bf16.mxu0 %v108
  %140 = vmatpush1.bf16.msra.mxu0 %v107
  %141 = vmatprep.subr.bf16.mxu0 %v110
  %142 = vmatpush1.bf16.msra.mxu0 %v109
  %143 = vmatprep.subr.bf16.mxu0 %v112
  %144 = vmatpush1.bf16.msra.mxu0 %v111
  %145 = vmatprep.subr.bf16.mxu0 %v114
  %146 = vmatpush1.bf16.msra.mxu0 %v113
  %147 = vmatprep.subr.bf16.mxu0 0
  %148 = vmatpush1.bf16.msra.mxu0 0
  %149 = vmatprep.subr.bf16.mxu0 0
  %150 = vmatpush1.bf16.msra.mxu0 0
  %151 = vmatprep.subr.bf16.mxu0 0
  %152 = vmatpush1.bf16.msra.mxu0 0
  %153 = vmatprep.subr.bf16.mxu0 0
  %154 = vmatpush1.bf16.msra.mxu0 0
  %155 = vmatprep.subr.bf16.mxu0 0
  %156 = vmatpush1.bf16.msra.mxu0 0
  %157 = vmatprep.subr.bf16.mxu0 0
  %158 = vmatpush1.bf16.msra.mxu0 0
  %159 = vmatprep.subr.bf16.mxu0 0
  %160 = vmatpush1.bf16.msra.mxu0 0
  %161 = vmatprep.subr.bf16.mxu0 0
  %162 = vmatpush1.bf16.msra.mxu0 0
  %163 = vmatprep.mubr.bf16.mxu0 0
  %164 = vmatmul.mubr.bf16.gmra.mrb[0].mxu0 %v49
  %v165 = vpop.f32.mrb[0].mxu0
  %v166 = vadd.f32 %v38, %v165
  %v167 = vpop.f32.mrb[0].mxu0
  %v168 = vadd.f32 %v42, %v167
  %v169 = vpop.f32.mrb[0].mxu0
  %v170 = vadd.f32 %v38, %v169
  %v171 = vpop.f32.mrb[0].mxu0
  %v172 = vadd.f32 %v42, %v171
  %173 = vdwg.mxu0
  %v174 = vpack.c.bf16 %v170, %v166
  %v175 = vpack.c.bf16 %v172, %v168
  %v178 = vunpack.c.l.b16 %v174
  %v179 = vunpack.c.l.b16 %v175
  %v180 = vunpack.c.h.b16 %v174
  %v181 = vunpack.c.h.b16 %v175
  %v182 = vpack.c.b16 %v179, %v178
  %v183 = vpack.c.b16 %v181, %v180
  %186 = vst [vmem:[%s3] sm:$0xff] %v182
  %187 = vst [vmem:[%s3 + $0x8] sm:$0xff] %v183
  // Predicated region
  $region14: #{transformer_forward.63} parent=0 // pred_check
    _
  $region15: #{transformer_forward.63} parent=0 // pred_check_branch
    %189 = sbr.rel (0) target = $region17
  $region16: #{transformer_forward.63} parent=0 // pred_region
    _
  $region17: #{transformer_forward.63} parent=0 // pred_fallthru
    _
  // Predicated region
  $region18: #{transformer_forward.63} parent=0 // pred_check
    _
  $region19: #{transformer_forward.63} parent=0 // pred_check_branch
    %191 = sbr.rel (0) target = $region21
  $region20: #{transformer_forward.63} parent=0 // pred_region
    _
  $region21: #{transformer_forward.63} parent=0 // pred_fallthru
    _

// kernel: transformer_forward.39
$region0: #{transformer_forward.39}
  #allocation0 [shape = 'u32[]', space=smem, size = 0x4, offset = 0x4, fixed_abs, tag = 'smem constant byte address 0x4 - core index']
  #allocation1 [shape = 'u32[144,128]{1,0:T(1,128)}', space=vmem, size = 0x12000, scoped, tag = 'internal scratch']
  #allocation2 [shape = 'f32[16,128]{1,0:T(8,128)}', space=vmem, size = 0x2000, scoped, tag = 'scratch operand']
  %s0 = inlined_call_operand.vmem [shape: bf16[16,128], index: 0, kind: input, shape index: {}]
  %s1 = inlined_call_operand.vmem [shape: bf16[128,256], index: 1, kind: input, shape index: {}]
  %s2 = inlined_call_operand.vmem [shape: f32[1,256], index: 2, kind: input, shape index: {}]
  %s3 = inlined_call_operand.vmem [shape: bf16[256,128], index: 3, kind: input, shape index: {}]
  %s4 = inlined_call_operand.vmem [shape: f32[1,128], index: 4, kind: input, shape index: {}]
  %s5 = inlined_call_operand.vmem [shape: bf16[16,128], index: 5, kind: output, shape index: {}]
  %s6 = sld [smem:[#allocation0]]
  $region38: #{transformer_forward.39} parent=0
    _
  %s8 = ssub.s32 1, %s6
  %s9 = scalar_select 0, %s8, %s6
  // Predicated region
  $region2: #{transformer_forward.39} parent=0 // pred_check
    _
  $region3: #{transformer_forward.39} parent=0 // pred_check_branch
    %11 = sbr.rel (0) target = $region5
  $region4: #{transformer_forward.39} parent=0 // pred_region
    _
  $region5: #{transformer_forward.39} parent=0 // pred_fallthru
    _
  // Predicated region
  $region6: #{transformer_forward.39} parent=0 // pred_check
    _
  $region7: #{transformer_forward.39} parent=0 // pred_check_branch
    %13 = sbr.rel (0) target = $region9
  $region8: #{transformer_forward.39} parent=0 // pred_region
    _
  $region9: #{transformer_forward.39} parent=0 // pred_fallthru
    _
  // Predicated region
  $region10: #{transformer_forward.39} parent=0 // pred_check
    _
  $region11: #{transformer_forward.39} parent=0 // pred_check_branch
    %15 = sbr.rel (0) target = $region13
  $region12: #{transformer_forward.39} parent=0 // pred_region
    _
  $region13: #{transformer_forward.39} parent=0 // pred_fallthru
    _
  // Predicated region
  $region14: #{transformer_forward.39} parent=0 // pred_check
    _
  $region15: #{transformer_forward.39} parent=0 // pred_check_branch
    %17 = sbr.rel (0) target = $region17
  $region16: #{transformer_forward.39} parent=0 // pred_region
    _
  $region17: #{transformer_forward.39} parent=0 // pred_fallthru
    _
  // Predicated region
  $region18: #{transformer_forward.39} parent=0 // pred_check
    _
  $region19: #{transformer_forward.39} parent=0 // pred_check_branch
    %19 = sbr.rel (0) target = $region21
  $region20: #{transformer_forward.39} parent=0 // pred_region
    _
  $region21: #{transformer_forward.39} parent=0 // pred_fallthru
    _
  %p21 = scmp.eq.s32.totalorder 0, 0
  // Predicated region
  $region22: #{transformer_forward.39} parent=0 // pred_check
    %p22 = pneg %p21
  $region23: #{transformer_forward.39} parent=0 // pred_check_branch
    %24 = sbr.rel (%p22) target = $region25
  $region24: #{transformer_forward.39} parent=0 // pred_region
    %25 = vst [vmem:[#allocation2] sm:$0xff] 0.0
    %26 = vst [vmem:[#allocation2 + $0x8] sm:$0xff] 0.0
  $region25: #{transformer_forward.39} parent=0 // pred_fallthru
    _
  %v27 = vld [vmem:[%s0] sm:$0xf]
  %v28 = vld [vmem:[%s0 + $0x4] sm:$0xf]
  %v29 = vld [vmem:[%s1] sm:$0xff]
  %v30 = vld [vmem:[%s1 + $0x8] sm:$0xff]
  %v31 = vld [vmem:[%s1 + $0x10] sm:$0xff]
  %v32 = vld [vmem:[%s1 + $0x18] sm:$0xff]
  %v33 = vld [vmem:[%s1 + $0x20] sm:$0xff]
  %v34 = vld [vmem:[%s1 + $0x28] sm:$0xff]
  %v35 = vld [vmem:[%s1 + $0x30] sm:$0xff]
  %v36 = vld [vmem:[%s1 + $0x38] sm:$0xff]
  %v37 = vld [vmem:[%s1 + $0x40] sm:$0xff]
  %v38 = vld [vmem:[%s1 + $0x48] sm:$0xff]
  %v39 = vld [vmem:[%s1 + $0x50] sm:$0xff]
  %v40 = vld [vmem:[%s1 + $0x58] sm:$0xff]
  %v41 = vld [vmem:[%s1 + $0x60] sm:$0xff]
  %v42 = vld [vmem:[%s1 + $0x68] sm:$0xff]
  %v43 = vld [vmem:[%s1 + $0x70] sm:$0xff]
  %v44 = vld [vmem:[%s1 + $0x78] sm:$0xff]
  %v45 = vld [vmem:[%s2] sm:$0x3]
  %v47 = vlaneseq
  %v48 = vshrl.u32 %v47, 7
  %v49 = vsub.s32 0, %v48
  %v50 = vrot.slane %v45, %v49
  %v51 = vlaneseq
  %v52 = vshrl.u32 %v51, 7
  %v53 = vsub.s32 1, %v52
  %v54 = vrot.slane %v45, %v53
  %v59 = vunpack.c.l.b16 %v27
  %v60 = vunpack.c.l.b16 %v28
  %v61 = vpack.c.b16 %v60, %v59
  %v79 = vunpack.c.l.b16 %v29
  %v80 = vunpack.c.h.b16 %v29
  %v81 = vunpack.c.l.b16 %v30
  %v82 = vunpack.c.h.b16 %v30
  %v83 = vunpack.c.l.b16 %v31
  %v84 = vunpack.c.h.b16 %v31
  %v85 = vunpack.c.l.b16 %v32
  %v86 = vunpack.c.h.b16 %v32
  %v87 = vunpack.c.l.b16 %v33
  %v88 = vunpack.c.h.b16 %v33
  %v89 = vunpack.c.l.b16 %v34
  %v90 = vunpack.c.h.b16 %v34
  %v91 = vunpack.c.l.b16 %v35
  %v92 = vunpack.c.h.b16 %v35
  %v93 = vunpack.c.l.b16 %v36
  %v94 = vunpack.c.h.b16 %v36
  %v95 = vunpack.c.l.b16 %v37
  %v96 = vunpack.c.h.b16 %v37
  %v97 = vunpack.c.l.b16 %v38
  %v98 = vunpack.c.h.b16 %v38
  %v99 = vunpack.c.l.b16 %v39
  %v100 = vunpack.c.h.b16 %v39
  %v101 = vunpack.c.l.b16 %v40
  %v102 = vunpack.c.h.b16 %v40
  %v103 = vunpack.c.l.b16 %v41
  %v104 = vunpack.c.h.b16 %v41
  %v105 = vunpack.c.l.b16 %v42
  %v106 = vunpack.c.h.b16 %v42
  %v107 = vunpack.c.l.b16 %v43
  %v108 = vunpack.c.h.b16 %v43
  %v109 = vunpack.c.l.b16 %v44
  %v110 = vunpack.c.h.b16 %v44
  %v111 = vpack.c.b16 %v81, %v79
  %v112 = vpack.c.b16 %v82, %v80
  %v113 = vpack.c.b16 %v85, %v83
  %v114 = vpack.c.b16 %v86, %v84
  %v115 = vpack.c.b16 %v89, %v87
  %v116 = vpack.c.b16 %v90, %v88
  %v117 = vpack.c.b16 %v93, %v91
  %v118 = vpack.c.b16 %v94, %v92
  %v119 = vpack.c.b16 %v97, %v95
  %v120 = vpack.c.b16 %v98, %v96
  %v121 = vpack.c.b16 %v101, %v99
  %v122 = vpack.c.b16 %v102, %v100
  %v123 = vpack.c.b16 %v105, %v103
  %v124 = vpack.c.b16 %v106, %v104
  %v125 = vpack.c.b16 %v109, %v107
  %v126 = vpack.c.b16 %v110, %v108
  %143 = vmatprep.subr.bf16.mxu0 %v112
  %144 = vmatpush1.bf16.msra.mxu0 %v111
  %145 = vmatprep.subr.bf16.mxu0 %v114
  %146 = vmatpush1.bf16.msra.mxu0 %v113
  %147 = vmatprep.subr.bf16.mxu0 %v116
  %148 = vmatpush1.bf16.msra.mxu0 %v115
  %149 = vmatprep.subr.bf16.mxu0 %v118
  %150 = vmatpush1.bf16.msra.mxu0 %v117
  %151 = vmatprep.subr.bf16.mxu0 %v120
  %152 = vmatpush1.bf16.msra.mxu0 %v119
  %153 = vmatprep.subr.bf16.mxu0 %v122
  %154 = vmatpush1.bf16.msra.mxu0 %v121
  %155 = vmatprep.subr.bf16.mxu0 %v124
  %156 = vmatpush1.bf16.msra.mxu0 %v123
  %157 = vmatprep.subr.bf16.mxu0 %v126
  %158 = vmatpush1.bf16.msra.mxu0 %v125
  %159 = vmatprep.subr.bf16.mxu0 0
  %160 = vmatpush1.bf16.msra.mxu0 0
  %161 = vmatprep.subr.bf16.mxu0 0
  %162 = vmatpush1.bf16.msra.mxu0 0
  %163 = vmatprep.subr.bf16.mxu0 0
  %164 = vmatpush1.bf16.msra.mxu0 0
  %165 = vmatprep.subr.bf16.mxu0 0
  %166 = vmatpush1.bf16.msra.mxu0 0
  %167 = vmatprep.subr.bf16.mxu0 0
  %168 = vmatpush1.bf16.msra.mxu0 0
  %169 = vmatprep.subr.bf16.mxu0 0
  %170 = vmatpush1.bf16.msra.mxu0 0
  %171 = vmatprep.subr.bf16.mxu0 0
  %172 = vmatpush1.bf16.msra.mxu0 0
  %173 = vmatprep.subr.bf16.mxu0 0
  %174 = vmatpush1.bf16.msra.mxu0 0
  %175 = vmatprep.mubr.bf16.mxu0 0
  %176 = vmatmul.mubr.bf16.gmra.mrb[0].mxu0 %v61
  %v177 = vpop.f32.mrb[0].mxu0
  %v178 = vadd.f32 %v50, %v177
  %v179 = vpop.f32.mrb[0].mxu0
  %v180 = vadd.f32 %v54, %v179
  %v181 = vpop.f32.mrb[0].mxu0
  %v182 = vadd.f32 %v50, %v181
  %v183 = vpop.f32.mrb[0].mxu0
  %v184 = vadd.f32 %v54, %v183
  %185 = vdwg.mxu0
  %v186 = vmax.f32 %v178, 0.0
  %v187 = vmax.f32 %v180, 0.0
  %v188 = vmax.f32 %v182, 0.0
  %v189 = vmax.f32 %v184, 0.0
  %v190 = vld [vmem:[#allocation2] sm:$0xff]
  %v191 = vld [vmem:[#allocation2 + $0x8] sm:$0xff]
  %v192 = vpack.c.bf16 %v188, %v186
  %v193 = vpack.c.bf16 %v189, %v187
  %v194 = vld [vmem:[%s3] sm:$0xf]
  %v195 = vld [vmem:[%s3 + $0x4] sm:$0xf]
  %v196 = vld [vmem:[%s3 + $0x8] sm:$0xf]
  %v197 = vld [vmem:[%s3 + $0xc] sm:$0xf]
  %v198 = vld [vmem:[%s3 + $0x10] sm:$0xf]
  %v199 = vld [vmem:[%s3 + $0x14] sm:$0xf]
  %v200 = vld [vmem:[%s3 + $0x18] sm:$0xf]
  %v201 = vld [vmem:[%s3 + $0x1c] sm:$0xf]
  %v202 = vld [vmem:[%s3 + $0x20] sm:$0xf]
  %v203 = vld [vmem:[%s3 + $0x24] sm:$0xf]
  %v204 = vld [vmem:[%s3 + $0x28] sm:$0xf]
  %v205 = vld [vmem:[%s3 + $0x2c] sm:$0xf]
  %v206 = vld [vmem:[%s3 + $0x30] sm:$0xf]
  %v207 = vld [vmem:[%s3 + $0x34] sm:$0xf]
  %v208 = vld [vmem:[%s3 + $0x38] sm:$0xf]
  %v209 = vld [vmem:[%s3 + $0x3c] sm:$0xf]
  %v210 = vld [vmem:[%s3 + $0x40] sm:$0xf]
  %v211 = vld [vmem:[%s3 + $0x44] sm:$0xf]
  %v212 = vld [vmem:[%s3 + $0x48] sm:$0xf]
  %v213 = vld [vmem:[%s3 + $0x4c] sm:$0xf]
  %v214 = vld [vmem:[%s3 + $0x50] sm:$0xf]
  %v215 = vld [vmem:[%s3 + $0x54] sm:$0xf]
  %v216 = vld [vmem:[%s3 + $0x58] sm:$0xf]
  %v217 = vld [vmem:[%s3 + $0x5c] sm:$0xf]
  %v218 = vld [vmem:[%s3 + $0x60] sm:$0xf]
  %v219 = vld [vmem:[%s3 + $0x64] sm:$0xf]
  %v220 = vld [vmem:[%s3 + $0x68] sm:$0xf]
  %v221 = vld [vmem:[%s3 + $0x6c] sm:$0xf]
  %v222 = vld [vmem:[%s3 + $0x70] sm:$0xf]
  %v223 = vld [vmem:[%s3 + $0x74] sm:$0xf]
  %v224 = vld [vmem:[%s3 + $0x78] sm:$0xf]
  %v225 = vld [vmem:[%s3 + $0x7c] sm:$0xf]
  %v258 = vunpack.c.l.b16 %v194
  %v259 = vunpack.c.l.b16 %v195
  %v260 = vunpack.c.l.b16 %v196
  %v261 = vunpack.c.l.b16 %v197
  %v262 = vunpack.c.l.b16 %v198
  %v263 = vunpack.c.l.b16 %v199
  %v264 = vunpack.c.l.b16 %v200
  %v265 = vunpack.c.l.b16 %v201
  %v266 = vunpack.c.l.b16 %v202
  %v267 = vunpack.c.l.b16 %v203
  %v268 = vunpack.c.l.b16 %v204
  %v269 = vunpack.c.l.b16 %v205
  %v270 = vunpack.c.l.b16 %v206
  %v271 = vunpack.c.l.b16 %v207
  %v272 = vunpack.c.l.b16 %v208
  %v273 = vunpack.c.l.b16 %v209
  %v274 = vunpack.c.l.b16 %v210
  %v275 = vunpack.c.l.b16 %v211
  %v276 = vunpack.c.l.b16 %v212
  %v277 = vunpack.c.l.b16 %v213
  %v278 = vunpack.c.l.b16 %v214
  %v279 = vunpack.c.l.b16 %v215
  %v280 = vunpack.c.l.b16 %v216
  %v281 = vunpack.c.l.b16 %v217
  %v282 = vunpack.c.l.b16 %v218
  %v283 = vunpack.c.l.b16 %v219
  %v284 = vunpack.c.l.b16 %v220
  %v285 = vunpack.c.l.b16 %v221
  %v286 = vunpack.c.l.b16 %v222
  %v287 = vunpack.c.l.b16 %v223
  %v288 = vunpack.c.l.b16 %v224
  %v289 = vunpack.c.l.b16 %v225
  %v290 = vpack.c.b16 %v259, %v258
  %v291 = vpack.c.b16 %v261, %v260
  %v292 = vpack.c.b16 %v263, %v262
  %v293 = vpack.c.b16 %v265, %v264
  %v294 = vpack.c.b16 %v267, %v266
  %v295 = vpack.c.b16 %v269, %v268
  %v296 = vpack.c.b16 %v271, %v270
  %v297 = vpack.c.b16 %v273, %v272
  %v298 = vpack.c.b16 %v275, %v274
  %v299 = vpack.c.b16 %v277, %v276
  %v300 = vpack.c.b16 %v279, %v278
  %v301 = vpack.c.b16 %v281, %v280
  %v302 = vpack.c.b16 %v283, %v282
  %v303 = vpack.c.b16 %v285, %v284
  %v304 = vpack.c.b16 %v287, %v286
  %v305 = vpack.c.b16 %v289, %v288
  %322 = vmatprep.subr.bf16.mxu0 0
  %323 = vmatpush1.bf16.msra.mxu0 %v290
  %324 = vmatprep.subr.bf16.mxu0 0
  %325 = vmatpush1.bf16.msra.mxu0 %v291
  %326 = vmatprep.subr.bf16.mxu0 0
  %327 = vmatpush1.bf16.msra.mxu0 %v292
  %328 = vmatprep.subr.bf16.mxu0 0
  %329 = vmatpush1.bf16.msra.mxu0 %v293
  %330 = vmatprep.subr.bf16.mxu0 0
  %331 = vmatpush1.bf16.msra.mxu0 %v294
  %332 = vmatprep.subr.bf16.mxu0 0
  %333 = vmatpush1.bf16.msra.mxu0 %v295
  %334 = vmatprep.subr.bf16.mxu0 0
  %335 = vmatpush1.bf16.msra.mxu0 %v296
  %336 = vmatprep.subr.bf16.mxu0 0
  %337 = vmatpush1.bf16.msra.mxu0 %v297
  %338 = vmatprep.subr.bf16.mxu0 0
  %339 = vmatpush1.bf16.msra.mxu0 %v298
  %340 = vmatprep.subr.bf16.mxu0 0
  %341 = vmatpush1.bf16.msra.mxu0 %v299
  %342 = vmatprep.subr.bf16.mxu0 0
  %343 = vmatpush1.bf16.msra.mxu0 %v300
  %344 = vmatprep.subr.bf16.mxu0 0
  %345 = vmatpush1.bf16.msra.mxu0 %v301
  %346 = vmatprep.subr.bf16.mxu0 0
  %347 = vmatpush1.bf16.msra.mxu0 %v302
  %348 = vmatprep.subr.bf16.mxu0 0
  %349 = vmatpush1.bf16.msra.mxu0 %v303
  %350 = vmatprep.subr.bf16.mxu0 0
  %351 = vmatpush1.bf16.msra.mxu0 %v304
  %352 = vmatprep.subr.bf16.mxu0 0
  %353 = vmatpush1.bf16.msra.mxu0 %v305
  %354 = vmatprep.mubr.bf16.mxu0 %v193
  %355 = vmatmul.mubr.bf16.gmra.mrb[0].mxu0 %v192
  %v356 = vpop.f32.mrb[0].mxu0
  %v357 = vadd.f32 0.0, %v356
  %v358 = vpop.f32.mrb[0].mxu0
  %v359 = vpop.f32.mrb[0].mxu0
  %v360 = vadd.f32 0.0, %v359
  %v361 = vpop.f32.mrb[0].mxu0
  %362 = vdwg.mxu0
  %v363 = vadd.f32 %v190, %v357
  %v364 = vadd.f32 %v191, %v360
  %365 = vst [vmem:[#allocation2] sm:$0xff] %v363
  %366 = vst [vmem:[#allocation2 + $0x8] sm:$0xff] %v364
  // Predicated region
  $region26: #{transformer_forward.39} parent=0 // pred_check
    %p367 = pneg %p21
  $region27: #{transformer_forward.39} parent=0 // pred_check_branch
    %369 = sbr.rel (%p367) target = $region29
  $region28: #{transformer_forward.39} parent=0 // pred_region
    %v370 = vld [vmem:[#allocation2] sm:$0xff]
    %v371 = vld [vmem:[#allocation2 + $0x8] sm:$0xff]
    %v372 = vld [vmem:[%s4] sm:$0x1]
    %v374 = vlaneseq
    %v375 = vshrl.u32 %v374, 7
    %v376 = vsub.s32 0, %v375
    %v377 = vrot.slane %v372, %v376
    %v379 = vadd.f32 %v370, %v377
    %v380 = vadd.f32 %v371, %v377
    %v381 = vpack.c.bf16 %v380, %v379
    %v383 = vunpack.c.l.b16 %v381
    %v384 = vunpack.c.h.b16 %v381
    %v385 = vpack.c.b16 %v383, %v383
    %v386 = vpack.c.b16 %v384, %v384
    %389 = vst [vmem:[%s5] sm:$0xf] %v385
    %390 = vst [vmem:[%s5 + $0x4] sm:$0xf] %v386
  $region29: #{transformer_forward.39} parent=0 // pred_fallthru
    _
  // Predicated region
  $region30: #{transformer_forward.39} parent=0 // pred_check
    _
  $region31: #{transformer_forward.39} parent=0 // pred_check_branch
    %392 = sbr.rel (0) target = $region33
  $region32: #{transformer_forward.39} parent=0 // pred_region
    _
  $region33: #{transformer_forward.39} parent=0 // pred_fallthru
    _
  // Predicated region
  $region34: #{transformer_forward.39} parent=0 // pred_check
    _
  $region35: #{transformer_forward.39} parent=0 // pred_check_branch
    %394 = sbr.rel (0) target = $region37
  $region36: #{transformer_forward.39} parent=0 // pred_region
    _
  $region37: #{transformer_forward.39} parent=0 // pred_fallthru
    _

// kernel: transformer_forward.36
$region0: #{transformer_forward.36}
  #allocation0 [shape = 'u32[]', space=smem, size = 0x4, offset = 0x4, fixed_abs, tag = 'smem constant byte address 0x4 - core index']
  #allocation1 [shape = 'u32[144,128]{1,0:T(1,128)}', space=vmem, size = 0x12000, scoped, tag = 'internal scratch']
  #allocation2 [shape = 'f32[4,8,1]{2,1,0:T(8,128)}', space=vmem, size = 0x4000, scoped, tag = 'scratch operand']
  #allocation3 [shape = 'f32[4,8,1]{2,1,0:T(8,128)}', space=vmem, size = 0x4000, scoped, tag = 'scratch operand']
  #allocation4 [shape = 'f32[4,8,32]{2,1,0:T(8,128)}', space=vmem, size = 0x4000, scoped, tag = 'scratch operand']
  %s0 = inlined_call_operand.vmem [shape: bf16[2,4,8,32], index: 0, kind: input, shape index: {}]
  %s1 = inlined_call_operand.vmem [shape: bf16[2,4,8,32], index: 1, kind: input, shape index: {}]
  %s2 = inlined_call_operand.vmem [shape: bf16[2,4,8,32], index: 2, kind: input, shape index: {}]
  %s3 = inlined_call_operand.vmem [shape: f32[2,1,8], index: 3, kind: input, shape index: {}]
  %s4 = inlined_call_operand.vmem [shape: bf16[2,4,8,32], index: 4, kind: output, shape index: {}]
  %s5 = sld [smem:[#allocation0]]
  $region57: #{transformer_forward.36} parent=0
    _
  %s7 = ssub.s32 1, %s5
  %s8 = scalar_select 0, %s7, %s5
  loop: start=0, step=1, limit=4
  $region2: #{transformer_forward.36} parent=0 // loop_pre_header
    _
  $region3: #{transformer_forward.36} parent=0 // loop_header
    %s10 = sphi 0, %s14
    %p11 = scmp.ge.s32.totalorder %s10, 4
    %s17 = sphi 0, %s29
    %s18 = sphi 0, %s25
    %s19 = sphi 0, %s17
    %s20 = sphi 0, %s18
    %s21 = sphi 0, %s19
    %s22 = sphi 0, %s20
    %s32 = sphi 0, %s34
    %s35 = sphi 0, %s32
    %s36 = sphi 0, %s35
    %s52 = sphi 0, %s36
    %s60 = sphi 0, %s62
    %s63 = sphi 0, %s60
    %s64 = sphi 0, %s63
    %s80 = sphi 0, %s64
    %s88 = sphi 0, %s90
    %s91 = sphi 0, %s88
    %s92 = sphi 0, %s91
    %s108 = sphi 0, %s92
    %s116 = sphi 0, %s118
    %s119 = sphi 0, %s116
    %s120 = sphi 0, %s119
    %s136 = sphi 0, %s120
    %s142 = sphi 0, %s144
    %s145 = sphi 0, %s142
    %s146 = sphi 0, %s145
    %s162 = sphi 0, %s146
  $region4: #{transformer_forward.36} parent=0 // loop_header_branch
    %13 = sbr.rel (%p11) target = $region8
  $region5: #{transformer_forward.36} parent=0 // loop_body
    %s15 = ssub.s32 %s10, 1
    %s16 = ssub.s32 %s10, 2
    %s23 = sadd.s32 1, %s18
    %p24 = scmp.ge.s32.totalorder %s23, 1
    %s25 = scalar_select %p24, 0, %s23
    %s26 = sadd.s32 1, %s17
    %s27 = scalar_select %p24, %s26, %s17
    %p28 = scmp.ge.s32.totalorder %s27, 2
    %s29 = scalar_select %p28, 0, %s27
    %s30 = ssub.s32 %s17, %s29
    %p31 = scmp.eq.s32.totalorder %s30, 0
    %s33 = sadd.s32 %s32, 1
    %s34 = scalar_select %p31, %s32, %s33
    %p37 = pneg %p31
    %p38 = scmp.eq.s32.totalorder %s10, 1
    %p39 = por %p37, %p38
    %p40 = scmp.ne.s32.totalorder %s32, %s35
    %p41 = scmp.eq.s32.totalorder %s10, 0
    %p42 = por %p40, %p41
    %p43 = scmp.ne.s32.totalorder %s32, %s35
    %p44 = scmp.eq.s32.totalorder %s15, 1
    %p45 = por %p43, %p44
    %p46 = scmp.ne.s32.totalorder %s35, %s36
    %p47 = scmp.eq.s32.totalorder %s15, 0
    %p48 = por %p46, %p47
    %p49 = scmp.ne.s32.totalorder %s35, %s36
    %p50 = scmp.eq.s32.totalorder %s16, 1
    %p51 = por %p49, %p50
    %p53 = scmp.ne.s32.totalorder %s36, %s52
    %p54 = scmp.eq.s32.totalorder %s16, 0
    %p55 = por %p53, %p54
    %s56 = ssub.s32 %s17, %s29
    %s57 = ssub.s32 %s18, %s25
    %s58 = sor.u32 %s56, %s57
    %p59 = scmp.eq.s32.totalorder %s58, 0
    %s61 = sadd.s32 %s60, 1
    %s62 = scalar_select %p59, %s60, %s61
    %p65 = pneg %p59
    %p66 = scmp.eq.s32.totalorder %s10, 1
    %p67 = por %p65, %p66
    %p68 = scmp.ne.s32.totalorder %s60, %s63
    %p69 = scmp.eq.s32.totalorder %s10, 0
    %p70 = por %p68, %p69
    %p71 = scmp.ne.s32.totalorder %s60, %s63
    %p72 = scmp.eq.s32.totalorder %s15, 1
    %p73 = por %p71, %p72
    %p74 = scmp.ne.s32.totalorder %s63, %s64
    %p75 = scmp.eq.s32.totalorder %s15, 0
    %p76 = por %p74, %p75
    %p77 = scmp.ne.s32.totalorder %s63, %s64
    %p78 = scmp.eq.s32.totalorder %s16, 1
    %p79 = por %p77, %p78
    %p81 = scmp.ne.s32.totalorder %s64, %s80
    %p82 = scmp.eq.s32.totalorder %s16, 0
    %p83 = por %p81, %p82
    %s84 = ssub.s32 %s17, %s29
    %s85 = ssub.s32 %s18, %s25
    %s86 = sor.u32 %s84, %s85
    %p87 = scmp.eq.s32.totalorder %s86, 0
    %s89 = sadd.s32 %s88, 1
    %s90 = scalar_select %p87, %s88, %s89
    %p93 = pneg %p87
    %p94 = scmp.eq.s32.totalorder %s10, 1
    %p95 = por %p93, %p94
    %p96 = scmp.ne.s32.totalorder %s88, %s91
    %p97 = scmp.eq.s32.totalorder %s10, 0
    %p98 = por %p96, %p97
    %p99 = scmp.ne.s32.totalorder %s88, %s91
    %p100 = scmp.eq.s32.totalorder %s15, 1
    %p101 = por %p99, %p100
    %p102 = scmp.ne.s32.totalorder %s91, %s92
    %p103 = scmp.eq.s32.totalorder %s15, 0
    %p104 = por %p102, %p103
    %p105 = scmp.ne.s32.totalorder %s91, %s92
    %p106 = scmp.eq.s32.totalorder %s16, 1
    %p107 = por %p105, %p106
    %p109 = scmp.ne.s32.totalorder %s92, %s108
    %p110 = scmp.eq.s32.totalorder %s16, 0
    %p111 = por %p109, %p110
    %s112 = ssub.s32 %s17, %s29
    %s113 = ssub.s32 %s18, %s25
    %s114 = sor.u32 %s112, %s113
    %p115 = scmp.eq.s32.totalorder %s114, 0
    %s117 = sadd.s32 %s116, 1
    %s118 = scalar_select %p115, %s116, %s117
    %p121 = pneg %p115
    %p122 = scmp.eq.s32.totalorder %s10, 1
    %p123 = por %p121, %p122
    %p124 = scmp.ne.s32.totalorder %s116, %s119
    %p125 = scmp.eq.s32.totalorder %s10, 0
    %p126 = por %p124, %p125
    %p127 = scmp.ne.s32.totalorder %s116, %s119
    %p128 = scmp.eq.s32.totalorder %s15, 1
    %p129 = por %p127, %p128
    %p130 = scmp.ne.s32.totalorder %s119, %s120
    %p131 = scmp.eq.s32.totalorder %s15, 0
    %p132 = por %p130, %p131
    %p133 = scmp.ne.s32.totalorder %s119, %s120
    %p134 = scmp.eq.s32.totalorder %s16, 1
    %p135 = por %p133, %p134
    %p137 = scmp.ne.s32.totalorder %s120, %s136
    %p138 = scmp.eq.s32.totalorder %s16, 0
    %p139 = por %p137, %p138
    %s140 = ssub.s32 %s17, %s29
    %p141 = scmp.eq.s32.totalorder %s140, 0
    %s143 = sadd.s32 %s142, 1
    %s144 = scalar_select %p141, %s142, %s143
    %p147 = pneg %p141
    %p148 = scmp.eq.s32.totalorder %s10, 1
    %p149 = por %p147, %p148
    %p150 = scmp.ne.s32.totalorder %s142, %s145
    %p151 = scmp.eq.s32.totalorder %s10, 0
    %p152 = por %p150, %p151
    %p153 = scmp.ne.s32.totalorder %s142, %s145
    %p154 = scmp.eq.s32.totalorder %s15, 1
    %p155 = por %p153, %p154
    %p156 = scmp.ne.s32.totalorder %s145, %s146
    %p157 = scmp.eq.s32.totalorder %s15, 0
    %p158 = por %p156, %p157
    %p159 = scmp.ne.s32.totalorder %s145, %s146
    %p160 = scmp.eq.s32.totalorder %s16, 1
    %p161 = por %p159, %p160
    %p163 = scmp.ne.s32.totalorder %s146, %s162
    %p164 = scmp.eq.s32.totalorder %s16, 0
    %p165 = por %p163, %p164
    %p166 = scmp.le.s32.totalorder 1, %s10
    %p167 = scmp.lt.s32.totalorder %s10, 3
    %p168 = pnand %p166, %p167
    %p169 = pneg %p168
    // Predicated region
    $region9: #{transformer_forward.36} parent=5 // pred_check
      _
    $region10: #{transformer_forward.36} parent=5 // pred_check_branch
      %171 = sbr.rel (%p168) target = $region12
    $region11: #{transformer_forward.36} parent=5 // pred_region
      %s172 = ssub.s32 %s10, 1
    $region12: #{transformer_forward.36} parent=5 // pred_fallthru
      _
    %p173 = scmp.lt.s32.totalorder %s10, 2
    // Predicated region
    $region13: #{transformer_forward.36} parent=5 // pred_check
      %p174 = pneg %p173
    $region14: #{transformer_forward.36} parent=5 // pred_check_branch
      %176 = sbr.rel (%p174) target = $region16
    $region15: #{transformer_forward.36} parent=5 // pred_region
      // Predicated region
      $region17: #{transformer_forward.36} parent=15 // pred_check
        %p177 = pneg %p42
      $region18: #{transformer_forward.36} parent=15 // pred_check_branch
        %179 = sbr.rel (%p177) target = $region20
      $region19: #{transformer_forward.36} parent=15 // pred_region
        %p180 = scmp.lt.s32.totalorder %s17, 1
        %s181 = scalar_select %p180, %s17, 1
        %s182 = smul.addr %s181, 4
        %s183 = smul.addr %s182, 4
        %s184 = scalar_lea.vmem %s0, %s183
      $region20: #{transformer_forward.36} parent=15 // pred_fallthru
        _
      // Predicated region
      $region21: #{transformer_forward.36} parent=15 // pred_check
        %p185 = pneg %p70
      $region22: #{transformer_forward.36} parent=15 // pred_check_branch
        %187 = sbr.rel (%p185) target = $region24
      $region23: #{transformer_forward.36} parent=15 // pred_region
        %p188 = scmp.lt.s32.totalorder %s17, 1
        %s189 = scalar_select %p188, %s17, 1
        %p190 = scmp.lt.s32.totalorder %s18, 0
        %s191 = scalar_select %p190, %s18, 0
        %s192 = smul.addr %s189, 4
        %s193 = sadd.s32 %s191, %s192
        %s194 = smul.addr %s193, 4
        %s195 = scalar_lea.vmem %s1, %s194
      $region24: #{transformer_forward.36} parent=15 // pred_fallthru
        _
      // Predicated region
      $region25: #{transformer_forward.36} parent=15 // pred_check
        %p196 = pneg %p98
      $region26: #{transformer_forward.36} parent=15 // pred_check_branch
        %198 = sbr.rel (%p196) target = $region28
      $region27: #{transformer_forward.36} parent=15 // pred_region
        %p199 = scmp.lt.s32.totalorder %s17, 1
        %s200 = scalar_select %p199, %s17, 1
        %p201 = scmp.lt.s32.totalorder %s18, 0
        %s202 = scalar_select %p201, %s18, 0
        %s203 = smul.addr %s200, 4
        %s204 = sadd.s32 %s202, %s203
        %s205 = smul.addr %s204, 4
        %s206 = scalar_lea.vmem %s2, %s205
      $region28: #{transformer_forward.36} parent=15 // pred_fallthru
        _
      // Predicated region
      $region29: #{transformer_forward.36} parent=15 // pred_check
        %p207 = pneg %p126
      $region30: #{transformer_forward.36} parent=15 // pred_check_branch
        %209 = sbr.rel (%p207) target = $region32
      $region31: #{transformer_forward.36} parent=15 // pred_region
        %p210 = scmp.lt.s32.totalorder %s17, 1
        %s211 = scalar_select %p210, %s17, 1
        %p212 = scmp.lt.s32.totalorder %s18, 0
        %s213 = scalar_select %p212, %s18, 0
        %s214 = sadd.s32 %s213, %s211
        %s215 = scalar_lea.vmem %s3, %s214
      $region32: #{transformer_forward.36} parent=15 // pred_fallthru
        _
    $region16: #{transformer_forward.36} parent=5 // pred_fallthru
      _
    %p216 = scmp.le.s32.totalorder 1, %s10
    %p217 = scmp.lt.s32.totalorder %s10, 3
    %p218 = pnand %p216, %p217
    %p219 = pneg %p218
    // Predicated region
    $region33: #{transformer_forward.36} parent=5 // pred_check
      _
    $region34: #{transformer_forward.36} parent=5 // pred_check_branch
      %221 = sbr.rel (%p218) target = $region36
    $region35: #{transformer_forward.36} parent=5 // pred_region
      %s222 = ssub.s32 %s10, 1
      %p223 = scmp.lt.s32.totalorder %s19, 1
      %s224 = scalar_select %p223, %s19, 1
      %s225 = smul.addr %s224, 4
      %s226 = smul.addr %s225, 4
      %s227 = scalar_lea.vmem %s0, %s226
      %p228 = pneg %p48
      %p229 = pneg %p45
      %p230 = scmp.lt.s32.totalorder %s19, 1
      %s231 = scalar_select %p230, %s19, 1
      %p232 = scmp.lt.s32.totalorder %s20, 0
      %s233 = scalar_select %p232, %s20, 0
      %s234 = smul.addr %s231, 4
      %s235 = sadd.s32 %s233, %s234
      %s236 = smul.addr %s235, 4
      %s237 = scalar_lea.vmem %s1, %s236
      %p238 = pneg %p76
      %p239 = pneg %p73
      %p240 = scmp.lt.s32.totalorder %s19, 1
      %s241 = scalar_select %p240, %s19, 1
      %p242 = scmp.lt.s32.totalorder %s20, 0
      %s243 = scalar_select %p242, %s20, 0
      %s244 = smul.addr %s241, 4
      %s245 = sadd.s32 %s243, %s244
      %s246 = smul.addr %s245, 4
      %s247 = scalar_lea.vmem %s2, %s246
      %p248 = pneg %p104
      %p249 = pneg %p101
      %p250 = scmp.lt.s32.totalorder %s19, 1
      %s251 = scalar_select %p250, %s19, 1
      %p252 = scmp.lt.s32.totalorder %s20, 0
      %s253 = scalar_select %p252, %s20, 0
      %s254 = sadd.s32 %s253, %s251
      %s255 = scalar_lea.vmem %s3, %s254
      %p256 = pneg %p132
      %p257 = pneg %p129
      %p258 = pneg %p158
      %p259 = pneg %p155
      %p260 = scmp.lt.s32.totalorder %s19, 1
      %s261 = scalar_select %p260, %s19, 1
      %s262 = smul.addr %s261, 4
      %s263 = smul.addr %s262, 4
      %s264 = scalar_lea.vmem %s4, %s263
      %p265 = scmp.lt.s32.totalorder %s19, 1
      %s266 = scalar_select %p265, %s19, 1
      %s267 = smul.addr %s266, 4
      %s268 = smul.addr %s267, 4
      %s269 = scalar_lea.vmem %s0, %s268
      %p270 = scmp.lt.s32.totalorder %s19, 1
      %s271 = scalar_select %p270, %s19, 1
      %p272 = scmp.lt.s32.totalorder %s20, 0
      %s273 = scalar_select %p272, %s20, 0
      %s274 = smul.addr %s271, 4
      %s275 = sadd.s32 %s273, %s274
      %s276 = smul.addr %s275, 4
      %s277 = scalar_lea.vmem %s1, %s276
      %p278 = scmp.lt.s32.totalorder %s19, 1
      %s279 = scalar_select %p278, %s19, 1
      %p280 = scmp.lt.s32.totalorder %s20, 0
      %s281 = scalar_select %p280, %s20, 0
      %s282 = smul.addr %s279, 4
      %s283 = sadd.s32 %s281, %s282
      %s284 = smul.addr %s283, 4
      %s285 = scalar_lea.vmem %s2, %s284
      %p286 = scmp.lt.s32.totalorder %s19, 1
      %s287 = scalar_select %p286, %s19, 1
      %p288 = scmp.lt.s32.totalorder %s20, 0
      %s289 = scalar_select %p288, %s20, 0
      %s290 = sadd.s32 %s289, %s287
      %s291 = scalar_lea.vmem %s3, %s290
      %p292 = scmp.lt.s32.totalorder %s19, 1
      %s293 = scalar_select %p292, %s19, 1
      %s294 = smul.addr %s293, 4
      %s295 = smul.addr %s294, 4
      %s296 = scalar_lea.vmem %s4, %s295
      %p298 = scmp.eq.s32.totalorder %s20, 0
      // Predicated region
      $region37: #{transformer_forward.36} parent=35 // pred_check
        %p299 = pneg %p298
      $region38: #{transformer_forward.36} parent=35 // pred_check_branch
        %301 = sbr.rel (%p299) target = $region40
      $region39: #{transformer_forward.36} parent=35 // pred_region
        %vm302 = vcmask 7168
        %303 = vst.msk [vmem:[#allocation2] sm:$0xff] %vm302, -inf
        %304 = vst.msk [vmem:[#allocation2 + $0x8] sm:$0xff] %vm302, -inf
        %305 = vst.msk [vmem:[#allocation2 + $0x10] sm:$0xff] %vm302, -inf
        %306 = vst.msk [vmem:[#allocation2 + $0x18] sm:$0xff] %vm302, -inf
        %307 = vst.msk [vmem:[#allocation3] sm:$0xff] %vm302, 0.0
        %308 = vst.msk [vmem:[#allocation3 + $0x8] sm:$0xff] %vm302, 0.0
        %309 = vst.msk [vmem:[#allocation3 + $0x10] sm:$0xff] %vm302, 0.0
        %310 = vst.msk [vmem:[#allocation3 + $0x18] sm:$0xff] %vm302, 0.0
        %vm311 = vcmask 261120
        %312 = vst.msk [vmem:[#allocation4] sm:$0xff] %vm311, 0.0
        %313 = vst.msk [vmem:[#allocation4 + $0x8] sm:$0xff] %vm311, 0.0
        %314 = vst.msk [vmem:[#allocation4 + $0x10] sm:$0xff] %vm311, 0.0
        %315 = vst.msk [vmem:[#allocation4 + $0x18] sm:$0xff] %vm311, 0.0
      $region40: #{transformer_forward.36} parent=35 // pred_fallthru
        _
      %v316 = vld [vmem:[%s269] sm:$0xf]
      %v317 = vld [vmem:[%s269 + $0x4] sm:$0xf]
      %v318 = vld [vmem:[%s269 + $0x8] sm:$0xf]
      %v319 = vld [vmem:[%s269 + $0xc] sm:$0xf]
      %v320 = vld [vmem:[%s277] sm:$0xf]
      %v321 = vld [vmem:[%s277 + $0x4] sm:$0xf]
      %v322 = vld [vmem:[%s277 + $0x8] sm:$0xf]
      %v323 = vld [vmem:[%s277 + $0xc] sm:$0xf]
      %v324 = vld [vmem:[%s285] sm:$0xf]
      %v325 = vld [vmem:[%s285 + $0x4] sm:$0xf]
      %v326 = vld [vmem:[%s285 + $0x8] sm:$0xf]
      %v327 = vld [vmem:[%s285 + $0xc] sm:$0xf]
      %vm328 = vcmask 261120
      %v330 = vsel %vm328, %v316, 0
      %v333 = vsel %vm328, %v320, 0
      %335 = vmatprep.subr.bf16.mxu0 0
      %336 = vmatpush1.bf16.xpose.msra.mxu0 %v333
      %337 = vmatprep.subr.bf16.mxu0 0
      %338 = vmatpush1.bf16.xpose.msra.mxu0 0
      %339 = vmatprep.subr.bf16.mxu0 0
      %340 = vmatpush1.bf16.xpose.msra.mxu0 0
      %341 = vmatprep.subr.bf16.mxu0 0
      %342 = vmatpush1.bf16.xpose.msra.mxu0 0
      %343 = vmatprep.subr.bf16.mxu0 0
      %344 = vmatpush1.bf16.xpose.msra.mxu0 0
      %345 = vmatprep.subr.bf16.mxu0 0
      %346 = vmatpush1.bf16.xpose.msra.mxu0 0
      %347 = vmatprep.subr.bf16.mxu0 0
      %348 = vmatpush1.bf16.xpose.msra.mxu0 0
      %349 = vmatprep.subr.bf16.mxu0 0
      %350 = vmatpush1.bf16.xpose.msra.mxu0 0
      %351 = vmatprep.subr.bf16.mxu0 0
      %352 = vmatpush1.bf16.xpose.msra.mxu0 0
      %353 = vmatprep.subr.bf16.mxu0 0
      %354 = vmatpush1.bf16.xpose.msra.mxu0 0
      %355 = vmatprep.subr.bf16.mxu0 0
      %356 = vmatpush1.bf16.xpose.msra.mxu0 0
      %357 = vmatprep.subr.bf16.mxu0 0
      %358 = vmatpush1.bf16.xpose.msra.mxu0 0
      %359 = vmatprep.subr.bf16.mxu0 0
      %360 = vmatpush1.bf16.xpose.msra.mxu0 0
      %361 = vmatprep.subr.bf16.mxu0 0
      %362 = vmatpush1.bf16.xpose.msra.mxu0 0
      %363 = vmatprep.subr.bf16.mxu0 0
      %364 = vmatpush1.bf16.xpose.msra.mxu0 0
      %365 = vmatprep.subr.bf16.mxu0 0
      %366 = vmatpush1.bf16.xpose.msra.mxu0 0
      %367 = vmatprep.mubr.bf16.mxu0 0
      %368 = vmatmul.mubr.bf16.gmra.mrb[0].mxu0 %v330
      %v369 = vpop.f32.mrb[0].mxu0
      %v370 = vadd.f32 0.0, %v369
      %v371 = vpop.f32.mrb[0].mxu0
      %v372 = vpop.f32.mrb[0].mxu0
      %v373 = vpop.f32.mrb[0].mxu0
      %374 = vdwg.mxu0
      %v376 = vsel %vm328, %v317, 0
      %v379 = vsel %vm328, %v321, 0
      %381 = vmatprep.subr.bf16.mxu0 0
      %382 = vmatpush1.bf16.xpose.msra.mxu0 %v379
      %383 = vmatprep.subr.bf16.mxu0 0
      %384 = vmatpush1.bf16.xpose.msra.mxu0 0
      %385 = vmatprep.subr.bf16.mxu0 0
      %386 = vmatpush1.bf16.xpose.msra.mxu0 0
      %387 = vmatprep.subr.bf16.mxu0 0
      %388 = vmatpush1.bf16.xpose.msra.mxu0 0
      %389 = vmatprep.subr.bf16.mxu0 0
      %390 = vmatpush1.bf16.xpose.msra.mxu0 0
      %391 = vmatprep.subr.bf16.mxu0 0
      %392 = vmatpush1.bf16.xpose.msra.mxu0 0
      %393 = vmatprep.subr.bf16.mxu0 0
      %394 = vmatpush1.bf16.xpose.msra.mxu0 0
      %395 = vmatprep.subr.bf16.mxu0 0
      %396 = vmatpush1.bf16.xpose.msra.mxu0 0
      %397 = vmatprep.subr.bf16.mxu0 0
      %398 = vmatpush1.bf16.xpose.msra.mxu0 0
      %399 = vmatprep.subr.bf16.mxu0 0
      %400 = vmatpush1.bf16.xpose.msra.mxu0 0
      %401 = vmatprep.subr.bf16.mxu0 0
      %402 = vmatpush1.bf16.xpose.msra.mxu0 0
      %403 = vmatprep.subr.bf16.mxu0 0
      %404 = vmatpush1.bf16.xpose.msra.mxu0 0
      %405 = vmatprep.subr.bf16.mxu0 0
      %406 = vmatpush1.bf16.xpose.msra.mxu0 0
      %407 = vmatprep.subr.bf16.mxu0 0
      %408 = vmatpush1.bf16.xpose.msra.mxu0 0
      %409 = vmatprep.subr.bf16.mxu0 0
      %410 = vmatpush1.bf16.xpose.msra.mxu0 0
      %411 = vmatprep.subr.bf16.mxu0 0
      %412 = vmatpush1.bf16.xpose.msra.mxu0 0
      %413 = vmatprep.mubr.bf16.mxu0 0
      %414 = vmatmul.mubr.bf16.gmra.mrb[0].mxu0 %v376
      %v415 = vpop.f32.mrb[0].mxu0
      %v416 = vadd.f32 0.0, %v415
      %v417 = vpop.f32.mrb[0].mxu0
      %v418 = vpop.f32.mrb[0].mxu0
      %v419 = vpop.f32.mrb[0].mxu0
      %420 = vdwg.mxu0
      %v422 = vsel %vm328, %v318, 0
      %v425 = vsel %vm328, %v322, 0
      %427 = vmatprep.subr.bf16.mxu0 0
      %428 = vmatpush1.bf16.xpose.msra.mxu0 %v425
      %429 = vmatprep.subr.bf16.mxu0 0
      %430 = vmatpush1.bf16.xpose.msra.mxu0 0
      %431 = vmatprep.subr.bf16.mxu0 0
      %432 = vmatpush1.bf16.xpose.msra.mxu0 0
      %433 = vmatprep.subr.bf16.mxu0 0
      %434 = vmatpush1.bf16.xpose.msra.mxu0 0
      %435 = vmatprep.subr.bf16.mxu0 0
      %436 = vmatpush1.bf16.xpose.msra.mxu0 0
      %437 = vmatprep.subr.bf16.mxu0 0
      %438 = vmatpush1.bf16.xpose.msra.mxu0 0
      %439 = vmatprep.subr.bf16.mxu0 0
      %440 = vmatpush1.bf16.xpose.msra.mxu0 0
      %441 = vmatprep.subr.bf16.mxu0 0
      %442 = vmatpush1.bf16.xpose.msra.mxu0 0
      %443 = vmatprep.subr.bf16.mxu0 0
      %444 = vmatpush1.bf16.xpose.msra.mxu0 0
      %445 = vmatprep.subr.bf16.mxu0 0
      %446 = vmatpush1.bf16.xpose.msra.mxu0 0
      %447 = vmatprep.subr.bf16.mxu0 0
      %448 = vmatpush1.bf16.xpose.msra.mxu0 0
      %449 = vmatprep.subr.bf16.mxu0 0
      %450 = vmatpush1.bf16.xpose.msra.mxu0 0
      %451 = vmatprep.subr.bf16.mxu0 0
      %452 = vmatpush1.bf16.xpose.msra.mxu0 0
      %453 = vmatprep.subr.bf16.mxu0 0
      %454 = vmatpush1.bf16.xpose.msra.mxu0 0
      %455 = vmatprep.subr.bf16.mxu0 0
      %456 = vmatpush1.bf16.xpose.msra.mxu0 0
      %457 = vmatprep.subr.bf16.mxu0 0
      %458 = vmatpush1.bf16.xpose.msra.mxu0 0
      %459 = vmatprep.mubr.bf16.mxu0 0
      %460 = vmatmul.mubr.bf16.gmra.mrb[0].mxu0 %v422
      %v461 = vpop.f32.mrb[0].mxu0
      %v462 = vadd.f32 0.0, %v461
      %v463 = vpop.f32.mrb[0].mxu0
      %v464 = vpop.f32.mrb[0].mxu0
      %v465 = vpop.f32.mrb[0].mxu0
      %466 = vdwg.mxu0
      %v468 = vsel %vm328, %v319, 0
      %v471 = vsel %vm328, %v323, 0
      %473 = vmatprep.subr.bf16.mxu0 0
      %474 = vmatpush1.bf16.xpose.msra.mxu0 %v471
      %475 = vmatprep.subr.bf16.mxu0 0
      %476 = vmatpush1.bf16.xpose.msra.mxu0 0
      %477 = vmatprep.subr.bf16.mxu0 0
      %478 = vmatpush1.bf16.xpose.msra.mxu0 0
      %479 = vmatprep.subr.bf16.mxu0 0
      %480 = vmatpush1.bf16.xpose.msra.mxu0 0
      %481 = vmatprep.subr.bf16.mxu0 0
      %482 = vmatpush1.bf16.xpose.msra.mxu0 0
      %483 = vmatprep.subr.bf16.mxu0 0
      %484 = vmatpush1.bf16.xpose.msra.mxu0 0
      %485 = vmatprep.subr.bf16.mxu0 0
      %486 = vmatpush1.bf16.xpose.msra.mxu0 0
      %487 = vmatprep.subr.bf16.mxu0 0
      %488 = vmatpush1.bf16.xpose.msra.mxu0 0
      %489 = vmatprep.subr.bf16.mxu0 0
      %490 = vmatpush1.bf16.xpose.msra.mxu0 0
      %491 = vmatprep.subr.bf16.mxu0 0
      %492 = vmatpush1.bf16.xpose.msra.mxu0 0
      %493 = vmatprep.subr.bf16.mxu0 0
      %494 = vmatpush1.bf16.xpose.msra.mxu0 0
      %495 = vmatprep.subr.bf16.mxu0 0
      %496 = vmatpush1.bf16.xpose.msra.mxu0 0
      %497 = vmatprep.subr.bf16.mxu0 0
      %498 = vmatpush1.bf16.xpose.msra.mxu0 0
      %499 = vmatprep.subr.bf16.mxu0 0
      %500 = vmatpush1.bf16.xpose.msra.mxu0 0
      %501 = vmatprep.subr.bf16.mxu0 0
      %502 = vmatpush1.bf16.xpose.msra.mxu0 0
      %503 = vmatprep.subr.bf16.mxu0 0
      %504 = vmatpush1.bf16.xpose.msra.mxu0 0
      %505 = vmatprep.mubr.bf16.mxu0 0
      %506 = vmatmul.mubr.bf16.gmra.mrb[0].mxu0 %v468
      %v507 = vpop.f32.mrb[0].mxu0
      %v508 = vadd.f32 0.0, %v507
      %v509 = vpop.f32.mrb[0].mxu0
      %v510 = vpop.f32.mrb[0].mxu0
      %v511 = vpop.f32.mrb[0].mxu0
      %512 = vdwg.mxu0
      %v513 = vmul.f32 %v370, 0.17677669
      %v514 = vmul.f32 %v416, 0.17677669
      %v515 = vmul.f32 %v462, 0.17677669
      %v516 = vmul.f32 %v508, 0.17677669
      %v517 = vld [vmem:[%s291] sm:$0x1]
      %vm518 = vcmp.gt.f32.partialorder %v517, 0.5
      %v519 = vsel %vm518, 1, 0
      %v520 = vlaneseq
      %v521 = vshrl.u32 %v520, 7
      %v522 = vsub.s32 0, %v521
      %v523 = vrot.slane %v519, %v522
      %vm524 = vcmp.eq.s32.totalorder %v523, 1
      %v525 = vsel %vm524, %v513, -1e+10
      %v526 = vsel %vm524, %v514, -1e+10
      %v527 = vsel %vm524, %v515, -1e+10
      %v528 = vsel %vm524, %v516, -1e+10
      %v529 = vld [vmem:[#allocation2] sm:$0xff]
      %v530 = vld [vmem:[#allocation2 + $0x8] sm:$0xff]
      %v531 = vld [vmem:[#allocation2 + $0x10] sm:$0xff]
      %v532 = vld [vmem:[#allocation2 + $0x18] sm:$0xff]
      %vm533 = vcmask 64512
      %v534 = vsel %vm533, %v525, -inf
      %535 = vmax.xlane.f32.xlu0 %v534
      %v536 = vpop.xlane.xlu0 %535
      %v537 = vsel %vm533, %v526, -inf
      %538 = vmax.xlane.f32.xlu0 %v537
      %v539 = vpop.xlane.xlu0 %538
      %v540 = vsel %vm533, %v527, -inf
      %541 = vmax.xlane.f32.xlu0 %v540
      %v542 = vpop.xlane.xlu0 %541
      %v543 = vsel %vm533, %v528, -inf
      %544 = vmax.xlane.f32.xlu0 %v543
      %v545 = vpop.xlane.xlu0 %544
      %v546 = vmax.f32 %v529, %v536
      %v547 = vmax.f32 %v530, %v539
      %v548 = vmax.f32 %v531, %v542
      %v549 = vmax.f32 %v532, %v545
      %v550 = vsub.f32 %v529, %v546
      %v551 = vsub.f32 %v530, %v547
      %v552 = vsub.f32 %v531, %v548
      %v553 = vsub.f32 %v532, %v549
      %v554 = vmul.f32 %v550, 1.442695
      %v555 = vpow.pop %v554
      %v556 = vmul.f32 %v551, 1.442695
      %v557 = vpow.pop %v556
      %v558 = vmul.f32 %v552, 1.442695
      %v559 = vpow.pop %v558
      %v560 = vmul.f32 %v553, 1.442695
      %v561 = vpow.pop %v560
      %563 = vset.pattern.permute.xlu0 0
      %564 = vperm.xlu0 %563, %v546
      %v565 = vpop.permute.xlu0 %564
      %568 = vset.pattern.permute.xlu0 0
      %569 = vperm.xlu0 %568, %v547
      %v570 = vpop.permute.xlu0 %569
      %573 = vset.pattern.permute.xlu0 0
      %574 = vperm.xlu0 %573, %v548
      %v575 = vpop.permute.xlu0 %574
      %578 = vset.pattern.permute.xlu0 0
      %579 = vperm.xlu0 %578, %v549
      %v580 = vpop.permute.xlu0 %579
      %v582 = vsub.f32 %v525, %v565
      %v583 = vsub.f32 %v526, %v570
      %v584 = vsub.f32 %v527, %v575
      %v585 = vsub.f32 %v528, %v580
      %v586 = vmul.f32 %v582, 1.442695
      %v587 = vpow.pop %v586
      %v588 = vmul.f32 %v583, 1.442695
      %v589 = vpow.pop %v588
      %v590 = vmul.f32 %v584, 1.442695
      %v591 = vpow.pop %v590
      %v592 = vmul.f32 %v585, 1.442695
      %v593 = vpow.pop %v592
      %v594 = vld [vmem:[#allocation3] sm:$0xff]
      %v595 = vld [vmem:[#allocation3 + $0x8] sm:$0xff]
      %v596 = vld [vmem:[#allocation3 + $0x10] sm:$0xff]
      %v597 = vld [vmem:[#allocation3 + $0x18] sm:$0xff]
      %v598 = vmul.f32 %v555, %v594
      %v599 = vmul.f32 %v557, %v595
      %v600 = vmul.f32 %v559, %v596
      %v601 = vmul.f32 %v561, %v597
      %v602 = vsel %vm533, %v587, 0.0
      %603 = vadd.xlane.f32.xlu0 %v602
      %v604 = vpop.xlane.xlu0 %603
      %v605 = vsel %vm533, %v589, 0.0
      %606 = vadd.xlane.f32.xlu0 %v605
      %v607 = vpop.xlane.xlu0 %606
      %v608 = vsel %vm533, %v591, 0.0
      %609 = vadd.xlane.f32.xlu0 %v608
      %v610 = vpop.xlane.xlu0 %609
      %v611 = vsel %vm533, %v593, 0.0
      %612 = vadd.xlane.f32.xlu0 %v611
      %v613 = vpop.xlane.xlu0 %612
      %v614 = vadd.f32 %v598, %v604
      %v615 = vadd.f32 %v599, %v607
      %v616 = vadd.f32 %v600, %v610
      %v617 = vadd.f32 %v601, %v613
      %vm618 = vcmask 7168
      %619 = vst.msk [vmem:[#allocation3] sm:$0xff] %vm618, %v614
      %620 = vst.msk [vmem:[#allocation3 + $0x8] sm:$0xff] %vm618, %v615
      %621 = vst.msk [vmem:[#allocation3 + $0x10] sm:$0xff] %vm618, %v616
      %622 = vst.msk [vmem:[#allocation3 + $0x18] sm:$0xff] %vm618, %v617
      %v623 = vld [vmem:[#allocation4] sm:$0xff]
      %v624 = vld [vmem:[#allocation4 + $0x8] sm:$0xff]
      %v625 = vld [vmem:[#allocation4 + $0x10] sm:$0xff]
      %v626 = vld [vmem:[#allocation4 + $0x18] sm:$0xff]
      %628 = vset.pattern.permute.xlu0 0
      %629 = vperm.xlu0 %628, %v555
      %v630 = vpop.permute.xlu0 %629
      %633 = vset.pattern.permute.xlu0 0
      %634 = vperm.xlu0 %633, %v557
      %v635 = vpop.permute.xlu0 %634
      %638 = vset.pattern.permute.xlu0 0
      %639 = vperm.xlu0 %638, %v559
      %v640 = vpop.permute.xlu0 %639
      %643 = vset.pattern.permute.xlu0 0
      %644 = vperm.xlu0 %643, %v561
      %v645 = vpop.permute.xlu0 %644
      %v647 = vmul.f32 %v630, %v623
      %v648 = vmul.f32 %v635, %v624
      %v649 = vmul.f32 %v640, %v625
      %v650 = vmul.f32 %v645, %v626
      %v651 = vpack.c.bf16 %v587, %v587
      %v652 = vpack.c.bf16 %v589, %v589
      %v653 = vpack.c.bf16 %v591, %v591
      %v654 = vpack.c.bf16 %v593, %v593
      %v656 = vsel %vm533, %v651, 0
      %vm658 = vcmask 1043456
      %v660 = vsel %vm658, %v324, 0
      %662 = vmatprep.subr.bf16.mxu0 0
      %663 = vmatpush1.bf16.msra.mxu0 %v660
      %664 = vmatprep.subr.bf16.mxu0 0
      %665 = vmatpush1.bf16.msra.mxu0 0
      %666 = vmatprep.subr.bf16.mxu0 0
      %667 = vmatpush1.bf16.msra.mxu0 0
      %668 = vmatprep.subr.bf16.mxu0 0
      %669 = vmatpush1.bf16.msra.mxu0 0
      %670 = vmatprep.subr.bf16.mxu0 0
      %671 = vmatpush1.bf16.msra.mxu0 0
      %672 = vmatprep.subr.bf16.mxu0 0
      %673 = vmatpush1.bf16.msra.mxu0 0
      %674 = vmatprep.subr.bf16.mxu0 0
      %675 = vmatpush1.bf16.msra.mxu0 0
      %676 = vmatprep.subr.bf16.mxu0 0
      %677 = vmatpush1.bf16.msra.mxu0 0
      %678 = vmatprep.subr.bf16.mxu0 0
      %679 = vmatpush1.bf16.msra.mxu0 0
      %680 = vmatprep.subr.bf16.mxu0 0
      %681 = vmatpush1.bf16.msra.mxu0 0
      %682 = vmatprep.subr.bf16.mxu0 0
      %683 = vmatpush1.bf16.msra.mxu0 0
      %684 = vmatprep.subr.bf16.mxu0 0
      %685 = vmatpush1.bf16.msra.mxu0 0
      %686 = vmatprep.subr.bf16.mxu0 0
      %687 = vmatpush1.bf16.msra.mxu0 0
      %688 = vmatprep.subr.bf16.mxu0 0
      %689 = vmatpush1.bf16.msra.mxu0 0
      %690 = vmatprep.subr.bf16.mxu0 0
      %691 = vmatpush1.bf16.msra.mxu0 0
      %692 = vmatprep.subr.bf16.mxu0 0
      %693 = vmatpush1.bf16.msra.mxu0 0
      %694 = vmatprep.mubr.bf16.mxu0 0
      %695 = vmatmul.mubr.bf16.gmra.mrb[0].mxu0 %v656
      %v696 = vpop.f32.mrb[0].mxu0
      %v697 = vadd.f32 0.0, %v696
      %v698 = vpop.f32.mrb[0].mxu0
      %v699 = vpop.f32.mrb[0].mxu0
      %v700 = vpop.f32.mrb[0].mxu0
      %701 = vdwg.mxu0
      %v703 = vsel %vm533, %v652, 0
      %v706 = vsel %vm658, %v325, 0
      %708 = vmatprep.subr.bf16.mxu0 0
      %709 = vmatpush1.bf16.msra.mxu0 %v706
      %710 = vmatprep.subr.bf16.mxu0 0
      %711 = vmatpush1.bf16.msra.mxu0 0
      %712 = vmatprep.subr.bf16.mxu0 0
      %713 = vmatpush1.bf16.msra.mxu0 0
      %714 = vmatprep.subr.bf16.mxu0 0
      %715 = vmatpush1.bf16.msra.mxu0 0
      %716 = vmatprep.subr.bf16.mxu0 0
      %717 = vmatpush1.bf16.msra.mxu0 0
      %718 = vmatprep.subr.bf16.mxu0 0
      %719 = vmatpush1.bf16.msra.mxu0 0
      %720 = vmatprep.subr.bf16.mxu0 0
      %721 = vmatpush1.bf16.msra.mxu0 0
      %722 = vmatprep.subr.bf16.mxu0 0
      %723 = vmatpush1.bf16.msra.mxu0 0
      %724 = vmatprep.subr.bf16.mxu0 0
      %725 = vmatpush1.bf16.msra.mxu0 0
      %726 = vmatprep.subr.bf16.mxu0 0
      %727 = vmatpush1.bf16.msra.mxu0 0
      %728 = vmatprep.subr.bf16.mxu0 0
      %729 = vmatpush1.bf16.msra.mxu0 0
      %730 = vmatprep.subr.bf16.mxu0 0
      %731 = vmatpush1.bf16.msra.mxu0 0
      %732 = vmatprep.subr.bf16.mxu0 0
      %733 = vmatpush1.bf16.msra.mxu0 0
      %734 = vmatprep.subr.bf16.mxu0 0
      %735 = vmatpush1.bf16.msra.mxu0 0
      %736 = vmatprep.subr.bf16.mxu0 0
      %737 = vmatpush1.bf16.msra.mxu0 0
      %738 = vmatprep.subr.bf16.mxu0 0
      %739 = vmatpush1.bf16.msra.mxu0 0
      %740 = vmatprep.mubr.bf16.mxu0 0
      %741 = vmatmul.mubr.bf16.gmra.mrb[0].mxu0 %v703
      %v742 = vpop.f32.mrb[0].mxu0
      %v743 = vadd.f32 0.0, %v742
      %v744 = vpop.f32.mrb[0].mxu0
      %v745 = vpop.f32.mrb[0].mxu0
      %v746 = vpop.f32.mrb[0].mxu0
      %747 = vdwg.mxu0
      %v749 = vsel %vm533, %v653, 0
      %v752 = vsel %vm658, %v326, 0
      %754 = vmatprep.subr.bf16.mxu0 0
      %755 = vmatpush1.bf16.msra.mxu0 %v752
      %756 = vmatprep.subr.bf16.mxu0 0
      %757 = vmatpush1.bf16.msra.mxu0 0
      %758 = vmatprep.subr.bf16.mxu0 0
      %759 = vmatpush1.bf16.msra.mxu0 0
      %760 = vmatprep.subr.bf16.mxu0 0
      %761 = vmatpush1.bf16.msra.mxu0 0
      %762 = vmatprep.subr.bf16.mxu0 0
      %763 = vmatpush1.bf16.msra.mxu0 0
      %764 = vmatprep.subr.bf16.mxu0 0
      %765 = vmatpush1.bf16.msra.mxu0 0
      %766 = vmatprep.subr.bf16.mxu0 0
      %767 = vmatpush1.bf16.msra.mxu0 0
      %768 = vmatprep.subr.bf16.mxu0 0
      %769 = vmatpush1.bf16.msra.mxu0 0
      %770 = vmatprep.subr.bf16.mxu0 0
      %771 = vmatpush1.bf16.msra.mxu0 0
      %772 = vmatprep.subr.bf16.mxu0 0
      %773 = vmatpush1.bf16.msra.mxu0 0
      %774 = vmatprep.subr.bf16.mxu0 0
      %775 = vmatpush1.bf16.msra.mxu0 0
      %776 = vmatprep.subr.bf16.mxu0 0
      %777 = vmatpush1.bf16.msra.mxu0 0
      %778 = vmatprep.subr.bf16.mxu0 0
      %779 = vmatpush1.bf16.msra.mxu0 0
      %780 = vmatprep.subr.bf16.mxu0 0
      %781 = vmatpush1.bf16.msra.mxu0 0
      %782 = vmatprep.subr.bf16.mxu0 0
      %783 = vmatpush1.bf16.msra.mxu0 0
      %784 = vmatprep.subr.bf16.mxu0 0
      %785 = vmatpush1.bf16.msra.mxu0 0
      %786 = vmatprep.mubr.bf16.mxu0 0
      %787 = vmatmul.mubr.bf16.gmra.mrb[0].mxu0 %v749
      %v788 = vpop.f32.mrb[0].mxu0
      %v789 = vadd.f32 0.0, %v788
      %v790 = vpop.f32.mrb[0].mxu0
      %v791 = vpop.f32.mrb[0].mxu0
      %v792 = vpop.f32.mrb[0].mxu0
      %793 = vdwg.mxu0
      %v795 = vsel %vm533, %v654, 0
      %v798 = vsel %vm658, %v327, 0
      %800 = vmatprep.subr.bf16.mxu0 0
      %801 = vmatpush1.bf16.msra.mxu0 %v798
      %802 = vmatprep.subr.bf16.mxu0 0
      %803 = vmatpush1.bf16.msra.mxu0 0
      %804 = vmatprep.subr.bf16.mxu0 0
      %805 = vmatpush1.bf16.msra.mxu0 0
      %806 = vmatprep.subr.bf16.mxu0 0
      %807 = vmatpush1.bf16.msra.mxu0 0
      %808 = vmatprep.subr.bf16.mxu0 0
      %809 = vmatpush1.bf16.msra.mxu0 0
      %810 = vmatprep.subr.bf16.mxu0 0
      %811 = vmatpush1.bf16.msra.mxu0 0
      %812 = vmatprep.subr.bf16.mxu0 0
      %813 = vmatpush1.bf16.msra.mxu0 0
      %814 = vmatprep.subr.bf16.mxu0 0
      %815 = vmatpush1.bf16.msra.mxu0 0
      %816 = vmatprep.subr.bf16.mxu0 0
      %817 = vmatpush1.bf16.msra.mxu0 0
      %818 = vmatprep.subr.bf16.mxu0 0
      %819 = vmatpush1.bf16.msra.mxu0 0
      %820 = vmatprep.subr.bf16.mxu0 0
      %821 = vmatpush1.bf16.msra.mxu0 0
      %822 = vmatprep.subr.bf16.mxu0 0
      %823 = vmatpush1.bf16.msra.mxu0 0
      %824 = vmatprep.subr.bf16.mxu0 0
      %825 = vmatpush1.bf16.msra.mxu0 0
      %826 = vmatprep.subr.bf16.mxu0 0
      %827 = vmatpush1.bf16.msra.mxu0 0
      %828 = vmatprep.subr.bf16.mxu0 0
      %829 = vmatpush1.bf16.msra.mxu0 0
      %830 = vmatprep.subr.bf16.mxu0 0
      %831 = vmatpush1.bf16.msra.mxu0 0
      %832 = vmatprep.mubr.bf16.mxu0 0
      %833 = vmatmul.mubr.bf16.gmra.mrb[0].mxu0 %v795
      %v834 = vpop.f32.mrb[0].mxu0
      %v835 = vadd.f32 0.0, %v834
      %v836 = vpop.f32.mrb[0].mxu0
      %v837 = vpop.f32.mrb[0].mxu0
      %v838 = vpop.f32.mrb[0].mxu0
      %839 = vdwg.mxu0
      %v840 = vadd.f32 %v647, %v697
      %v841 = vadd.f32 %v648, %v743
      %v842 = vadd.f32 %v649, %v789
      %v843 = vadd.f32 %v650, %v835
      %844 = vst.msk [vmem:[#allocation4] sm:$0xff] %vm328, %v840
      %845 = vst.msk [vmem:[#allocation4 + $0x8] sm:$0xff] %vm328, %v841
      %846 = vst.msk [vmem:[#allocation4 + $0x10] sm:$0xff] %vm328, %v842
      %847 = vst.msk [vmem:[#allocation4 + $0x18] sm:$0xff] %vm328, %v843
      %848 = vst.msk [vmem:[#allocation2] sm:$0xff] %vm618, %v546
      %849 = vst.msk [vmem:[#allocation2 + $0x8] sm:$0xff] %vm618, %v547
      %850 = vst.msk [vmem:[#allocation2 + $0x10] sm:$0xff] %vm618, %v548
      %851 = vst.msk [vmem:[#allocation2 + $0x18] sm:$0xff] %vm618, %v549
      // Predicated region
      $region41: #{transformer_forward.36} parent=35 // pred_check
        %p852 = pneg %p298
      $region42: #{transformer_forward.36} parent=35 // pred_check_branch
        %854 = sbr.rel (%p852) target = $region44
      $region43: #{transformer_forward.36} parent=35 // pred_region
        %v855 = vld [vmem:[#allocation3] sm:$0xff]
        %v856 = vld [vmem:[#allocation3 + $0x8] sm:$0xff]
        %v857 = vld [vmem:[#allocation3 + $0x10] sm:$0xff]
        %v858 = vld [vmem:[#allocation3 + $0x18] sm:$0xff]
        %v859 = vrcp.pop %v855
        %v860 = vrcp.pop %v856
        %v861 = vrcp.pop %v857
        %v862 = vrcp.pop %v858
        %v863 = vld [vmem:[#allocation4] sm:$0xff]
        %v864 = vld [vmem:[#allocation4 + $0x8] sm:$0xff]
        %v865 = vld [vmem:[#allocation4 + $0x10] sm:$0xff]
        %v866 = vld [vmem:[#allocation4 + $0x18] sm:$0xff]
        %868 = vset.pattern.permute.xlu0 0
        %869 = vperm.xlu0 %868, %v859
        %v870 = vpop.permute.xlu0 %869
        %873 = vset.pattern.permute.xlu0 0
        %874 = vperm.xlu0 %873, %v860
        %v875 = vpop.permute.xlu0 %874
        %878 = vset.pattern.permute.xlu0 0
        %879 = vperm.xlu0 %878, %v861
        %v880 = vpop.permute.xlu0 %879
        %883 = vset.pattern.permute.xlu0 0
        %884 = vperm.xlu0 %883, %v862
        %v885 = vpop.permute.xlu0 %884
        %v887 = vmul.f32 %v863, %v870
        %v888 = vmul.f32 %v864, %v875
        %v889 = vmul.f32 %v865, %v880
        %v890 = vmul.f32 %v866, %v885
        %v891 = vpack.c.bf16 %v887, %v887
        %v892 = vpack.c.bf16 %v888, %v888
        %v893 = vpack.c.bf16 %v889, %v889
        %v894 = vpack.c.bf16 %v890, %v890
        %vm895 = vcmask 257024
        %896 = vst.msk [vmem:[%s296] sm:$0xf] %vm895, %v891
        %897 = vst.msk [vmem:[%s296 + $0x4] sm:$0xf] %vm895, %v892
        %898 = vst.msk [vmem:[%s296 + $0x8] sm:$0xf] %vm895, %v893
        %899 = vst.msk [vmem:[%s296 + $0xc] sm:$0xf] %vm895, %v894
      $region44: #{transformer_forward.36} parent=35 // pred_fallthru
        _
      %p900 = scmp.lt.s32.totalorder %s19, 1
      %s901 = scalar_select %p900, %s19, 1
      %s902 = smul.addr %s901, 4
      %s903 = smul.addr %s902, 4
      %s904 = scalar_lea.vmem %s4, %s903
      // Predicated region
      $region45: #{transformer_forward.36} parent=35 // pred_check
        %p905 = pneg %p155
      $region46: #{transformer_forward.36} parent=35 // pred_check_branch
        %907 = sbr.rel (%p905) target = $region48
      $region47: #{transformer_forward.36} parent=35 // pred_region
        _
      $region48: #{transformer_forward.36} parent=35 // pred_fallthru
        _
    $region36: #{transformer_forward.36} parent=5 // pred_fallthru
      _
    %p908 = scmp.le.s32.totalorder 2, %s10
    // Predicated region
    $region49: #{transformer_forward.36} parent=5 // pred_check
      %p909 = pneg %p908
    $region50: #{transformer_forward.36} parent=5 // pred_check_branch
      %911 = sbr.rel (%p909) target = $region52
    $region51: #{transformer_forward.36} parent=5 // pred_region
      %s912 = ssub.s32 %s10, 2
      // Predicated region
      $region53: #{transformer_forward.36} parent=51 // pred_check
        %p913 = pneg %p161
      $region54: #{transformer_forward.36} parent=51 // pred_check_branch
        %915 = sbr.rel (%p913) target = $region56
      $region55: #{transformer_forward.36} parent=51 // pred_region
        %p916 = scmp.lt.s32.totalorder %s21, 1
        %s917 = scalar_select %p916, %s21, 1
        %s918 = smul.addr %s917, 4
        %s919 = smul.addr %s918, 4
        %s920 = scalar_lea.vmem %s4, %s919
      $region56: #{transformer_forward.36} parent=51 // pred_fallthru
        _
    $region52: #{transformer_forward.36} parent=5 // pred_fallthru
      _
  $region6: #{transformer_forward.36} parent=0 // loop_footer
    %s14 = sadd.s32 1, %s10
  $region7: #{transformer_forward.36} parent=0 // loop_footer_branch
    %9 = sbr.rel target = $region3
  $region8: #{transformer_forward.36} parent=0 // loop_exit
    _

// kernel: transformer_forward.64
$region0: #{transformer_forward.64}
  #allocation0 [shape = 'u32[]', space=smem, size = 0x4, offset = 0x4, fixed_abs, tag = 'smem constant byte address 0x4 - core index']
  #allocation1 [shape = 'u32[144,128]{1,0:T(1,128)}', space=vmem, size = 0x12000, scoped, tag = 'internal scratch']
  #allocation2 [shape = 'f32[4,8,1]{2,1,0:T(8,128)}', space=vmem, size = 0x4000, scoped, tag = 'scratch operand']
  #allocation3 [shape = 'f32[4,8,1]{2,1,0:T(8,128)}', space=vmem, size = 0x4000, scoped, tag = 'scratch operand']
  #allocation4 [shape = 'f32[4,8,32]{2,1,0:T(8,128)}', space=vmem, size = 0x4000, scoped, tag = 'scratch operand']
  %s0 = inlined_call_operand.vmem [shape: bf16[2,4,8,32], index: 0, kind: input, shape index: {}]
  %s1 = inlined_call_operand.vmem [shape: bf16[2,4,8,32], index: 1, kind: input, shape index: {}]
  %s2 = inlined_call_operand.vmem [shape: bf16[2,4,8,32], index: 2, kind: input, shape index: {}]
  %s3 = inlined_call_operand.vmem [shape: f32[2,1,8], index: 3, kind: input, shape index: {}]
  %s4 = inlined_call_operand.vmem [shape: bf16[2,4,8,32], index: 4, kind: output, shape index: {0}]
  %s5 = inlined_call_operand.hbm [shape: f32[2,4,8,8], index: 5, kind: output, shape index: {1}]
  %6 = xla_tuple %s4, %s5
  %s7 = sld [smem:[#allocation0]]
  $region65: #{transformer_forward.64} parent=0
    _
  %s9 = ssub.s32 1, %s7
  %s10 = scalar_select 0, %s9, %s7
  $region1: #{transformer_forward.64} parent=0
    #allocation5 [shape = 'u8[32768]{0}', space=vmem, size = 0x8000, scoped, tag = 'output window, operand 1']
    #allocation6 [shape = 's32[2]{0}', space=sflag, size = 0x8, scoped, tag = 'scoped memory for transformer_forward.64']
    %11 = vsyncpa [#allocation6], 0
    %s12 = scalar_lea.sflag [#allocation6], 1
    %13 = vsyncpa %s12, 0
    loop: start=0, step=1, limit=4
    $region2: #{transformer_forward.64} parent=1 // loop_pre_header
      _
    $region3: #{transformer_forward.64} parent=1 // loop_header
      %s15 = sphi 0, %s19
      %p16 = scmp.ge.s32.totalorder %s15, 4
      %s22 = sphi 0, %s34
      %s23 = sphi 0, %s30
      %s24 = sphi 0, %s22
      %s25 = sphi 0, %s23
      %s26 = sphi 0, %s24
      %s27 = sphi 0, %s25
      %s37 = sphi 0, %s39
      %s40 = sphi 0, %s37
      %s41 = sphi 0, %s40
      %s57 = sphi 0, %s41
      %s65 = sphi 0, %s67
      %s68 = sphi 0, %s65
      %s69 = sphi 0, %s68
      %s85 = sphi 0, %s69
      %s93 = sphi 0, %s95
      %s96 = sphi 0, %s93
      %s97 = sphi 0, %s96
      %s113 = sphi 0, %s97
      %s121 = sphi 0, %s123
      %s124 = sphi 0, %s121
      %s125 = sphi 0, %s124
      %s141 = sphi 0, %s125
      %s147 = sphi 0, %s149
      %s150 = sphi 0, %s147
      %s151 = sphi 0, %s150
      %s167 = sphi 0, %s151
      %s173 = sphi 0, %s175
      %s176 = sphi 0, %s173
      %s177 = sphi 0, %s176
      %s193 = sphi 0, %s177
    $region4: #{transformer_forward.64} parent=1 // loop_header_branch
      %18 = sbr.rel (%p16) target = $region8
    $region5: #{transformer_forward.64} parent=1 // loop_body
      %s20 = ssub.s32 %s15, 1
      %s21 = ssub.s32 %s15, 2
      %s28 = sadd.s32 1, %s23
      %p29 = scmp.ge.s32.totalorder %s28, 1
      %s30 = scalar_select %p29, 0, %s28
      %s31 = sadd.s32 1, %s22
      %s32 = scalar_select %p29, %s31, %s22
      %p33 = scmp.ge.s32.totalorder %s32, 2
      %s34 = scalar_select %p33, 0, %s32
      %s35 = ssub.s32 %s22, %s34
      %p36 = scmp.eq.s32.totalorder %s35, 0
      %s38 = sadd.s32 %s37, 1
      %s39 = scalar_select %p36, %s37, %s38
      %p42 = pneg %p36
      %p43 = scmp.eq.s32.totalorder %s15, 1
      %p44 = por %p42, %p43
      %p45 = scmp.ne.s32.totalorder %s37, %s40
      %p46 = scmp.eq.s32.totalorder %s15, 0
      %p47 = por %p45, %p46
      %p48 = scmp.ne.s32.totalorder %s37, %s40
      %p49 = scmp.eq.s32.totalorder %s20, 1
      %p50 = por %p48, %p49
      %p51 = scmp.ne.s32.totalorder %s40, %s41
      %p52 = scmp.eq.s32.totalorder %s20, 0
      %p53 = por %p51, %p52
      %p54 = scmp.ne.s32.totalorder %s40, %s41
      %p55 = scmp.eq.s32.totalorder %s21, 1
      %p56 = por %p54, %p55
      %p58 = scmp.ne.s32.totalorder %s41, %s57
      %p59 = scmp.eq.s32.totalorder %s21, 0
      %p60 = por %p58, %p59
      %s61 = ssub.s32 %s22, %s34
      %s62 = ssub.s32 %s23, %s30
      %s63 = sor.u32 %s61, %s62
      %p64 = scmp.eq.s32.totalorder %s63, 0
      %s66 = sadd.s32 %s65, 1
      %s67 = scalar_select %p64, %s65, %s66
      %p70 = pneg %p64
      %p71 = scmp.eq.s32.totalorder %s15, 1
      %p72 = por %p70, %p71
      %p73 = scmp.ne.s32.totalorder %s65, %s68
      %p74 = scmp.eq.s32.totalorder %s15, 0
      %p75 = por %p73, %p74
      %p76 = scmp.ne.s32.totalorder %s65, %s68
      %p77 = scmp.eq.s32.totalorder %s20, 1
      %p78 = por %p76, %p77
      %p79 = scmp.ne.s32.totalorder %s68, %s69
      %p80 = scmp.eq.s32.totalorder %s20, 0
      %p81 = por %p79, %p80
      %p82 = scmp.ne.s32.totalorder %s68, %s69
      %p83 = scmp.eq.s32.totalorder %s21, 1
      %p84 = por %p82, %p83
      %p86 = scmp.ne.s32.totalorder %s69, %s85
      %p87 = scmp.eq.s32.totalorder %s21, 0
      %p88 = por %p86, %p87
      %s89 = ssub.s32 %s22, %s34
      %s90 = ssub.s32 %s23, %s30
      %s91 = sor.u32 %s89, %s90
      %p92 = scmp.eq.s32.totalorder %s91, 0
      %s94 = sadd.s32 %s93, 1
      %s95 = scalar_select %p92, %s93, %s94
      %p98 = pneg %p92
      %p99 = scmp.eq.s32.totalorder %s15, 1
      %p100 = por %p98, %p99
      %p101 = scmp.ne.s32.totalorder %s93, %s96
      %p102 = scmp.eq.s32.totalorder %s15, 0
      %p103 = por %p101, %p102
      %p104 = scmp.ne.s32.totalorder %s93, %s96
      %p105 = scmp.eq.s32.totalorder %s20, 1
      %p106 = por %p104, %p105
      %p107 = scmp.ne.s32.totalorder %s96, %s97
      %p108 = scmp.eq.s32.totalorder %s20, 0
      %p109 = por %p107, %p108
      %p110 = scmp.ne.s32.totalorder %s96, %s97
      %p111 = scmp.eq.s32.totalorder %s21, 1
      %p112 = por %p110, %p111
      %p114 = scmp.ne.s32.totalorder %s97, %s113
      %p115 = scmp.eq.s32.totalorder %s21, 0
      %p116 = por %p114, %p115
      %s117 = ssub.s32 %s22, %s34
      %s118 = ssub.s32 %s23, %s30
      %s119 = sor.u32 %s117, %s118
      %p120 = scmp.eq.s32.totalorder %s119, 0
      %s122 = sadd.s32 %s121, 1
      %s123 = scalar_select %p120, %s121, %s122
      %p126 = pneg %p120
      %p127 = scmp.eq.s32.totalorder %s15, 1
      %p128 = por %p126, %p127
      %p129 = scmp.ne.s32.totalorder %s121, %s124
      %p130 = scmp.eq.s32.totalorder %s15, 0
      %p131 = por %p129, %p130
      %p132 = scmp.ne.s32.totalorder %s121, %s124
      %p133 = scmp.eq.s32.totalorder %s20, 1
      %p134 = por %p132, %p133
      %p135 = scmp.ne.s32.totalorder %s124, %s125
      %p136 = scmp.eq.s32.totalorder %s20, 0
      %p137 = por %p135, %p136
      %p138 = scmp.ne.s32.totalorder %s124, %s125
      %p139 = scmp.eq.s32.totalorder %s21, 1
      %p140 = por %p138, %p139
      %p142 = scmp.ne.s32.totalorder %s125, %s141
      %p143 = scmp.eq.s32.totalorder %s21, 0
      %p144 = por %p142, %p143
      %s145 = ssub.s32 %s22, %s34
      %p146 = scmp.eq.s32.totalorder %s145, 0
      %s148 = sadd.s32 %s147, 1
      %s149 = scalar_select %p146, %s147, %s148
      %p152 = pneg %p146
      %p153 = scmp.eq.s32.totalorder %s15, 1
      %p154 = por %p152, %p153
      %p155 = scmp.ne.s32.totalorder %s147, %s150
      %p156 = scmp.eq.s32.totalorder %s15, 0
      %p157 = por %p155, %p156
      %p158 = scmp.ne.s32.totalorder %s147, %s150
      %p159 = scmp.eq.s32.totalorder %s20, 1
      %p160 = por %p158, %p159
      %p161 = scmp.ne.s32.totalorder %s150, %s151
      %p162 = scmp.eq.s32.totalorder %s20, 0
      %p163 = por %p161, %p162
      %p164 = scmp.ne.s32.totalorder %s150, %s151
      %p165 = scmp.eq.s32.totalorder %s21, 1
      %p166 = por %p164, %p165
      %p168 = scmp.ne.s32.totalorder %s151, %s167
      %p169 = scmp.eq.s32.totalorder %s21, 0
      %p170 = por %p168, %p169
      %s171 = ssub.s32 %s22, %s34
      %p172 = scmp.eq.s32.totalorder %s171, 0
      %s174 = sadd.s32 %s173, 1
      %s175 = scalar_select %p172, %s173, %s174
      %p178 = pneg %p172
      %p179 = scmp.eq.s32.totalorder %s15, 1
      %p180 = por %p178, %p179
      %p181 = scmp.ne.s32.totalorder %s173, %s176
      %p182 = scmp.eq.s32.totalorder %s15, 0
      %p183 = por %p181, %p182
      %p184 = scmp.ne.s32.totalorder %s173, %s176
      %p185 = scmp.eq.s32.totalorder %s20, 1
      %p186 = por %p184, %p185
      %p187 = scmp.ne.s32.totalorder %s176, %s177
      %p188 = scmp.eq.s32.totalorder %s20, 0
      %p189 = por %p187, %p188
      %p190 = scmp.ne.s32.totalorder %s176, %s177
      %p191 = scmp.eq.s32.totalorder %s21, 1
      %p192 = por %p190, %p191
      %p194 = scmp.ne.s32.totalorder %s177, %s193
      %p195 = scmp.eq.s32.totalorder %s21, 0
      %p196 = por %p194, %p195
      %p197 = scmp.le.s32.totalorder 1, %s15
      %p198 = scmp.lt.s32.totalorder %s15, 3
      %p199 = pnand %p197, %p198
      %p200 = pneg %p199
      // Predicated region
      $region9: #{transformer_forward.64} parent=5 // pred_check
        _
      $region10: #{transformer_forward.64} parent=5 // pred_check_branch
        %202 = sbr.rel (%p199) target = $region12
      $region11: #{transformer_forward.64} parent=5 // pred_region
        %s203 = ssub.s32 %s15, 1
      $region12: #{transformer_forward.64} parent=5 // pred_fallthru
        _
      %p204 = scmp.lt.s32.totalorder %s15, 2
      // Predicated region
      $region13: #{transformer_forward.64} parent=5 // pred_check
        %p205 = pneg %p204
      $region14: #{transformer_forward.64} parent=5 // pred_check_branch
        %207 = sbr.rel (%p205) target = $region16
      $region15: #{transformer_forward.64} parent=5 // pred_region
        // Predicated region
        $region17: #{transformer_forward.64} parent=15 // pred_check
          %p208 = pneg %p47
        $region18: #{transformer_forward.64} parent=15 // pred_check_branch
          %210 = sbr.rel (%p208) target = $region20
        $region19: #{transformer_forward.64} parent=15 // pred_region
          %p211 = scmp.lt.s32.totalorder %s22, 1
          %s212 = scalar_select %p211, %s22, 1
          %s213 = smul.addr %s212, 4
          %s214 = smul.addr %s213, 4
          %s215 = scalar_lea.vmem %s0, %s214
        $region20: #{transformer_forward.64} parent=15 // pred_fallthru
          _
        // Predicated region
        $region21: #{transformer_forward.64} parent=15 // pred_check
          %p216 = pneg %p75
        $region22: #{transformer_forward.64} parent=15 // pred_check_branch
          %218 = sbr.rel (%p216) target = $region24
        $region23: #{transformer_forward.64} parent=15 // pred_region
          %p219 = scmp.lt.s32.totalorder %s22, 1
          %s220 = scalar_select %p219, %s22, 1
          %p221 = scmp.lt.s32.totalorder %s23, 0
          %s222 = scalar_select %p221, %s23, 0
          %s223 = smul.addr %s220, 4
          %s224 = sadd.s32 %s222, %s223
          %s225 = smul.addr %s224, 4
          %s226 = scalar_lea.vmem %s1, %s225
        $region24: #{transformer_forward.64} parent=15 // pred_fallthru
          _
        // Predicated region
        $region25: #{transformer_forward.64} parent=15 // pred_check
          %p227 = pneg %p103
        $region26: #{transformer_forward.64} parent=15 // pred_check_branch
          %229 = sbr.rel (%p227) target = $region28
        $region27: #{transformer_forward.64} parent=15 // pred_region
          %p230 = scmp.lt.s32.totalorder %s22, 1
          %s231 = scalar_select %p230, %s22, 1
          %p232 = scmp.lt.s32.totalorder %s23, 0
          %s233 = scalar_select %p232, %s23, 0
          %s234 = smul.addr %s231, 4
          %s235 = sadd.s32 %s233, %s234
          %s236 = smul.addr %s235, 4
          %s237 = scalar_lea.vmem %s2, %s236
        $region28: #{transformer_forward.64} parent=15 // pred_fallthru
          _
        // Predicated region
        $region29: #{transformer_forward.64} parent=15 // pred_check
          %p238 = pneg %p131
        $region30: #{transformer_forward.64} parent=15 // pred_check_branch
          %240 = sbr.rel (%p238) target = $region32
        $region31: #{transformer_forward.64} parent=15 // pred_region
          %p241 = scmp.lt.s32.totalorder %s22, 1
          %s242 = scalar_select %p241, %s22, 1
          %p243 = scmp.lt.s32.totalorder %s23, 0
          %s244 = scalar_select %p243, %s23, 0
          %s245 = sadd.s32 %s244, %s242
          %s246 = scalar_lea.vmem %s3, %s245
        $region32: #{transformer_forward.64} parent=15 // pred_fallthru
          _
      $region16: #{transformer_forward.64} parent=5 // pred_fallthru
        _
      %p247 = scmp.le.s32.totalorder 1, %s15
      %p248 = scmp.lt.s32.totalorder %s15, 3
      %p249 = pnand %p247, %p248
      %p250 = pneg %p249
      // Predicated region
      $region33: #{transformer_forward.64} parent=5 // pred_check
        _
      $region34: #{transformer_forward.64} parent=5 // pred_check_branch
        %252 = sbr.rel (%p249) target = $region36
      $region35: #{transformer_forward.64} parent=5 // pred_region
        %s253 = ssub.s32 %s15, 1
        %p254 = scmp.lt.s32.totalorder %s24, 1
        %s255 = scalar_select %p254, %s24, 1
        %s256 = smul.addr %s255, 4
        %s257 = smul.addr %s256, 4
        %s258 = scalar_lea.vmem %s0, %s257
        %p259 = pneg %p53
        %p260 = pneg %p50
        %p261 = scmp.lt.s32.totalorder %s24, 1
        %s262 = scalar_select %p261, %s24, 1
        %p263 = scmp.lt.s32.totalorder %s25, 0
        %s264 = scalar_select %p263, %s25, 0
        %s265 = smul.addr %s262, 4
        %s266 = sadd.s32 %s264, %s265
        %s267 = smul.addr %s266, 4
        %s268 = scalar_lea.vmem %s1, %s267
        %p269 = pneg %p81
        %p270 = pneg %p78
        %p271 = scmp.lt.s32.totalorder %s24, 1
        %s272 = scalar_select %p271, %s24, 1
        %p273 = scmp.lt.s32.totalorder %s25, 0
        %s274 = scalar_select %p273, %s25, 0
        %s275 = smul.addr %s272, 4
        %s276 = sadd.s32 %s274, %s275
        %s277 = smul.addr %s276, 4
        %s278 = scalar_lea.vmem %s2, %s277
        %p279 = pneg %p109
        %p280 = pneg %p106
        %p281 = scmp.lt.s32.totalorder %s24, 1
        %s282 = scalar_select %p281, %s24, 1
        %p283 = scmp.lt.s32.totalorder %s25, 0
        %s284 = scalar_select %p283, %s25, 0
        %s285 = sadd.s32 %s284, %s282
        %s286 = scalar_lea.vmem %s3, %s285
        %p287 = pneg %p137
        %p288 = pneg %p134
        %p289 = pneg %p163
        %p290 = pneg %p160
        %p291 = scmp.lt.s32.totalorder %s24, 1
        %s292 = scalar_select %p291, %s24, 1
        %s293 = smul.addr %s292, 4
        %s294 = smul.addr %s293, 4
        %s295 = scalar_lea.vmem %s4, %s294
        %p296 = pneg %p189
        %p297 = pneg %p186
        %s298 = sand.u32 %s176, 1
        %s299 = scalar_lea.sflag [#allocation6], %s298
        %s300 = sand.u32 %s176, 1
        %s301 = smul.addr %s300, 32
        %s302 = scalar_lea.vmem [#allocation5], %s301
        %p303 = scmp.lt.s32.totalorder %s24, 1
        %s304 = scalar_select %p303, %s24, 1
        %s305 = smul.addr %s304, 4
        %s306 = smul.addr %s305, 4
        %s307 = scalar_lea.vmem %s0, %s306
        %p308 = scmp.lt.s32.totalorder %s24, 1
        %s309 = scalar_select %p308, %s24, 1
        %p310 = scmp.lt.s32.totalorder %s25, 0
        %s311 = scalar_select %p310, %s25, 0
        %s312 = smul.addr %s309, 4
        %s313 = sadd.s32 %s311, %s312
        %s314 = smul.addr %s313, 4
        %s315 = scalar_lea.vmem %s1, %s314
        %p316 = scmp.lt.s32.totalorder %s24, 1
        %s317 = scalar_select %p316, %s24, 1
        %p318 = scmp.lt.s32.totalorder %s25, 0
        %s319 = scalar_select %p318, %s25, 0
        %s320 = smul.addr %s317, 4
        %s321 = sadd.s32 %s319, %s320
        %s322 = smul.addr %s321, 4
        %s323 = scalar_lea.vmem %s2, %s322
        %p324 = scmp.lt.s32.totalorder %s24, 1
        %s325 = scalar_select %p324, %s24, 1
        %p326 = scmp.lt.s32.totalorder %s25, 0
        %s327 = scalar_select %p326, %s25, 0
        %s328 = sadd.s32 %s327, %s325
        %s329 = scalar_lea.vmem %s3, %s328
        %p330 = scmp.lt.s32.totalorder %s24, 1
        %s331 = scalar_select %p330, %s24, 1
        %s332 = smul.addr %s331, 4
        %s333 = smul.addr %s332, 4
        %s334 = scalar_lea.vmem %s4, %s333
        %p336 = scmp.eq.s32.totalorder %s25, 0
        // Predicated region
        $region37: #{transformer_forward.64} parent=35 // pred_check
          %p337 = pneg %p336
        $region38: #{transformer_forward.64} parent=35 // pred_check_branch
          %339 = sbr.rel (%p337) target = $region40
        $region39: #{transformer_forward.64} parent=35 // pred_region
          %vm340 = vcmask 7168
          %341 = vst.msk [vmem:[#allocation2] sm:$0xff] %vm340, -inf
          %342 = vst.msk [vmem:[#allocation2 + $0x8] sm:$0xff] %vm340, -inf
          %343 = vst.msk [vmem:[#allocation2 + $0x10] sm:$0xff] %vm340, -inf
          %344 = vst.msk [vmem:[#allocation2 + $0x18] sm:$0xff] %vm340, -inf
          %345 = vst.msk [vmem:[#allocation3] sm:$0xff] %vm340, 0.0
          %346 = vst.msk [vmem:[#allocation3 + $0x8] sm:$0xff] %vm340, 0.0
          %347 = vst.msk [vmem:[#allocation3 + $0x10] sm:$0xff] %vm340, 0.0
          %348 = vst.msk [vmem:[#allocation3 + $0x18] sm:$0xff] %vm340, 0.0
          %vm349 = vcmask 261120
          %350 = vst.msk [vmem:[#allocation4] sm:$0xff] %vm349, 0.0
          %351 = vst.msk [vmem:[#allocation4 + $0x8] sm:$0xff] %vm349, 0.0
          %352 = vst.msk [vmem:[#allocation4 + $0x10] sm:$0xff] %vm349, 0.0
          %353 = vst.msk [vmem:[#allocation4 + $0x18] sm:$0xff] %vm349, 0.0
        $region40: #{transformer_forward.64} parent=35 // pred_fallthru
          _
        %v354 = vld [vmem:[%s307] sm:$0xf]
        %v355 = vld [vmem:[%s307 + $0x4] sm:$0xf]
        %v356 = vld [vmem:[%s307 + $0x8] sm:$0xf]
        %v357 = vld [vmem:[%s307 + $0xc] sm:$0xf]
        %v358 = vld [vmem:[%s315] sm:$0xf]
        %v359 = vld [vmem:[%s315 + $0x4] sm:$0xf]
        %v360 = vld [vmem:[%s315 + $0x8] sm:$0xf]
        %v361 = vld [vmem:[%s315 + $0xc] sm:$0xf]
        %v362 = vld [vmem:[%s323] sm:$0xf]
        %v363 = vld [vmem:[%s323 + $0x4] sm:$0xf]
        %v364 = vld [vmem:[%s323 + $0x8] sm:$0xf]
        %v365 = vld [vmem:[%s323 + $0xc] sm:$0xf]
        %vm366 = vcmask 261120
        %v368 = vsel %vm366, %v354, 0
        %v371 = vsel %vm366, %v358, 0
        %373 = vmatprep.subr.bf16.mxu0 0
        %374 = vmatpush1.bf16.xpose.msra.mxu0 %v371
        %375 = vmatprep.subr.bf16.mxu0 0
        %376 = vmatpush1.bf16.xpose.msra.mxu0 0
        %377 = vmatprep.subr.bf16.mxu0 0
        %378 = vmatpush1.bf16.xpose.msra.mxu0 0
        %379 = vmatprep.subr.bf16.mxu0 0
        %380 = vmatpush1.bf16.xpose.msra.mxu0 0
        %381 = vmatprep.subr.bf16.mxu0 0
        %382 = vmatpush1.bf16.xpose.msra.mxu0 0
        %383 = vmatprep.subr.bf16.mxu0 0
        %384 = vmatpush1.bf16.xpose.msra.mxu0 0
        %385 = vmatprep.subr.bf16.mxu0 0
        %386 = vmatpush1.bf16.xpose.msra.mxu0 0
        %387 = vmatprep.subr.bf16.mxu0 0
        %388 = vmatpush1.bf16.xpose.msra.mxu0 0
        %389 = vmatprep.subr.bf16.mxu0 0
        %390 = vmatpush1.bf16.xpose.msra.mxu0 0
        %391 = vmatprep.subr.bf16.mxu0 0
        %392 = vmatpush1.bf16.xpose.msra.mxu0 0
        %393 = vmatprep.subr.bf16.mxu0 0
        %394 = vmatpush1.bf16.xpose.msra.mxu0 0
        %395 = vmatprep.subr.bf16.mxu0 0
        %396 = vmatpush1.bf16.xpose.msra.mxu0 0
        %397 = vmatprep.subr.bf16.mxu0 0
        %398 = vmatpush1.bf16.xpose.msra.mxu0 0
        %399 = vmatprep.subr.bf16.mxu0 0
        %400 = vmatpush1.bf16.xpose.msra.mxu0 0
        %401 = vmatprep.subr.bf16.mxu0 0
        %402 = vmatpush1.bf16.xpose.msra.mxu0 0
        %403 = vmatprep.subr.bf16.mxu0 0
        %404 = vmatpush1.bf16.xpose.msra.mxu0 0
        %405 = vmatprep.mubr.bf16.mxu0 0
        %406 = vmatmul.mubr.bf16.gmra.mrb[0].mxu0 %v368
        %v407 = vpop.f32.mrb[0].mxu0
        %v408 = vadd.f32 0.0, %v407
        %v409 = vpop.f32.mrb[0].mxu0
        %v410 = vpop.f32.mrb[0].mxu0
        %v411 = vpop.f32.mrb[0].mxu0
        %412 = vdwg.mxu0
        %v414 = vsel %vm366, %v355, 0
        %v417 = vsel %vm366, %v359, 0
        %419 = vmatprep.subr.bf16.mxu0 0
        %420 = vmatpush1.bf16.xpose.msra.mxu0 %v417
        %421 = vmatprep.subr.bf16.mxu0 0
        %422 = vmatpush1.bf16.xpose.msra.mxu0 0
        %423 = vmatprep.subr.bf16.mxu0 0
        %424 = vmatpush1.bf16.xpose.msra.mxu0 0
        %425 = vmatprep.subr.bf16.mxu0 0
        %426 = vmatpush1.bf16.xpose.msra.mxu0 0
        %427 = vmatprep.subr.bf16.mxu0 0
        %428 = vmatpush1.bf16.xpose.msra.mxu0 0
        %429 = vmatprep.subr.bf16.mxu0 0
        %430 = vmatpush1.bf16.xpose.msra.mxu0 0
        %431 = vmatprep.subr.bf16.mxu0 0
        %432 = vmatpush1.bf16.xpose.msra.mxu0 0
        %433 = vmatprep.subr.bf16.mxu0 0
        %434 = vmatpush1.bf16.xpose.msra.mxu0 0
        %435 = vmatprep.subr.bf16.mxu0 0
        %436 = vmatpush1.bf16.xpose.msra.mxu0 0
        %437 = vmatprep.subr.bf16.mxu0 0
        %438 = vmatpush1.bf16.xpose.msra.mxu0 0
        %439 = vmatprep.subr.bf16.mxu0 0
        %440 = vmatpush1.bf16.xpose.msra.mxu0 0
        %441 = vmatprep.subr.bf16.mxu0 0
        %442 = vmatpush1.bf16.xpose.msra.mxu0 0
        %443 = vmatprep.subr.bf16.mxu0 0
        %444 = vmatpush1.bf16.xpose.msra.mxu0 0
        %445 = vmatprep.subr.bf16.mxu0 0
        %446 = vmatpush1.bf16.xpose.msra.mxu0 0
        %447 = vmatprep.subr.bf16.mxu0 0
        %448 = vmatpush1.bf16.xpose.msra.mxu0 0
        %449 = vmatprep.subr.bf16.mxu0 0
        %450 = vmatpush1.bf16.xpose.msra.mxu0 0
        %451 = vmatprep.mubr.bf16.mxu0 0
        %452 = vmatmul.mubr.bf16.gmra.mrb[0].mxu0 %v414
        %v453 = vpop.f32.mrb[0].mxu0
        %v454 = vadd.f32 0.0, %v453
        %v455 = vpop.f32.mrb[0].mxu0
        %v456 = vpop.f32.mrb[0].mxu0
        %v457 = vpop.f32.mrb[0].mxu0
        %458 = vdwg.mxu0
        %v460 = vsel %vm366, %v356, 0
        %v463 = vsel %vm366, %v360, 0
        %465 = vmatprep.subr.bf16.mxu0 0
        %466 = vmatpush1.bf16.xpose.msra.mxu0 %v463
        %467 = vmatprep.subr.bf16.mxu0 0
        %468 = vmatpush1.bf16.xpose.msra.mxu0 0
        %469 = vmatprep.subr.bf16.mxu0 0
        %470 = vmatpush1.bf16.xpose.msra.mxu0 0
        %471 = vmatprep.subr.bf16.mxu0 0
        %472 = vmatpush1.bf16.xpose.msra.mxu0 0
        %473 = vmatprep.subr.bf16.mxu0 0
        %474 = vmatpush1.bf16.xpose.msra.mxu0 0
        %475 = vmatprep.subr.bf16.mxu0 0
        %476 = vmatpush1.bf16.xpose.msra.mxu0 0
        %477 = vmatprep.subr.bf16.mxu0 0
        %478 = vmatpush1.bf16.xpose.msra.mxu0 0
        %479 = vmatprep.subr.bf16.mxu0 0
        %480 = vmatpush1.bf16.xpose.msra.mxu0 0
        %481 = vmatprep.subr.bf16.mxu0 0
        %482 = vmatpush1.bf16.xpose.msra.mxu0 0
        %483 = vmatprep.subr.bf16.mxu0 0
        %484 = vmatpush1.bf16.xpose.msra.mxu0 0
        %485 = vmatprep.subr.bf16.mxu0 0
        %486 = vmatpush1.bf16.xpose.msra.mxu0 0
        %487 = vmatprep.subr.bf16.mxu0 0
        %488 = vmatpush1.bf16.xpose.msra.mxu0 0
        %489 = vmatprep.subr.bf16.mxu0 0
        %490 = vmatpush1.bf16.xpose.msra.mxu0 0
        %491 = vmatprep.subr.bf16.mxu0 0
        %492 = vmatpush1.bf16.xpose.msra.mxu0 0
        %493 = vmatprep.subr.bf16.mxu0 0
        %494 = vmatpush1.bf16.xpose.msra.mxu0 0
        %495 = vmatprep.subr.bf16.mxu0 0
        %496 = vmatpush1.bf16.xpose.msra.mxu0 0
        %497 = vmatprep.mubr.bf16.mxu0 0
        %498 = vmatmul.mubr.bf16.gmra.mrb[0].mxu0 %v460
        %v499 = vpop.f32.mrb[0].mxu0
        %v500 = vadd.f32 0.0, %v499
        %v501 = vpop.f32.mrb[0].mxu0
        %v502 = vpop.f32.mrb[0].mxu0
        %v503 = vpop.f32.mrb[0].mxu0
        %504 = vdwg.mxu0
        %v506 = vsel %vm366, %v357, 0
        %v509 = vsel %vm366, %v361, 0
        %511 = vmatprep.subr.bf16.mxu0 0
        %512 = vmatpush1.bf16.xpose.msra.mxu0 %v509
        %513 = vmatprep.subr.bf16.mxu0 0
        %514 = vmatpush1.bf16.xpose.msra.mxu0 0
        %515 = vmatprep.subr.bf16.mxu0 0
        %516 = vmatpush1.bf16.xpose.msra.mxu0 0
        %517 = vmatprep.subr.bf16.mxu0 0
        %518 = vmatpush1.bf16.xpose.msra.mxu0 0
        %519 = vmatprep.subr.bf16.mxu0 0
        %520 = vmatpush1.bf16.xpose.msra.mxu0 0
        %521 = vmatprep.subr.bf16.mxu0 0
        %522 = vmatpush1.bf16.xpose.msra.mxu0 0
        %523 = vmatprep.subr.bf16.mxu0 0
        %524 = vmatpush1.bf16.xpose.msra.mxu0 0
        %525 = vmatprep.subr.bf16.mxu0 0
        %526 = vmatpush1.bf16.xpose.msra.mxu0 0
        %527 = vmatprep.subr.bf16.mxu0 0
        %528 = vmatpush1.bf16.xpose.msra.mxu0 0
        %529 = vmatprep.subr.bf16.mxu0 0
        %530 = vmatpush1.bf16.xpose.msra.mxu0 0
        %531 = vmatprep.subr.bf16.mxu0 0
        %532 = vmatpush1.bf16.xpose.msra.mxu0 0
        %533 = vmatprep.subr.bf16.mxu0 0
        %534 = vmatpush1.bf16.xpose.msra.mxu0 0
        %535 = vmatprep.subr.bf16.mxu0 0
        %536 = vmatpush1.bf16.xpose.msra.mxu0 0
        %537 = vmatprep.subr.bf16.mxu0 0
        %538 = vmatpush1.bf16.xpose.msra.mxu0 0
        %539 = vmatprep.subr.bf16.mxu0 0
        %540 = vmatpush1.bf16.xpose.msra.mxu0 0
        %541 = vmatprep.subr.bf16.mxu0 0
        %542 = vmatpush1.bf16.xpose.msra.mxu0 0
        %543 = vmatprep.mubr.bf16.mxu0 0
        %544 = vmatmul.mubr.bf16.gmra.mrb[0].mxu0 %v506
        %v545 = vpop.f32.mrb[0].mxu0
        %v546 = vadd.f32 0.0, %v545
        %v547 = vpop.f32.mrb[0].mxu0
        %v548 = vpop.f32.mrb[0].mxu0
        %v549 = vpop.f32.mrb[0].mxu0
        %550 = vdwg.mxu0
        %v551 = vmul.f32 %v408, 0.17677669
        %v552 = vmul.f32 %v454, 0.17677669
        %v553 = vmul.f32 %v500, 0.17677669
        %v554 = vmul.f32 %v546, 0.17677669
        %v555 = vld [vmem:[%s329] sm:$0x1]
        %vm556 = vcmp.gt.f32.partialorder %v555, 0.5
        %v557 = vsel %vm556, 1, 0
        %v558 = vlaneseq
        %v559 = vshrl.u32 %v558, 7
        %v560 = vsub.s32 0, %v559
        %v561 = vrot.slane %v557, %v560
        %vm562 = vcmp.eq.s32.totalorder %v561, 1
        %v563 = vsel %vm562, %v551, -1e+10
        %v564 = vsel %vm562, %v552, -1e+10
        %v565 = vsel %vm562, %v553, -1e+10
        %v566 = vsel %vm562, %v554, -1e+10
        %v567 = vld [vmem:[#allocation2] sm:$0xff]
        %v568 = vld [vmem:[#allocation2 + $0x8] sm:$0xff]
        %v569 = vld [vmem:[#allocation2 + $0x10] sm:$0xff]
        %v570 = vld [vmem:[#allocation2 + $0x18] sm:$0xff]
        %vm571 = vcmask 64512
        %v572 = vsel %vm571, %v563, -inf
        %573 = vmax.xlane.f32.xlu0 %v572
        %v574 = vpop.xlane.xlu0 %573
        %v575 = vsel %vm571, %v564, -inf
        %576 = vmax.xlane.f32.xlu0 %v575
        %v577 = vpop.xlane.xlu0 %576
        %v578 = vsel %vm571, %v565, -inf
        %579 = vmax.xlane.f32.xlu0 %v578
        %v580 = vpop.xlane.xlu0 %579
        %v581 = vsel %vm571, %v566, -inf
        %582 = vmax.xlane.f32.xlu0 %v581
        %v583 = vpop.xlane.xlu0 %582
        %v584 = vmax.f32 %v567, %v574
        %v585 = vmax.f32 %v568, %v577
        %v586 = vmax.f32 %v569, %v580
        %v587 = vmax.f32 %v570, %v583
        %v588 = vsub.f32 %v567, %v584
        %v589 = vsub.f32 %v568, %v585
        %v590 = vsub.f32 %v569, %v586
        %v591 = vsub.f32 %v570, %v587
        %v592 = vmul.f32 %v588, 1.442695
        %v593 = vpow.pop %v592
        %v594 = vmul.f32 %v589, 1.442695
        %v595 = vpow.pop %v594
        %v596 = vmul.f32 %v590, 1.442695
        %v597 = vpow.pop %v596
        %v598 = vmul.f32 %v591, 1.442695
        %v599 = vpow.pop %v598
        %601 = vset.pattern.permute.xlu0 0
        %602 = vperm.xlu0 %601, %v584
        %v603 = vpop.permute.xlu0 %602
        %606 = vset.pattern.permute.xlu0 0
        %607 = vperm.xlu0 %606, %v585
        %v608 = vpop.permute.xlu0 %607
        %611 = vset.pattern.permute.xlu0 0
        %612 = vperm.xlu0 %611, %v586
        %v613 = vpop.permute.xlu0 %612
        %616 = vset.pattern.permute.xlu0 0
        %617 = vperm.xlu0 %616, %v587
        %v618 = vpop.permute.xlu0 %617
        %v620 = vsub.f32 %v563, %v603
        %v621 = vsub.f32 %v564, %v608
        %v622 = vsub.f32 %v565, %v613
        %v623 = vsub.f32 %v566, %v618
        %v624 = vmul.f32 %v620, 1.442695
        %v625 = vpow.pop %v624
        %v626 = vmul.f32 %v621, 1.442695
        %v627 = vpow.pop %v626
        %v628 = vmul.f32 %v622, 1.442695
        %v629 = vpow.pop %v628
        %v630 = vmul.f32 %v623, 1.442695
        %v631 = vpow.pop %v630
        %v632 = vld [vmem:[#allocation3] sm:$0xff]
        %v633 = vld [vmem:[#allocation3 + $0x8] sm:$0xff]
        %v634 = vld [vmem:[#allocation3 + $0x10] sm:$0xff]
        %v635 = vld [vmem:[#allocation3 + $0x18] sm:$0xff]
        %v636 = vmul.f32 %v593, %v632
        %v637 = vmul.f32 %v595, %v633
        %v638 = vmul.f32 %v597, %v634
        %v639 = vmul.f32 %v599, %v635
        %v640 = vsel %vm571, %v625, 0.0
        %641 = vadd.xlane.f32.xlu0 %v640
        %v642 = vpop.xlane.xlu0 %641
        %v643 = vsel %vm571, %v627, 0.0
        %644 = vadd.xlane.f32.xlu0 %v643
        %v645 = vpop.xlane.xlu0 %644
        %v646 = vsel %vm571, %v629, 0.0
        %647 = vadd.xlane.f32.xlu0 %v646
        %v648 = vpop.xlane.xlu0 %647
        %v649 = vsel %vm571, %v631, 0.0
        %650 = vadd.xlane.f32.xlu0 %v649
        %v651 = vpop.xlane.xlu0 %650
        %v652 = vadd.f32 %v636, %v642
        %v653 = vadd.f32 %v637, %v645
        %v654 = vadd.f32 %v638, %v648
        %v655 = vadd.f32 %v639, %v651
        %vm656 = vcmask 7168
        %657 = vst.msk [vmem:[#allocation3] sm:$0xff] %vm656, %v652
        %658 = vst.msk [vmem:[#allocation3 + $0x8] sm:$0xff] %vm656, %v653
        %659 = vst.msk [vmem:[#allocation3 + $0x10] sm:$0xff] %vm656, %v654
        %660 = vst.msk [vmem:[#allocation3 + $0x18] sm:$0xff] %vm656, %v655
        %v661 = vld [vmem:[#allocation4] sm:$0xff]
        %v662 = vld [vmem:[#allocation4 + $0x8] sm:$0xff]
        %v663 = vld [vmem:[#allocation4 + $0x10] sm:$0xff]
        %v664 = vld [vmem:[#allocation4 + $0x18] sm:$0xff]
        %666 = vset.pattern.permute.xlu0 0
        %667 = vperm.xlu0 %666, %v593
        %v668 = vpop.permute.xlu0 %667
        %671 = vset.pattern.permute.xlu0 0
        %672 = vperm.xlu0 %671, %v595
        %v673 = vpop.permute.xlu0 %672
        %676 = vset.pattern.permute.xlu0 0
        %677 = vperm.xlu0 %676, %v597
        %v678 = vpop.permute.xlu0 %677
        %681 = vset.pattern.permute.xlu0 0
        %682 = vperm.xlu0 %681, %v599
        %v683 = vpop.permute.xlu0 %682
        %v685 = vmul.f32 %v668, %v661
        %v686 = vmul.f32 %v673, %v662
        %v687 = vmul.f32 %v678, %v663
        %v688 = vmul.f32 %v683, %v664
        %v689 = vpack.c.bf16 %v625, %v625
        %v690 = vpack.c.bf16 %v627, %v627
        %v691 = vpack.c.bf16 %v629, %v629
        %v692 = vpack.c.bf16 %v631, %v631
        %v694 = vsel %vm571, %v689, 0
        %vm696 = vcmask 1043456
        %v698 = vsel %vm696, %v362, 0
        %700 = vmatprep.subr.bf16.mxu0 0
        %701 = vmatpush1.bf16.msra.mxu0 %v698
        %702 = vmatprep.subr.bf16.mxu0 0
        %703 = vmatpush1.bf16.msra.mxu0 0
        %704 = vmatprep.subr.bf16.mxu0 0
        %705 = vmatpush1.bf16.msra.mxu0 0
        %706 = vmatprep.subr.bf16.mxu0 0
        %707 = vmatpush1.bf16.msra.mxu0 0
        %708 = vmatprep.subr.bf16.mxu0 0
        %709 = vmatpush1.bf16.msra.mxu0 0
        %710 = vmatprep.subr.bf16.mxu0 0
        %711 = vmatpush1.bf16.msra.mxu0 0
        %712 = vmatprep.subr.bf16.mxu0 0
        %713 = vmatpush1.bf16.msra.mxu0 0
        %714 = vmatprep.subr.bf16.mxu0 0
        %715 = vmatpush1.bf16.msra.mxu0 0
        %716 = vmatprep.subr.bf16.mxu0 0
        %717 = vmatpush1.bf16.msra.mxu0 0
        %718 = vmatprep.subr.bf16.mxu0 0
        %719 = vmatpush1.bf16.msra.mxu0 0
        %720 = vmatprep.subr.bf16.mxu0 0
        %721 = vmatpush1.bf16.msra.mxu0 0
        %722 = vmatprep.subr.bf16.mxu0 0
        %723 = vmatpush1.bf16.msra.mxu0 0
        %724 = vmatprep.subr.bf16.mxu0 0
        %725 = vmatpush1.bf16.msra.mxu0 0
        %726 = vmatprep.subr.bf16.mxu0 0
        %727 = vmatpush1.bf16.msra.mxu0 0
        %728 = vmatprep.subr.bf16.mxu0 0
        %729 = vmatpush1.bf16.msra.mxu0 0
        %730 = vmatprep.subr.bf16.mxu0 0
        %731 = vmatpush1.bf16.msra.mxu0 0
        %732 = vmatprep.mubr.bf16.mxu0 0
        %733 = vmatmul.mubr.bf16.gmra.mrb[0].mxu0 %v694
        %v734 = vpop.f32.mrb[0].mxu0
        %v735 = vadd.f32 0.0, %v734
        %v736 = vpop.f32.mrb[0].mxu0
        %v737 = vpop.f32.mrb[0].mxu0
        %v738 = vpop.f32.mrb[0].mxu0
        %739 = vdwg.mxu0
        %v741 = vsel %vm571, %v690, 0
        %v744 = vsel %vm696, %v363, 0
        %746 = vmatprep.subr.bf16.mxu0 0
        %747 = vmatpush1.bf16.msra.mxu0 %v744
        %748 = vmatprep.subr.bf16.mxu0 0
        %749 = vmatpush1.bf16.msra.mxu0 0
        %750 = vmatprep.subr.bf16.mxu0 0
        %751 = vmatpush1.bf16.msra.mxu0 0
        %752 = vmatprep.subr.bf16.mxu0 0
        %753 = vmatpush1.bf16.msra.mxu0 0
        %754 = vmatprep.subr.bf16.mxu0 0
        %755 = vmatpush1.bf16.msra.mxu0 0
        %756 = vmatprep.subr.bf16.mxu0 0
        %757 = vmatpush1.bf16.msra.mxu0 0
        %758 = vmatprep.subr.bf16.mxu0 0
        %759 = vmatpush1.bf16.msra.mxu0 0
        %760 = vmatprep.subr.bf16.mxu0 0
        %761 = vmatpush1.bf16.msra.mxu0 0
        %762 = vmatprep.subr.bf16.mxu0 0
        %763 = vmatpush1.bf16.msra.mxu0 0
        %764 = vmatprep.subr.bf16.mxu0 0
        %765 = vmatpush1.bf16.msra.mxu0 0
        %766 = vmatprep.subr.bf16.mxu0 0
        %767 = vmatpush1.bf16.msra.mxu0 0
        %768 = vmatprep.subr.bf16.mxu0 0
        %769 = vmatpush1.bf16.msra.mxu0 0
        %770 = vmatprep.subr.bf16.mxu0 0
        %771 = vmatpush1.bf16.msra.mxu0 0
        %772 = vmatprep.subr.bf16.mxu0 0
        %773 = vmatpush1.bf16.msra.mxu0 0
        %774 = vmatprep.subr.bf16.mxu0 0
        %775 = vmatpush1.bf16.msra.mxu0 0
        %776 = vmatprep.subr.bf16.mxu0 0
        %777 = vmatpush1.bf16.msra.mxu0 0
        %778 = vmatprep.mubr.bf16.mxu0 0
        %779 = vmatmul.mubr.bf16.gmra.mrb[0].mxu0 %v741
        %v780 = vpop.f32.mrb[0].mxu0
        %v781 = vadd.f32 0.0, %v780
        %v782 = vpop.f32.mrb[0].mxu0
        %v783 = vpop.f32.mrb[0].mxu0
        %v784 = vpop.f32.mrb[0].mxu0
        %785 = vdwg.mxu0
        %v787 = vsel %vm571, %v691, 0
        %v790 = vsel %vm696, %v364, 0
        %792 = vmatprep.subr.bf16.mxu0 0
        %793 = vmatpush1.bf16.msra.mxu0 %v790
        %794 = vmatprep.subr.bf16.mxu0 0
        %795 = vmatpush1.bf16.msra.mxu0 0
        %796 = vmatprep.subr.bf16.mxu0 0
        %797 = vmatpush1.bf16.msra.mxu0 0
        %798 = vmatprep.subr.bf16.mxu0 0
        %799 = vmatpush1.bf16.msra.mxu0 0
        %800 = vmatprep.subr.bf16.mxu0 0
        %801 = vmatpush1.bf16.msra.mxu0 0
        %802 = vmatprep.subr.bf16.mxu0 0
        %803 = vmatpush1.bf16.msra.mxu0 0
        %804 = vmatprep.subr.bf16.mxu0 0
        %805 = vmatpush1.bf16.msra.mxu0 0
        %806 = vmatprep.subr.bf16.mxu0 0
        %807 = vmatpush1.bf16.msra.mxu0 0
        %808 = vmatprep.subr.bf16.mxu0 0
        %809 = vmatpush1.bf16.msra.mxu0 0
        %810 = vmatprep.subr.bf16.mxu0 0
        %811 = vmatpush1.bf16.msra.mxu0 0
        %812 = vmatprep.subr.bf16.mxu0 0
        %813 = vmatpush1.bf16.msra.mxu0 0
        %814 = vmatprep.subr.bf16.mxu0 0
        %815 = vmatpush1.bf16.msra.mxu0 0
        %816 = vmatprep.subr.bf16.mxu0 0
        %817 = vmatpush1.bf16.msra.mxu0 0
        %818 = vmatprep.subr.bf16.mxu0 0
        %819 = vmatpush1.bf16.msra.mxu0 0
        %820 = vmatprep.subr.bf16.mxu0 0
        %821 = vmatpush1.bf16.msra.mxu0 0
        %822 = vmatprep.subr.bf16.mxu0 0
        %823 = vmatpush1.bf16.msra.mxu0 0
        %824 = vmatprep.mubr.bf16.mxu0 0
        %825 = vmatmul.mubr.bf16.gmra.mrb[0].mxu0 %v787
        %v826 = vpop.f32.mrb[0].mxu0
        %v827 = vadd.f32 0.0, %v826
        %v828 = vpop.f32.mrb[0].mxu0
        %v829 = vpop.f32.mrb[0].mxu0
        %v830 = vpop.f32.mrb[0].mxu0
        %831 = vdwg.mxu0
        %v833 = vsel %vm571, %v692, 0
        %v836 = vsel %vm696, %v365, 0
        %838 = vmatprep.subr.bf16.mxu0 0
        %839 = vmatpush1.bf16.msra.mxu0 %v836
        %840 = vmatprep.subr.bf16.mxu0 0
        %841 = vmatpush1.bf16.msra.mxu0 0
        %842 = vmatprep.subr.bf16.mxu0 0
        %843 = vmatpush1.bf16.msra.mxu0 0
        %844 = vmatprep.subr.bf16.mxu0 0
        %845 = vmatpush1.bf16.msra.mxu0 0
        %846 = vmatprep.subr.bf16.mxu0 0
        %847 = vmatpush1.bf16.msra.mxu0 0
        %848 = vmatprep.subr.bf16.mxu0 0
        %849 = vmatpush1.bf16.msra.mxu0 0
        %850 = vmatprep.subr.bf16.mxu0 0
        %851 = vmatpush1.bf16.msra.mxu0 0
        %852 = vmatprep.subr.bf16.mxu0 0
        %853 = vmatpush1.bf16.msra.mxu0 0
        %854 = vmatprep.subr.bf16.mxu0 0
        %855 = vmatpush1.bf16.msra.mxu0 0
        %856 = vmatprep.subr.bf16.mxu0 0
        %857 = vmatpush1.bf16.msra.mxu0 0
        %858 = vmatprep.subr.bf16.mxu0 0
        %859 = vmatpush1.bf16.msra.mxu0 0
        %860 = vmatprep.subr.bf16.mxu0 0
        %861 = vmatpush1.bf16.msra.mxu0 0
        %862 = vmatprep.subr.bf16.mxu0 0
        %863 = vmatpush1.bf16.msra.mxu0 0
        %864 = vmatprep.subr.bf16.mxu0 0
        %865 = vmatpush1.bf16.msra.mxu0 0
        %866 = vmatprep.subr.bf16.mxu0 0
        %867 = vmatpush1.bf16.msra.mxu0 0
        %868 = vmatprep.subr.bf16.mxu0 0
        %869 = vmatpush1.bf16.msra.mxu0 0
        %870 = vmatprep.mubr.bf16.mxu0 0
        %871 = vmatmul.mubr.bf16.gmra.mrb[0].mxu0 %v833
        %v872 = vpop.f32.mrb[0].mxu0
        %v873 = vadd.f32 0.0, %v872
        %v874 = vpop.f32.mrb[0].mxu0
        %v875 = vpop.f32.mrb[0].mxu0
        %v876 = vpop.f32.mrb[0].mxu0
        %877 = vdwg.mxu0
        %v878 = vadd.f32 %v685, %v735
        %v879 = vadd.f32 %v686, %v781
        %v880 = vadd.f32 %v687, %v827
        %v881 = vadd.f32 %v688, %v873
        %882 = vst.msk [vmem:[#allocation4] sm:$0xff] %vm366, %v878
        %883 = vst.msk [vmem:[#allocation4 + $0x8] sm:$0xff] %vm366, %v879
        %884 = vst.msk [vmem:[#allocation4 + $0x10] sm:$0xff] %vm366, %v880
        %885 = vst.msk [vmem:[#allocation4 + $0x18] sm:$0xff] %vm366, %v881
        %886 = vst.msk [vmem:[#allocation2] sm:$0xff] %vm656, %v584
        %887 = vst.msk [vmem:[#allocation2 + $0x8] sm:$0xff] %vm656, %v585
        %888 = vst.msk [vmem:[#allocation2 + $0x10] sm:$0xff] %vm656, %v586
        %889 = vst.msk [vmem:[#allocation2 + $0x18] sm:$0xff] %vm656, %v587
        // Predicated region
        $region41: #{transformer_forward.64} parent=35 // pred_check
          %p890 = pneg %p336
        $region42: #{transformer_forward.64} parent=35 // pred_check_branch
          %892 = sbr.rel (%p890) target = $region44
        $region43: #{transformer_forward.64} parent=35 // pred_region
          %v893 = vld [vmem:[#allocation3] sm:$0xff]
          %v894 = vld [vmem:[#allocation3 + $0x8] sm:$0xff]
          %v895 = vld [vmem:[#allocation3 + $0x10] sm:$0xff]
          %v896 = vld [vmem:[#allocation3 + $0x18] sm:$0xff]
          %v897 = vrcp.pop %v893
          %v898 = vrcp.pop %v894
          %v899 = vrcp.pop %v895
          %v900 = vrcp.pop %v896
          %v901 = vld [vmem:[#allocation4] sm:$0xff]
          %v902 = vld [vmem:[#allocation4 + $0x8] sm:$0xff]
          %v903 = vld [vmem:[#allocation4 + $0x10] sm:$0xff]
          %v904 = vld [vmem:[#allocation4 + $0x18] sm:$0xff]
          %906 = vset.pattern.permute.xlu0 0
          %907 = vperm.xlu0 %906, %v897
          %v908 = vpop.permute.xlu0 %907
          %911 = vset.pattern.permute.xlu0 0
          %912 = vperm.xlu0 %911, %v898
          %v913 = vpop.permute.xlu0 %912
          %916 = vset.pattern.permute.xlu0 0
          %917 = vperm.xlu0 %916, %v899
          %v918 = vpop.permute.xlu0 %917
          %921 = vset.pattern.permute.xlu0 0
          %922 = vperm.xlu0 %921, %v900
          %v923 = vpop.permute.xlu0 %922
          %v925 = vmul.f32 %v901, %v908
          %v926 = vmul.f32 %v902, %v913
          %v927 = vmul.f32 %v903, %v918
          %v928 = vmul.f32 %v904, %v923
          %v929 = vpack.c.bf16 %v925, %v925
          %v930 = vpack.c.bf16 %v926, %v926
          %v931 = vpack.c.bf16 %v927, %v927
          %v932 = vpack.c.bf16 %v928, %v928
          %vm933 = vcmask 257024
          %934 = vst.msk [vmem:[%s334] sm:$0xf] %vm933, %v929
          %935 = vst.msk [vmem:[%s334 + $0x4] sm:$0xf] %vm933, %v930
          %936 = vst.msk [vmem:[%s334 + $0x8] sm:$0xf] %vm933, %v931
          %937 = vst.msk [vmem:[%s334 + $0xc] sm:$0xf] %vm933, %v932
          %v938 = vmul.f32 %v625, %v908
          %v939 = vmul.f32 %v627, %v913
          %v940 = vmul.f32 %v629, %v918
          %v941 = vmul.f32 %v631, %v923
          %942 = vst.msk [vmem:[%s302] sm:$0xff] %vm571, %v938
          %943 = vst.msk [vmem:[%s302 + $0x8] sm:$0xff] %vm571, %v939
          %944 = vst.msk [vmem:[%s302 + $0x10] sm:$0xff] %vm571, %v940
          %945 = vst.msk [vmem:[%s302 + $0x18] sm:$0xff] %vm571, %v941
        $region44: #{transformer_forward.64} parent=35 // pred_fallthru
          _
        %p946 = scmp.lt.s32.totalorder %s24, 1
        %s947 = scalar_select %p946, %s24, 1
        %s948 = smul.addr %s947, 4
        %s949 = smul.addr %s948, 4
        %s950 = scalar_lea.vmem %s4, %s949
        %s951 = sand.u32 %s176, 1
        %s952 = scalar_lea.sflag [#allocation6], %s951
        %s953 = sand.u32 %s176, 1
        %s954 = smul.addr %s953, 32
        %s955 = scalar_lea.vmem [#allocation5], %s954
        // Predicated region
        $region45: #{transformer_forward.64} parent=35 // pred_check
          %p956 = pneg %p160
        $region46: #{transformer_forward.64} parent=35 // pred_check_branch
          %958 = sbr.rel (%p956) target = $region48
        $region47: #{transformer_forward.64} parent=35 // pred_region
          _
        $region48: #{transformer_forward.64} parent=35 // pred_fallthru
          _
        // Predicated region
        $region49: #{transformer_forward.64} parent=35 // pred_check
          %p959 = pneg %p186
        $region50: #{transformer_forward.64} parent=35 // pred_check_branch
          %961 = sbr.rel (%p959) target = $region52
        $region51: #{transformer_forward.64} parent=35 // pred_region
          %s963 = ssub.s32 512, 512
          %964 = vsyncadd %s952, %s963
          %s965 = smul.addr %s24, 4
          %s966 = smul.addr %s965, 128
          %s967 = scalar_lea.hbm %s5, %s966
          %s968 = sshll.u32 %s955, 4
          %s969 = int_to_ptr.vmem [resolvable:$true] %s968
          %974 = dma.vmem_to_hbm [thread:$0]  %s969, 512, %s967, %s952, 128, 128, 8
        $region52: #{transformer_forward.64} parent=35 // pred_fallthru
          _
      $region36: #{transformer_forward.64} parent=5 // pred_fallthru
        _
      %p975 = scmp.le.s32.totalorder 2, %s15
      // Predicated region
      $region53: #{transformer_forward.64} parent=5 // pred_check
        %p976 = pneg %p975
      $region54: #{transformer_forward.64} parent=5 // pred_check_branch
        %978 = sbr.rel (%p976) target = $region56
      $region55: #{transformer_forward.64} parent=5 // pred_region
        %s979 = ssub.s32 %s15, 2
        // Predicated region
        $region57: #{transformer_forward.64} parent=55 // pred_check
          %p980 = pneg %p166
        $region58: #{transformer_forward.64} parent=55 // pred_check_branch
          %982 = sbr.rel (%p980) target = $region60
        $region59: #{transformer_forward.64} parent=55 // pred_region
          %p983 = scmp.lt.s32.totalorder %s26, 1
          %s984 = scalar_select %p983, %s26, 1
          %s985 = smul.addr %s984, 4
          %s986 = smul.addr %s985, 4
          %s987 = scalar_lea.vmem %s4, %s986
        $region60: #{transformer_forward.64} parent=55 // pred_fallthru
          _
        // Predicated region
        $region61: #{transformer_forward.64} parent=55 // pred_check
          %p988 = pneg %p192
        $region62: #{transformer_forward.64} parent=55 // pred_check_branch
          %990 = sbr.rel (%p988) target = $region64
        $region63: #{transformer_forward.64} parent=55 // pred_region
          %s991 = sand.u32 %s177, 1
          %s992 = scalar_lea.sflag [#allocation6], %s991
          %s993 = sand.u32 %s177, 1
          %s994 = smul.addr %s993, 32
          %s995 = scalar_lea.vmem [#allocation5], %s994
          %996 = dma.done %s992, 512
        $region64: #{transformer_forward.64} parent=55 // pred_fallthru
          _
      $region56: #{transformer_forward.64} parent=5 // pred_fallthru
        _
    $region6: #{transformer_forward.64} parent=1 // loop_footer
      %s19 = sadd.s32 1, %s15
    $region7: #{transformer_forward.64} parent=1 // loop_footer_branch
      %14 = sbr.rel target = $region3
    $region8: #{transformer_forward.64} parent=1 // loop_exit
      _
    %997 = vsyncpa [#allocation6], 1
    %s998 = scalar_lea.sflag [#allocation6], 1
    %999 = vsyncpa %s998, 1

// kernel: transformer_forward.69
$region0: #{transformer_forward.69}
  #allocation0 [shape = 'u32[]', space=smem, size = 0x4, offset = 0x4, fixed_abs, tag = 'smem constant byte address 0x4 - core index']
  #allocation1 [shape = 'u32[144,128]{1,0:T(1,128)}', space=vmem, size = 0x12000, scoped, tag = 'internal scratch']
  %s0 = inlined_call_operand.vmem [shape: bf16[16,128], index: 0, kind: input, shape index: {}]
  %s1 = inlined_call_operand.vmem [shape: bf16[128,128], index: 1, kind: input, shape index: {}]
  %s2 = inlined_call_operand.vmem [shape: f32[1,128], index: 2, kind: input, shape index: {}]
  %s3 = inlined_call_operand.hbm [shape: bf16[16,128], index: 3, kind: output, shape index: {}]
  %s4 = sld [smem:[#allocation0]]
  $region22: #{transformer_forward.69} parent=0
    _
  %s6 = ssub.s32 1, %s4
  %s7 = scalar_select 0, %s6, %s4
  $region1: #{transformer_forward.69} parent=0
    #allocation2 [shape = 'u8[4096]{0}', space=vmem, size = 0x1000, scoped, tag = 'output window, operand 0, single buffered']
    #allocation3 [shape = 's32[1]{0}', space=sflag, size = 0x4, scoped, tag = 'scoped memory for transformer_forward.69']
    %8 = vsyncpa [#allocation3], 0
    // Predicated region
    $region2: #{transformer_forward.69} parent=1 // pred_check
      _
    $region3: #{transformer_forward.69} parent=1 // pred_check_branch
      %10 = sbr.rel (0) target = $region5
    $region4: #{transformer_forward.69} parent=1 // pred_region
      _
    $region5: #{transformer_forward.69} parent=1 // pred_fallthru
      _
    // Predicated region
    $region6: #{transformer_forward.69} parent=1 // pred_check
      _
    $region7: #{transformer_forward.69} parent=1 // pred_check_branch
      %12 = sbr.rel (0) target = $region9
    $region8: #{transformer_forward.69} parent=1 // pred_region
      _
    $region9: #{transformer_forward.69} parent=1 // pred_fallthru
      _
    // Predicated region
    $region10: #{transformer_forward.69} parent=1 // pred_check
      _
    $region11: #{transformer_forward.69} parent=1 // pred_check_branch
      %14 = sbr.rel (0) target = $region13
    $region12: #{transformer_forward.69} parent=1 // pred_region
      _
    $region13: #{transformer_forward.69} parent=1 // pred_fallthru
      _
    %v16 = vld [vmem:[%s0] sm:$0xf]
    %v17 = vld [vmem:[%s0 + $0x4] sm:$0xf]
    %v18 = vld [vmem:[%s1] sm:$0xf]
    %v19 = vld [vmem:[%s1 + $0x4] sm:$0xf]
    %v20 = vld [vmem:[%s1 + $0x8] sm:$0xf]
    %v21 = vld [vmem:[%s1 + $0xc] sm:$0xf]
    %v22 = vld [vmem:[%s1 + $0x10] sm:$0xf]
    %v23 = vld [vmem:[%s1 + $0x14] sm:$0xf]
    %v24 = vld [vmem:[%s1 + $0x18] sm:$0xf]
    %v25 = vld [vmem:[%s1 + $0x1c] sm:$0xf]
    %v26 = vld [vmem:[%s1 + $0x20] sm:$0xf]
    %v27 = vld [vmem:[%s1 + $0x24] sm:$0xf]
    %v28 = vld [vmem:[%s1 + $0x28] sm:$0xf]
    %v29 = vld [vmem:[%s1 + $0x2c] sm:$0xf]
    %v30 = vld [vmem:[%s1 + $0x30] sm:$0xf]
    %v31 = vld [vmem:[%s1 + $0x34] sm:$0xf]
    %v32 = vld [vmem:[%s1 + $0x38] sm:$0xf]
    %v33 = vld [vmem:[%s1 + $0x3c] sm:$0xf]
    %v34 = vld [vmem:[%s2] sm:$0x1]
    %v36 = vlaneseq
    %v37 = vshrl.u32 %v36, 7
    %v38 = vsub.s32 0, %v37
    %v39 = vrot.slane %v34, %v38
    %v43 = vunpack.c.l.b16 %v16
    %v44 = vunpack.c.l.b16 %v17
    %v45 = vpack.c.b16 %v44, %v43
    %v63 = vunpack.c.l.b16 %v18
    %v64 = vunpack.c.l.b16 %v19
    %v65 = vunpack.c.l.b16 %v20
    %v66 = vunpack.c.l.b16 %v21
    %v67 = vunpack.c.l.b16 %v22
    %v68 = vunpack.c.l.b16 %v23
    %v69 = vunpack.c.l.b16 %v24
    %v70 = vunpack.c.l.b16 %v25
    %v71 = vunpack.c.l.b16 %v26
    %v72 = vunpack.c.l.b16 %v27
    %v73 = vunpack.c.l.b16 %v28
    %v74 = vunpack.c.l.b16 %v29
    %v75 = vunpack.c.l.b16 %v30
    %v76 = vunpack.c.l.b16 %v31
    %v77 = vunpack.c.l.b16 %v32
    %v78 = vunpack.c.l.b16 %v33
    %v79 = vpack.c.b16 %v64, %v63
    %v80 = vpack.c.b16 %v66, %v65
    %v81 = vpack.c.b16 %v68, %v67
    %v82 = vpack.c.b16 %v70, %v69
    %v83 = vpack.c.b16 %v72, %v71
    %v84 = vpack.c.b16 %v74, %v73
    %v85 = vpack.c.b16 %v76, %v75
    %v86 = vpack.c.b16 %v78, %v77
    %95 = vmatprep.subr.bf16.mxu0 0
    %96 = vmatpush1.bf16.msra.mxu0 %v79
    %97 = vmatprep.subr.bf16.mxu0 0
    %98 = vmatpush1.bf16.msra.mxu0 %v80
    %99 = vmatprep.subr.bf16.mxu0 0
    %100 = vmatpush1.bf16.msra.mxu0 %v81
    %101 = vmatprep.subr.bf16.mxu0 0
    %102 = vmatpush1.bf16.msra.mxu0 %v82
    %103 = vmatprep.subr.bf16.mxu0 0
    %104 = vmatpush1.bf16.msra.mxu0 %v83
    %105 = vmatprep.subr.bf16.mxu0 0
    %106 = vmatpush1.bf16.msra.mxu0 %v84
    %107 = vmatprep.subr.bf16.mxu0 0
    %108 = vmatpush1.bf16.msra.mxu0 %v85
    %109 = vmatprep.subr.bf16.mxu0 0
    %110 = vmatpush1.bf16.msra.mxu0 %v86
    %111 = vmatprep.subr.bf16.mxu0 0
    %112 = vmatpush1.bf16.msra.mxu0 0
    %113 = vmatprep.subr.bf16.mxu0 0
    %114 = vmatpush1.bf16.msra.mxu0 0
    %115 = vmatprep.subr.bf16.mxu0 0
    %116 = vmatpush1.bf16.msra.mxu0 0
    %117 = vmatprep.subr.bf16.mxu0 0
    %118 = vmatpush1.bf16.msra.mxu0 0
    %119 = vmatprep.subr.bf16.mxu0 0
    %120 = vmatpush1.bf16.msra.mxu0 0
    %121 = vmatprep.subr.bf16.mxu0 0
    %122 = vmatpush1.bf16.msra.mxu0 0
    %123 = vmatprep.subr.bf16.mxu0 0
    %124 = vmatpush1.bf16.msra.mxu0 0
    %125 = vmatprep.subr.bf16.mxu0 0
    %126 = vmatpush1.bf16.msra.mxu0 0
    %127 = vmatprep.mubr.bf16.mxu0 0
    %128 = vmatmul.mubr.bf16.gmra.mrb[0].mxu0 %v45
    %v129 = vpop.f32.mrb[0].mxu0
    %v130 = vadd.f32 %v39, %v129
    %v131 = vpop.f32.mrb[0].mxu0
    %v132 = vpop.f32.mrb[0].mxu0
    %v133 = vadd.f32 %v39, %v132
    %v134 = vpop.f32.mrb[0].mxu0
    %135 = vdwg.mxu0
    %v136 = vpack.c.bf16 %v133, %v130
    %v138 = vunpack.c.l.b16 %v136
    %v139 = vunpack.c.h.b16 %v136
    %v140 = vpack.c.b16 %v138, %v138
    %v141 = vpack.c.b16 %v139, %v139
    %144 = vst [vmem:[#allocation2] sm:$0xf] %v140
    %145 = vst [vmem:[#allocation2 + $0x4] sm:$0xf] %v141
    // Predicated region
    $region14: #{transformer_forward.69} parent=1 // pred_check
      _
    $region15: #{transformer_forward.69} parent=1 // pred_check_branch
      %147 = sbr.rel (0) target = $region17
    $region16: #{transformer_forward.69} parent=1 // pred_region
      %s149 = ssub.s32 128, 128
      %150 = vsyncadd [#allocation3], %s149
      %s151 = sshll.u32 [#allocation2], 4
      %s152 = int_to_ptr.vmem [resolvable:$true] %s151
      %157 = dma.vmem_to_hbm [thread:$0]  %s152, 128, %s3, [#allocation3], 64, 64, 4
    $region17: #{transformer_forward.69} parent=1 // pred_fallthru
      _
    // Predicated region
    $region18: #{transformer_forward.69} parent=1 // pred_check
      _
    $region19: #{transformer_forward.69} parent=1 // pred_check_branch
      %159 = sbr.rel (0) target = $region21
    $region20: #{transformer_forward.69} parent=1 // pred_region
      %160 = dma.done [#allocation3], 128
    $region21: #{transformer_forward.69} parent=1 // pred_fallthru
      _
    %161 = vsyncpa [#allocation3], 1

</llo_original>
